<compile_context>
chip_gen: v7x
topology: tpu7x:2x2x1
jax: 0.10.0
libtpu: 0.0.40
codegen_flags: <defaults>
</compile_context>

<pallas_src>
import jax
import jax.numpy as jnp
from jax import lax
from jax.experimental import pallas as pl
from jax.experimental.pallas import tpu as pltpu


def attention_lstm_kernel(x_ref, wih_ref, whh_ref, b_ref, wl_ref, bl_ref,
                          out_ref, pre_ref, seq_ref, h_sc, c_sc):
    # TODO(synk): nn.Dropout layers are identity in eval mode; training-mode dropout not implemented.
    T, B, H = seq_ref.shape

    # ---- Phase 1: hoisted input projection (bias folded in) -------------------------------
    # pre[g] = X @ W_ih[g]^T + (b_ih[g] + b_hh[g]) for all T*B rows: one big bf16 MXU matmul
    # per lane-aligned gate slab, instead of T tiny matmuls + T bias broadcasts in the loop.
    xb = x_ref[...]                                             # (T*B, E) bf16
    for g in range(4):                                          # static unroll over gates i,f,g,o
        pre_ref[g] = (jnp.dot(xb, wih_ref[g],
                              preferred_element_type=jnp.float32)
                      + b_ref[g])                               # (T*B, H) f32

    h_sc[...] = jnp.zeros_like(h_sc)
    c_sc[...] = jnp.zeros_like(c_sc)

    # ---- Phase 2: serialized LSTM recurrence ----------------------------------------------
    # Per step only four lane-aligned (B,H)@(H,H) bf16 recurrent dots + f32 VPU/EUP gate math
    # remain on the critical path (no gate slicing, no bias broadcast).
    def step(t, carry):
        h = h_sc[...]                                           # (B, H) f32 carry
        c = c_sc[...]
        hb = h.astype(jnp.bfloat16)
        base = t * B

        def gate(g):
            return (pre_ref[g, pl.ds(base, B), :]
                    + jnp.dot(hb, whh_ref[g],
                              preferred_element_type=jnp.float32))

        i_t = jax.nn.sigmoid(gate(0))                           # PyTorch gate order: i, f, g, o
        f_t = jax.nn.sigmoid(gate(1))
        g_t = jnp.tanh(gate(2))
        o_t = jax.nn.sigmoid(gate(3))
        c_new = f_t * c + i_t * g_t
        h_new = o_t * jnp.tanh(c_new)
        h_sc[...] = h_new
        c_sc[...] = c_new
        seq_ref[t] = h_new                                      # (B, H)
        return carry

    lax.fori_loop(0, T, step, 0, unroll=True)                   # T is static -> full unroll

    # ---- Phase 3: self-attention with the final hidden state ------------------------------
    # keepdims-shaped reductions keep H on lanes throughout (no lane<->sublane relayouts).
    out = seq_ref[...]                                          # (T, B, H) f32
    hf = h_sc[...]                                              # (B, H) == h_n.squeeze(0)
    scores = jnp.sum(out * hf[None, :, :], axis=-1, keepdims=True)   # (T, B, 1)
    m = jnp.max(scores, axis=0, keepdims=True)                  # (1, B, 1)
    e = jnp.exp(scores - m)                                     # (T, B, 1)
    denom = jnp.sum(e, axis=0, keepdims=True)                   # (1, B, 1)
    p = e * pl.reciprocal(denom, approx=True)                   # softmax over seq dim (EUP recip)
    ctx = jnp.sum(p * out, axis=0)                              # (B, H) weighted sum of states

    # ---- Phase 4: classifier head (Linear(H, C)); .squeeze(1) is a no-op for C > 1 --------
    out_ref[...] = (jnp.dot(ctx.astype(jnp.bfloat16), wl_ref[...],
                            preferred_element_type=jnp.float32)
                    + bl_ref[...])                              # (B, C) f32


def attention_lstm_forward(x_bte, params):
    B, T, E = x_bte.shape
    H = params["w_hh"].shape[1]
    C = params["w_label"].shape[0]

    # (B,T,E) -> (T,B,E) -> flat (T*B, E); row t*B + b holds x[b, t].
    x_tbe = jnp.transpose(x_bte, (1, 0, 2)).astype(jnp.float32)
    x2d = x_tbe.reshape(T * B, E).astype(jnp.bfloat16)

    # PyTorch packs gates [i, f, g, o] along the 4H axis of w_ih (4H,E), w_hh (4H,H).
    # Split into lane-aligned per-gate slabs, transposed so kernel matmuls are plain x @ W.
    wih4 = params["w_ih"].reshape(4, H, E).transpose(0, 2, 1).astype(jnp.bfloat16)   # (4, E, H)
    whh4 = params["w_hh"].reshape(4, H, H).transpose(0, 2, 1).astype(jnp.bfloat16)   # (4, H, H)
    b4 = (params["b_ih"] + params["b_hh"]).reshape(4, 1, H).astype(jnp.float32)      # (4, 1, H)
    wl = params["w_label"].T.astype(jnp.bfloat16)                                     # (H, C)
    bl = params["b_label"].reshape(1, C).astype(jnp.float32)                          # (1, C)

    vmem = pl.BlockSpec(memory_space=pltpu.MemorySpace.VMEM)
    return pl.pallas_call(
        attention_lstm_kernel,
        out_shape=jax.ShapeDtypeStruct((B, C), jnp.float32),
        in_specs=[vmem] * 6,
        out_specs=vmem,
        scratch_shapes=[
            pltpu.VMEM((4, T * B, H), jnp.float32),   # hoisted per-gate pre-activations
            pltpu.VMEM((T, B, H), jnp.float32),       # per-step hidden states
            pltpu.VMEM((B, H), jnp.float32),          # h carry
            pltpu.VMEM((B, H), jnp.float32),          # c carry
        ],
        compiler_params=pltpu.CompilerParams(
            vmem_limit_bytes=32 * 1024 * 1024),
    )(x2d, wih4, whh4, b4, wl, bl)


def reference_forward(x, params):
    """Pure-JAX f32 reference mirroring the PyTorch module (eval mode)."""
    B, T, E = x.shape
    H = params["w_hh"].shape[1]
    wih, whh = params["w_ih"], params["w_hh"]
    b = params["b_ih"] + params["b_hh"]

    def step(carry, xt):
        h, c = carry
        gates = xt @ wih.T + h @ whh.T + b
        i, f, g, o = jnp.split(gates, 4, axis=-1)
        c = jax.nn.sigmoid(f) * c + jax.nn.sigmoid(i) * jnp.tanh(g)
        h = jax.nn.sigmoid(o) * jnp.tanh(c)
        return (h, c), h

    h0 = jnp.zeros((B, H), jnp.float32)
    c0 = jnp.zeros((B, H), jnp.float32)
    (hT, _), outs = lax.scan(step, (h0, c0), jnp.transpose(x, (1, 0, 2)))
    lstm_out = jnp.transpose(outs, (1, 0, 2))               # (B, T, H)
    attn = jnp.einsum("bth,bh->bt", lstm_out, hT)
    p = jax.nn.softmax(attn, axis=1)
    ctx = jnp.einsum("bth,bt->bh", lstm_out, p)
    return ctx @ params["w_label"].T + params["b_label"]


if __name__ == "__main__":
    B, T, E, H, C = 2, 8, 16, 32, 4
    key = jax.random.PRNGKey(0)
    ks = jax.random.split(key, 7)
    s = 1.0 / jnp.sqrt(jnp.float32(H))

    x = jax.random.normal(ks[0], (B, T, E), jnp.float32)
    params = {
        "w_ih":    jax.random.uniform(ks[1], (4 * H, E), jnp.float32, -s, s),
        "w_hh":    jax.random.uniform(ks[2], (4 * H, H), jnp.float32, -s, s),
        "b_ih":    jax.random.uniform(ks[3], (4 * H,),   jnp.float32, -s, s),
        "b_hh":    jax.random.uniform(ks[4], (4 * H,),   jnp.float32, -s, s),
        "w_label": jax.random.uniform(ks[5], (C, H),     jnp.float32, -s, s),
        "b_label": jax.random.uniform(ks[6], (C,),       jnp.float32, -s, s),
    }

    logits = attention_lstm_forward(x, params)
    jax.block_until_ready(logits)

    ref = reference_forward(x, params)
    assert logits.shape == (B, C)
    # Tolerance loosened vs. a pure-f32 check: the kernel feeds the MXU in bf16 and uses the
    # EUP approximate reciprocal in the softmax.
    max_err = jnp.max(jnp.abs(logits - ref))
    assert jnp.allclose(logits, ref, atol=5e-2, rtol=5e-2), (logits, ref, max_err)
    print("KERNEL_OK")
</pallas_src>

<mosaic_0001>
module attributes {stable_mosaic.version = 11 : i64} {
  func.func @attention_lstm_kernel(%arg0: memref<16x16xbf16, #tpu.memory_space<vmem>>, %arg1: memref<4x16x32xbf16, #tpu.memory_space<vmem>>, %arg2: memref<4x32x32xbf16, #tpu.memory_space<vmem>>, %arg3: memref<4x1x32xf32, #tpu.memory_space<vmem>>, %arg4: memref<32x4xbf16, #tpu.memory_space<vmem>>, %arg5: memref<1x4xf32, #tpu.memory_space<vmem>>, %arg6: memref<2x4xf32, #tpu.memory_space<vmem>>, %arg7: memref<4x16x32xf32, #tpu.memory_space<vmem>>, %arg8: memref<8x2x32xf32, #tpu.memory_space<vmem>>, %arg9: memref<2x32xf32, #tpu.memory_space<vmem>>, %arg10: memref<2x32xf32, #tpu.memory_space<vmem>>) attributes {dimension_semantics = [], scalar_prefetch = 0 : i64, scratch_operands = 4 : i64, tpu.core_type = #tpu.core_type<tc>} {
    %c0 = arith.constant 0 : index
    %c0_0 = arith.constant 0 : index
    %0 = vector.load %arg0[%c0, %c0_0] : memref<16x16xbf16, #tpu.memory_space<vmem>>, vector<16x16xbf16>
    %c0_1 = arith.constant 0 : index
    %c0_2 = arith.constant 0 : index
    %c0_3 = arith.constant 0 : index
    %1 = vector.load %arg1[%c0_1, %c0_2, %c0_3] : memref<4x16x32xbf16, #tpu.memory_space<vmem>>, vector<1x16x32xbf16>
    %2 = vector.shape_cast %1 : vector<1x16x32xbf16> to vector<16x32xbf16>
    %cst = arith.constant dense<0.000000e+00> : vector<16x32xf32>
    %3 = tpu.matmul %0, %2, %cst {dimension_numbers = #tpu.dot_dimension_numbers<[1], [0], [0], [1], [0, 0, 1, 1], [], []>} : vector<16x16xbf16>, vector<16x32xbf16>, vector<16x32xf32> -> vector<16x32xf32>
    %c0_4 = arith.constant 0 : index
    %c0_5 = arith.constant 0 : index
    %c0_6 = arith.constant 0 : index
    %4 = vector.load %arg3[%c0_4, %c0_5, %c0_6] : memref<4x1x32xf32, #tpu.memory_space<vmem>>, vector<1x1x32xf32>
    %5 = vector.shape_cast %4 : vector<1x1x32xf32> to vector<1x32xf32>
    %6 = vector.broadcast %5 : vector<1x32xf32> to vector<16x32xf32>
    %7 = arith.addf %3, %6 : vector<16x32xf32>
    %c0_7 = arith.constant 0 : index
    %c0_8 = arith.constant 0 : index
    %c0_9 = arith.constant 0 : index
    %8 = vector.load %arg7[%c0_7, %c0_8, %c0_9] : memref<4x16x32xf32, #tpu.memory_space<vmem>>, vector<1x16x32xf32>
    %9 = vector.shape_cast %8 : vector<1x16x32xf32> to vector<16x32xf32>
    %10 = vector.shape_cast %7 : vector<16x32xf32> to vector<1x16x32xf32>
    tpu.vector_store %arg7[%c0_7, %c0_8, %c0_9], %10 {strides = array<i32>} : memref<4x16x32xf32, #tpu.memory_space<vmem>>, vector<1x16x32xf32>,
    %c1 = arith.constant 1 : index
    %c0_10 = arith.constant 0 : index
    %c0_11 = arith.constant 0 : index
    %11 = vector.load %arg1[%c1, %c0_10, %c0_11] : memref<4x16x32xbf16, #tpu.memory_space<vmem>>, vector<1x16x32xbf16>
    %12 = vector.shape_cast %11 : vector<1x16x32xbf16> to vector<16x32xbf16>
    %cst_12 = arith.constant dense<0.000000e+00> : vector<16x32xf32>
    %13 = tpu.matmul %0, %12, %cst_12 {dimension_numbers = #tpu.dot_dimension_numbers<[1], [0], [0], [1], [0, 0, 1, 1], [], []>} : vector<16x16xbf16>, vector<16x32xbf16>, vector<16x32xf32> -> vector<16x32xf32>
    %c1_13 = arith.constant 1 : index
    %c0_14 = arith.constant 0 : index
    %c0_15 = arith.constant 0 : index
    %14 = vector.load %arg3[%c1_13, %c0_14, %c0_15] : memref<4x1x32xf32, #tpu.memory_space<vmem>>, vector<1x1x32xf32>
    %15 = vector.shape_cast %14 : vector<1x1x32xf32> to vector<1x32xf32>
    %16 = vector.broadcast %15 : vector<1x32xf32> to vector<16x32xf32>
    %17 = arith.addf %13, %16 : vector<16x32xf32>
    %c1_16 = arith.constant 1 : index
    %c0_17 = arith.constant 0 : index
    %c0_18 = arith.constant 0 : index
    %18 = vector.load %arg7[%c1_16, %c0_17, %c0_18] : memref<4x16x32xf32, #tpu.memory_space<vmem>>, vector<1x16x32xf32>
    %19 = vector.shape_cast %18 : vector<1x16x32xf32> to vector<16x32xf32>
    %20 = vector.shape_cast %17 : vector<16x32xf32> to vector<1x16x32xf32>
    tpu.vector_store %arg7[%c1_16, %c0_17, %c0_18], %20 {strides = array<i32>} : memref<4x16x32xf32, #tpu.memory_space<vmem>>, vector<1x16x32xf32>,
    %c2 = arith.constant 2 : index
    %c0_19 = arith.constant 0 : index
    %c0_20 = arith.constant 0 : index
    %21 = vector.load %arg1[%c2, %c0_19, %c0_20] : memref<4x16x32xbf16, #tpu.memory_space<vmem>>, vector<1x16x32xbf16>
    %22 = vector.shape_cast %21 : vector<1x16x32xbf16> to vector<16x32xbf16>
    %cst_21 = arith.constant dense<0.000000e+00> : vector<16x32xf32>
    %23 = tpu.matmul %0, %22, %cst_21 {dimension_numbers = #tpu.dot_dimension_numbers<[1], [0], [0], [1], [0, 0, 1, 1], [], []>} : vector<16x16xbf16>, vector<16x32xbf16>, vector<16x32xf32> -> vector<16x32xf32>
    %c2_22 = arith.constant 2 : index
    %c0_23 = arith.constant 0 : index
    %c0_24 = arith.constant 0 : index
    %24 = vector.load %arg3[%c2_22, %c0_23, %c0_24] : memref<4x1x32xf32, #tpu.memory_space<vmem>>, vector<1x1x32xf32>
    %25 = vector.shape_cast %24 : vector<1x1x32xf32> to vector<1x32xf32>
    %26 = vector.broadcast %25 : vector<1x32xf32> to vector<16x32xf32>
    %27 = arith.addf %23, %26 : vector<16x32xf32>
    %c2_25 = arith.constant 2 : index
    %c0_26 = arith.constant 0 : index
    %c0_27 = arith.constant 0 : index
    %28 = vector.load %arg7[%c2_25, %c0_26, %c0_27] : memref<4x16x32xf32, #tpu.memory_space<vmem>>, vector<1x16x32xf32>
    %29 = vector.shape_cast %28 : vector<1x16x32xf32> to vector<16x32xf32>
    %30 = vector.shape_cast %27 : vector<16x32xf32> to vector<1x16x32xf32>
    tpu.vector_store %arg7[%c2_25, %c0_26, %c0_27], %30 {strides = array<i32>} : memref<4x16x32xf32, #tpu.memory_space<vmem>>, vector<1x16x32xf32>,
    %c3 = arith.constant 3 : index
    %c0_28 = arith.constant 0 : index
    %c0_29 = arith.constant 0 : index
    %31 = vector.load %arg1[%c3, %c0_28, %c0_29] : memref<4x16x32xbf16, #tpu.memory_space<vmem>>, vector<1x16x32xbf16>
    %32 = vector.shape_cast %31 : vector<1x16x32xbf16> to vector<16x32xbf16>
    %cst_30 = arith.constant dense<0.000000e+00> : vector<16x32xf32>
    %33 = tpu.matmul %0, %32, %cst_30 {dimension_numbers = #tpu.dot_dimension_numbers<[1], [0], [0], [1], [0, 0, 1, 1], [], []>} : vector<16x16xbf16>, vector<16x32xbf16>, vector<16x32xf32> -> vector<16x32xf32>
    %c3_31 = arith.constant 3 : index
    %c0_32 = arith.constant 0 : index
    %c0_33 = arith.constant 0 : index
    %34 = vector.load %arg3[%c3_31, %c0_32, %c0_33] : memref<4x1x32xf32, #tpu.memory_space<vmem>>, vector<1x1x32xf32>
    %35 = vector.shape_cast %34 : vector<1x1x32xf32> to vector<1x32xf32>
    %36 = vector.broadcast %35 : vector<1x32xf32> to vector<16x32xf32>
    %37 = arith.addf %33, %36 : vector<16x32xf32>
    %c3_34 = arith.constant 3 : index
    %c0_35 = arith.constant 0 : index
    %c0_36 = arith.constant 0 : index
    %38 = vector.load %arg7[%c3_34, %c0_35, %c0_36] : memref<4x16x32xf32, #tpu.memory_space<vmem>>, vector<1x16x32xf32>
    %39 = vector.shape_cast %38 : vector<1x16x32xf32> to vector<16x32xf32>
    %40 = vector.shape_cast %37 : vector<16x32xf32> to vector<1x16x32xf32>
    tpu.vector_store %arg7[%c3_34, %c0_35, %c0_36], %40 {strides = array<i32>} : memref<4x16x32xf32, #tpu.memory_space<vmem>>, vector<1x16x32xf32>,
    %cst_37 = arith.constant 0.000000e+00 : f32
    %41 = vector.broadcast %cst_37 : f32 to vector<2x32xf32>
    %c0_38 = arith.constant 0 : index
    %c0_39 = arith.constant 0 : index
    %42 = vector.load %arg9[%c0_38, %c0_39] : memref<2x32xf32, #tpu.memory_space<vmem>>, vector<2x32xf32>
    tpu.vector_store %arg9[%c0_38, %c0_39], %41 {strides = array<i32>} : memref<2x32xf32, #tpu.memory_space<vmem>>, vector<2x32xf32>,
    %cst_40 = arith.constant 0.000000e+00 : f32
    %43 = vector.broadcast %cst_40 : f32 to vector<2x32xf32>
    %c0_41 = arith.constant 0 : index
    %c0_42 = arith.constant 0 : index
    %44 = vector.load %arg10[%c0_41, %c0_42] : memref<2x32xf32, #tpu.memory_space<vmem>>, vector<2x32xf32>
    tpu.vector_store %arg10[%c0_41, %c0_42], %43 {strides = array<i32>} : memref<2x32xf32, #tpu.memory_space<vmem>>, vector<2x32xf32>,
    %c0_i32 = arith.constant 0 : i32
    %c0_43 = arith.constant 0 : index
    %c0_44 = arith.constant 0 : index
    %45 = vector.load %arg9[%c0_43, %c0_44] : memref<2x32xf32, #tpu.memory_space<vmem>>, vector<2x32xf32>
    %c0_45 = arith.constant 0 : index
    %c0_46 = arith.constant 0 : index
    %46 = vector.load %arg10[%c0_45, %c0_46] : memref<2x32xf32, #tpu.memory_space<vmem>>, vector<2x32xf32>
    %47 = arith.truncf %45 : vector<2x32xf32> to vector<2x32xbf16>
    %c2_i32 = arith.constant 2 : i32
    %48 = arith.muli %c0_i32, %c2_i32 : i32
    %c0_47 = arith.constant 0 : index
    %49 = arith.index_cast %48 : i32 to index
    %c0_48 = arith.constant 0 : index
    %50 = vector.load %arg7[%c0_47, %49, %c0_48] : memref<4x16x32xf32, #tpu.memory_space<vmem>>, vector<1x2x32xf32>
    %51 = vector.shape_cast %50 : vector<1x2x32xf32> to vector<2x32xf32>
    %c0_49 = arith.constant 0 : index
    %c0_50 = arith.constant 0 : index
    %c0_51 = arith.constant 0 : index
    %52 = vector.load %arg2[%c0_49, %c0_50, %c0_51] : memref<4x32x32xbf16, #tpu.memory_space<vmem>>, vector<1x32x32xbf16>
    %53 = vector.shape_cast %52 : vector<1x32x32xbf16> to vector<32x32xbf16>
    %cst_52 = arith.constant dense<0.000000e+00> : vector<2x32xf32>
    %54 = tpu.matmul %47, %53, %cst_52 {dimension_numbers = #tpu.dot_dimension_numbers<[1], [0], [0], [1], [0, 0, 1, 1], [], []>} : vector<2x32xbf16>, vector<32x32xbf16>, vector<2x32xf32> -> vector<2x32xf32>
    %55 = arith.addf %51, %54 : vector<2x32xf32>
    %56 = arith.negf %55 : vector<2x32xf32>
    %57 = math.exp %56 : vector<2x32xf32>
    %cst_53 = arith.constant 1.000000e+00 : f32
    %58 = vector.broadcast %cst_53 : f32 to vector<2x32xf32>
    %59 = arith.addf %58, %57 : vector<2x32xf32>
    %60 = arith.divf %58, %59 : vector<2x32xf32>
    %c1_54 = arith.constant 1 : index
    %61 = arith.index_cast %48 : i32 to index
    %c0_55 = arith.constant 0 : index
    %62 = vector.load %arg7[%c1_54, %61, %c0_55] : memref<4x16x32xf32, #tpu.memory_space<vmem>>, vector<1x2x32xf32>
    %63 = vector.shape_cast %62 : vector<1x2x32xf32> to vector<2x32xf32>
    %c1_56 = arith.constant 1 : index
    %c0_57 = arith.constant 0 : index
    %c0_58 = arith.constant 0 : index
    %64 = vector.load %arg2[%c1_56, %c0_57, %c0_58] : memref<4x32x32xbf16, #tpu.memory_space<vmem>>, vector<1x32x32xbf16>
    %65 = vector.shape_cast %64 : vector<1x32x32xbf16> to vector<32x32xbf16>
    %cst_59 = arith.constant dense<0.000000e+00> : vector<2x32xf32>
    %66 = tpu.matmul %47, %65, %cst_59 {dimension_numbers = #tpu.dot_dimension_numbers<[1], [0], [0], [1], [0, 0, 1, 1], [], []>} : vector<2x32xbf16>, vector<32x32xbf16>, vector<2x32xf32> -> vector<2x32xf32>
    %67 = arith.addf %63, %66 : vector<2x32xf32>
    %68 = arith.negf %67 : vector<2x32xf32>
    %69 = math.exp %68 : vector<2x32xf32>
    %cst_60 = arith.constant 1.000000e+00 : f32
    %70 = vector.broadcast %cst_60 : f32 to vector<2x32xf32>
    %71 = arith.addf %70, %69 : vector<2x32xf32>
    %72 = arith.divf %70, %71 : vector<2x32xf32>
    %c2_61 = arith.constant 2 : index
    %73 = arith.index_cast %48 : i32 to index
    %c0_62 = arith.constant 0 : index
    %74 = vector.load %arg7[%c2_61, %73, %c0_62] : memref<4x16x32xf32, #tpu.memory_space<vmem>>, vector<1x2x32xf32>
    %75 = vector.shape_cast %74 : vector<1x2x32xf32> to vector<2x32xf32>
    %c2_63 = arith.constant 2 : index
    %c0_64 = arith.constant 0 : index
    %c0_65 = arith.constant 0 : index
    %76 = vector.load %arg2[%c2_63, %c0_64, %c0_65] : memref<4x32x32xbf16, #tpu.memory_space<vmem>>, vector<1x32x32xbf16>
    %77 = vector.shape_cast %76 : vector<1x32x32xbf16> to vector<32x32xbf16>
    %cst_66 = arith.constant dense<0.000000e+00> : vector<2x32xf32>
    %78 = tpu.matmul %47, %77, %cst_66 {dimension_numbers = #tpu.dot_dimension_numbers<[1], [0], [0], [1], [0, 0, 1, 1], [], []>} : vector<2x32xbf16>, vector<32x32xbf16>, vector<2x32xf32> -> vector<2x32xf32>
    %79 = arith.addf %75, %78 : vector<2x32xf32>
    %80 = math.tanh %79 : vector<2x32xf32>
    %c3_67 = arith.constant 3 : index
    %81 = arith.index_cast %48 : i32 to index
    %c0_68 = arith.constant 0 : index
    %82 = vector.load %arg7[%c3_67, %81, %c0_68] : memref<4x16x32xf32, #tpu.memory_space<vmem>>, vector<1x2x32xf32>
    %83 = vector.shape_cast %82 : vector<1x2x32xf32> to vector<2x32xf32>
    %c3_69 = arith.constant 3 : index
    %c0_70 = arith.constant 0 : index
    %c0_71 = arith.constant 0 : index
    %84 = vector.load %arg2[%c3_69, %c0_70, %c0_71] : memref<4x32x32xbf16, #tpu.memory_space<vmem>>, vector<1x32x32xbf16>
    %85 = vector.shape_cast %84 : vector<1x32x32xbf16> to vector<32x32xbf16>
    %cst_72 = arith.constant dense<0.000000e+00> : vector<2x32xf32>
    %86 = tpu.matmul %47, %85, %cst_72 {dimension_numbers = #tpu.dot_dimension_numbers<[1], [0], [0], [1], [0, 0, 1, 1], [], []>} : vector<2x32xbf16>, vector<32x32xbf16>, vector<2x32xf32> -> vector<2x32xf32>
    %87 = arith.addf %83, %86 : vector<2x32xf32>
    %88 = arith.negf %87 : vector<2x32xf32>
    %89 = math.exp %88 : vector<2x32xf32>
    %cst_73 = arith.constant 1.000000e+00 : f32
    %90 = vector.broadcast %cst_73 : f32 to vector<2x32xf32>
    %91 = arith.addf %90, %89 : vector<2x32xf32>
    %92 = arith.divf %90, %91 : vector<2x32xf32>
    %93 = arith.mulf %72, %46 : vector<2x32xf32>
    %94 = arith.mulf %60, %80 : vector<2x32xf32>
    %95 = arith.addf %93, %94 : vector<2x32xf32>
    %96 = math.tanh %95 : vector<2x32xf32>
    %97 = arith.mulf %92, %96 : vector<2x32xf32>
    %c0_74 = arith.constant 0 : index
    %c0_75 = arith.constant 0 : index
    %98 = vector.load %arg9[%c0_74, %c0_75] : memref<2x32xf32, #tpu.memory_space<vmem>>, vector<2x32xf32>
    tpu.vector_store %arg9[%c0_74, %c0_75], %97 {strides = array<i32>} : memref<2x32xf32, #tpu.memory_space<vmem>>, vector<2x32xf32>,
    %c0_76 = arith.constant 0 : index
    %c0_77 = arith.constant 0 : index
    %99 = vector.load %arg10[%c0_76, %c0_77] : memref<2x32xf32, #tpu.memory_space<vmem>>, vector<2x32xf32>
    tpu.vector_store %arg10[%c0_76, %c0_77], %95 {strides = array<i32>} : memref<2x32xf32, #tpu.memory_space<vmem>>, vector<2x32xf32>,
    %100 = arith.index_cast %c0_i32 : i32 to index
    %c0_78 = arith.constant 0 : index
    %c0_79 = arith.constant 0 : index
    %101 = vector.load %arg8[%100, %c0_78, %c0_79] : memref<8x2x32xf32, #tpu.memory_space<vmem>>, vector<1x2x32xf32>
    %102 = vector.shape_cast %101 : vector<1x2x32xf32> to vector<2x32xf32>
    %103 = vector.shape_cast %97 : vector<2x32xf32> to vector<1x2x32xf32>
    tpu.vector_store %arg8[%100, %c0_78, %c0_79], %103 {strides = array<i32>} : memref<8x2x32xf32, #tpu.memory_space<vmem>>, vector<1x2x32xf32>,
    %c1_i32 = arith.constant 1 : i32
    %c0_80 = arith.constant 0 : index
    %c0_81 = arith.constant 0 : index
    %104 = vector.load %arg9[%c0_80, %c0_81] : memref<2x32xf32, #tpu.memory_space<vmem>>, vector<2x32xf32>
    %c0_82 = arith.constant 0 : index
    %c0_83 = arith.constant 0 : index
    %105 = vector.load %arg10[%c0_82, %c0_83] : memref<2x32xf32, #tpu.memory_space<vmem>>, vector<2x32xf32>
    %106 = arith.truncf %104 : vector<2x32xf32> to vector<2x32xbf16>
    %c2_i32_84 = arith.constant 2 : i32
    %107 = arith.muli %c1_i32, %c2_i32_84 : i32
    %c0_85 = arith.constant 0 : index
    %108 = arith.index_cast %107 : i32 to index
    %c0_86 = arith.constant 0 : index
    %109 = vector.load %arg7[%c0_85, %108, %c0_86] : memref<4x16x32xf32, #tpu.memory_space<vmem>>, vector<1x2x32xf32>
    %110 = vector.shape_cast %109 : vector<1x2x32xf32> to vector<2x32xf32>
    %c0_87 = arith.constant 0 : index
    %c0_88 = arith.constant 0 : index
    %c0_89 = arith.constant 0 : index
    %111 = vector.load %arg2[%c0_87, %c0_88, %c0_89] : memref<4x32x32xbf16, #tpu.memory_space<vmem>>, vector<1x32x32xbf16>
    %112 = vector.shape_cast %111 : vector<1x32x32xbf16> to vector<32x32xbf16>
    %cst_90 = arith.constant dense<0.000000e+00> : vector<2x32xf32>
    %113 = tpu.matmul %106, %112, %cst_90 {dimension_numbers = #tpu.dot_dimension_numbers<[1], [0], [0], [1], [0, 0, 1, 1], [], []>} : vector<2x32xbf16>, vector<32x32xbf16>, vector<2x32xf32> -> vector<2x32xf32>
    %114 = arith.addf %110, %113 : vector<2x32xf32>
    %115 = arith.negf %114 : vector<2x32xf32>
    %116 = math.exp %115 : vector<2x32xf32>
    %cst_91 = arith.constant 1.000000e+00 : f32
    %117 = vector.broadcast %cst_91 : f32 to vector<2x32xf32>
    %118 = arith.addf %117, %116 : vector<2x32xf32>
    %119 = arith.divf %117, %118 : vector<2x32xf32>
    %c1_92 = arith.constant 1 : index
    %120 = arith.index_cast %107 : i32 to index
    %c0_93 = arith.constant 0 : index
    %121 = vector.load %arg7[%c1_92, %120, %c0_93] : memref<4x16x32xf32, #tpu.memory_space<vmem>>, vector<1x2x32xf32>
    %122 = vector.shape_cast %121 : vector<1x2x32xf32> to vector<2x32xf32>
    %c1_94 = arith.constant 1 : index
    %c0_95 = arith.constant 0 : index
    %c0_96 = arith.constant 0 : index
    %123 = vector.load %arg2[%c1_94, %c0_95, %c0_96] : memref<4x32x32xbf16, #tpu.memory_space<vmem>>, vector<1x32x32xbf16>
    %124 = vector.shape_cast %123 : vector<1x32x32xbf16> to vector<32x32xbf16>
    %cst_97 = arith.constant dense<0.000000e+00> : vector<2x32xf32>
    %125 = tpu.matmul %106, %124, %cst_97 {dimension_numbers = #tpu.dot_dimension_numbers<[1], [0], [0], [1], [0, 0, 1, 1], [], []>} : vector<2x32xbf16>, vector<32x32xbf16>, vector<2x32xf32> -> vector<2x32xf32>
    %126 = arith.addf %122, %125 : vector<2x32xf32>
    %127 = arith.negf %126 : vector<2x32xf32>
    %128 = math.exp %127 : vector<2x32xf32>
    %cst_98 = arith.constant 1.000000e+00 : f32
    %129 = vector.broadcast %cst_98 : f32 to vector<2x32xf32>
    %130 = arith.addf %129, %128 : vector<2x32xf32>
    %131 = arith.divf %129, %130 : vector<2x32xf32>
    %c2_99 = arith.constant 2 : index
    %132 = arith.index_cast %107 : i32 to index
    %c0_100 = arith.constant 0 : index
    %133 = vector.load %arg7[%c2_99, %132, %c0_100] : memref<4x16x32xf32, #tpu.memory_space<vmem>>, vector<1x2x32xf32>
    %134 = vector.shape_cast %133 : vector<1x2x32xf32> to vector<2x32xf32>
    %c2_101 = arith.constant 2 : index
    %c0_102 = arith.constant 0 : index
    %c0_103 = arith.constant 0 : index
    %135 = vector.load %arg2[%c2_101, %c0_102, %c0_103] : memref<4x32x32xbf16, #tpu.memory_space<vmem>>, vector<1x32x32xbf16>
    %136 = vector.shape_cast %135 : vector<1x32x32xbf16> to vector<32x32xbf16>
    %cst_104 = arith.constant dense<0.000000e+00> : vector<2x32xf32>
    %137 = tpu.matmul %106, %136, %cst_104 {dimension_numbers = #tpu.dot_dimension_numbers<[1], [0], [0], [1], [0, 0, 1, 1], [], []>} : vector<2x32xbf16>, vector<32x32xbf16>, vector<2x32xf32> -> vector<2x32xf32>
    %138 = arith.addf %134, %137 : vector<2x32xf32>
    %139 = math.tanh %138 : vector<2x32xf32>
    %c3_105 = arith.constant 3 : index
    %140 = arith.index_cast %107 : i32 to index
    %c0_106 = arith.constant 0 : index
    %141 = vector.load %arg7[%c3_105, %140, %c0_106] : memref<4x16x32xf32, #tpu.memory_space<vmem>>, vector<1x2x32xf32>
    %142 = vector.shape_cast %141 : vector<1x2x32xf32> to vector<2x32xf32>
    %c3_107 = arith.constant 3 : index
    %c0_108 = arith.constant 0 : index
    %c0_109 = arith.constant 0 : index
    %143 = vector.load %arg2[%c3_107, %c0_108, %c0_109] : memref<4x32x32xbf16, #tpu.memory_space<vmem>>, vector<1x32x32xbf16>
    %144 = vector.shape_cast %143 : vector<1x32x32xbf16> to vector<32x32xbf16>
    %cst_110 = arith.constant dense<0.000000e+00> : vector<2x32xf32>
    %145 = tpu.matmul %106, %144, %cst_110 {dimension_numbers = #tpu.dot_dimension_numbers<[1], [0], [0], [1], [0, 0, 1, 1], [], []>} : vector<2x32xbf16>, vector<32x32xbf16>, vector<2x32xf32> -> vector<2x32xf32>
    %146 = arith.addf %142, %145 : vector<2x32xf32>
    %147 = arith.negf %146 : vector<2x32xf32>
    %148 = math.exp %147 : vector<2x32xf32>
    %cst_111 = arith.constant 1.000000e+00 : f32
    %149 = vector.broadcast %cst_111 : f32 to vector<2x32xf32>
    %150 = arith.addf %149, %148 : vector<2x32xf32>
    %151 = arith.divf %149, %150 : vector<2x32xf32>
    %152 = arith.mulf %131, %105 : vector<2x32xf32>
    %153 = arith.mulf %119, %139 : vector<2x32xf32>
    %154 = arith.addf %152, %153 : vector<2x32xf32>
    %155 = math.tanh %154 : vector<2x32xf32>
    %156 = arith.mulf %151, %155 : vector<2x32xf32>
    %c0_112 = arith.constant 0 : index
    %c0_113 = arith.constant 0 : index
    %157 = vector.load %arg9[%c0_112, %c0_113] : memref<2x32xf32, #tpu.memory_space<vmem>>, vector<2x32xf32>
    tpu.vector_store %arg9[%c0_112, %c0_113], %156 {strides = array<i32>} : memref<2x32xf32, #tpu.memory_space<vmem>>, vector<2x32xf32>,
    %c0_114 = arith.constant 0 : index
    %c0_115 = arith.constant 0 : index
    %158 = vector.load %arg10[%c0_114, %c0_115] : memref<2x32xf32, #tpu.memory_space<vmem>>, vector<2x32xf32>
    tpu.vector_store %arg10[%c0_114, %c0_115], %154 {strides = array<i32>} : memref<2x32xf32, #tpu.memory_space<vmem>>, vector<2x32xf32>,
    %159 = arith.index_cast %c1_i32 : i32 to index
    %c0_116 = arith.constant 0 : index
    %c0_117 = arith.constant 0 : index
    %160 = vector.load %arg8[%159, %c0_116, %c0_117] : memref<8x2x32xf32, #tpu.memory_space<vmem>>, vector<1x2x32xf32>
    %161 = vector.shape_cast %160 : vector<1x2x32xf32> to vector<2x32xf32>
    %162 = vector.shape_cast %156 : vector<2x32xf32> to vector<1x2x32xf32>
    tpu.vector_store %arg8[%159, %c0_116, %c0_117], %162 {strides = array<i32>} : memref<8x2x32xf32, #tpu.memory_space<vmem>>, vector<1x2x32xf32>,
    %c2_i32_118 = arith.constant 2 : i32
    %c0_119 = arith.constant 0 : index
    %c0_120 = arith.constant 0 : index
    %163 = vector.load %arg9[%c0_119, %c0_120] : memref<2x32xf32, #tpu.memory_space<vmem>>, vector<2x32xf32>
    %c0_121 = arith.constant 0 : index
    %c0_122 = arith.constant 0 : index
    %164 = vector.load %arg10[%c0_121, %c0_122] : memref<2x32xf32, #tpu.memory_space<vmem>>, vector<2x32xf32>
    %165 = arith.truncf %163 : vector<2x32xf32> to vector<2x32xbf16>
    %c2_i32_123 = arith.constant 2 : i32
    %166 = arith.muli %c2_i32_118, %c2_i32_123 : i32
    %c0_124 = arith.constant 0 : index
    %167 = arith.index_cast %166 : i32 to index
    %c0_125 = arith.constant 0 : index
    %168 = vector.load %arg7[%c0_124, %167, %c0_125] : memref<4x16x32xf32, #tpu.memory_space<vmem>>, vector<1x2x32xf32>
    %169 = vector.shape_cast %168 : vector<1x2x32xf32> to vector<2x32xf32>
    %c0_126 = arith.constant 0 : index
    %c0_127 = arith.constant 0 : index
    %c0_128 = arith.constant 0 : index
    %170 = vector.load %arg2[%c0_126, %c0_127, %c0_128] : memref<4x32x32xbf16, #tpu.memory_space<vmem>>, vector<1x32x32xbf16>
    %171 = vector.shape_cast %170 : vector<1x32x32xbf16> to vector<32x32xbf16>
    %cst_129 = arith.constant dense<0.000000e+00> : vector<2x32xf32>
    %172 = tpu.matmul %165, %171, %cst_129 {dimension_numbers = #tpu.dot_dimension_numbers<[1], [0], [0], [1], [0, 0, 1, 1], [], []>} : vector<2x32xbf16>, vector<32x32xbf16>, vector<2x32xf32> -> vector<2x32xf32>
    %173 = arith.addf %169, %172 : vector<2x32xf32>
    %174 = arith.negf %173 : vector<2x32xf32>
    %175 = math.exp %174 : vector<2x32xf32>
    %cst_130 = arith.constant 1.000000e+00 : f32
    %176 = vector.broadcast %cst_130 : f32 to vector<2x32xf32>
    %177 = arith.addf %176, %175 : vector<2x32xf32>
    %178 = arith.divf %176, %177 : vector<2x32xf32>
    %c1_131 = arith.constant 1 : index
    %179 = arith.index_cast %166 : i32 to index
    %c0_132 = arith.constant 0 : index
    %180 = vector.load %arg7[%c1_131, %179, %c0_132] : memref<4x16x32xf32, #tpu.memory_space<vmem>>, vector<1x2x32xf32>
    %181 = vector.shape_cast %180 : vector<1x2x32xf32> to vector<2x32xf32>
    %c1_133 = arith.constant 1 : index
    %c0_134 = arith.constant 0 : index
    %c0_135 = arith.constant 0 : index
    %182 = vector.load %arg2[%c1_133, %c0_134, %c0_135] : memref<4x32x32xbf16, #tpu.memory_space<vmem>>, vector<1x32x32xbf16>
    %183 = vector.shape_cast %182 : vector<1x32x32xbf16> to vector<32x32xbf16>
    %cst_136 = arith.constant dense<0.000000e+00> : vector<2x32xf32>
    %184 = tpu.matmul %165, %183, %cst_136 {dimension_numbers = #tpu.dot_dimension_numbers<[1], [0], [0], [1], [0, 0, 1, 1], [], []>} : vector<2x32xbf16>, vector<32x32xbf16>, vector<2x32xf32> -> vector<2x32xf32>
    %185 = arith.addf %181, %184 : vector<2x32xf32>
    %186 = arith.negf %185 : vector<2x32xf32>
    %187 = math.exp %186 : vector<2x32xf32>
    %cst_137 = arith.constant 1.000000e+00 : f32
    %188 = vector.broadcast %cst_137 : f32 to vector<2x32xf32>
    %189 = arith.addf %188, %187 : vector<2x32xf32>
    %190 = arith.divf %188, %189 : vector<2x32xf32>
    %c2_138 = arith.constant 2 : index
    %191 = arith.index_cast %166 : i32 to index
    %c0_139 = arith.constant 0 : index
    %192 = vector.load %arg7[%c2_138, %191, %c0_139] : memref<4x16x32xf32, #tpu.memory_space<vmem>>, vector<1x2x32xf32>
    %193 = vector.shape_cast %192 : vector<1x2x32xf32> to vector<2x32xf32>
    %c2_140 = arith.constant 2 : index
    %c0_141 = arith.constant 0 : index
    %c0_142 = arith.constant 0 : index
    %194 = vector.load %arg2[%c2_140, %c0_141, %c0_142] : memref<4x32x32xbf16, #tpu.memory_space<vmem>>, vector<1x32x32xbf16>
    %195 = vector.shape_cast %194 : vector<1x32x32xbf16> to vector<32x32xbf16>
    %cst_143 = arith.constant dense<0.000000e+00> : vector<2x32xf32>
    %196 = tpu.matmul %165, %195, %cst_143 {dimension_numbers = #tpu.dot_dimension_numbers<[1], [0], [0], [1], [0, 0, 1, 1], [], []>} : vector<2x32xbf16>, vector<32x32xbf16>, vector<2x32xf32> -> vector<2x32xf32>
    %197 = arith.addf %193, %196 : vector<2x32xf32>
    %198 = math.tanh %197 : vector<2x32xf32>
    %c3_144 = arith.constant 3 : index
    %199 = arith.index_cast %166 : i32 to index
    %c0_145 = arith.constant 0 : index
    %200 = vector.load %arg7[%c3_144, %199, %c0_145] : memref<4x16x32xf32, #tpu.memory_space<vmem>>, vector<1x2x32xf32>
    %201 = vector.shape_cast %200 : vector<1x2x32xf32> to vector<2x32xf32>
    %c3_146 = arith.constant 3 : index
    %c0_147 = arith.constant 0 : index
    %c0_148 = arith.constant 0 : index
    %202 = vector.load %arg2[%c3_146, %c0_147, %c0_148] : memref<4x32x32xbf16, #tpu.memory_space<vmem>>, vector<1x32x32xbf16>
    %203 = vector.shape_cast %202 : vector<1x32x32xbf16> to vector<32x32xbf16>
    %cst_149 = arith.constant dense<0.000000e+00> : vector<2x32xf32>
    %204 = tpu.matmul %165, %203, %cst_149 {dimension_numbers = #tpu.dot_dimension_numbers<[1], [0], [0], [1], [0, 0, 1, 1], [], []>} : vector<2x32xbf16>, vector<32x32xbf16>, vector<2x32xf32> -> vector<2x32xf32>
    %205 = arith.addf %201, %204 : vector<2x32xf32>
    %206 = arith.negf %205 : vector<2x32xf32>
    %207 = math.exp %206 : vector<2x32xf32>
    %cst_150 = arith.constant 1.000000e+00 : f32
    %208 = vector.broadcast %cst_150 : f32 to vector<2x32xf32>
    %209 = arith.addf %208, %207 : vector<2x32xf32>
    %210 = arith.divf %208, %209 : vector<2x32xf32>
    %211 = arith.mulf %190, %164 : vector<2x32xf32>
    %212 = arith.mulf %178, %198 : vector<2x32xf32>
    %213 = arith.addf %211, %212 : vector<2x32xf32>
    %214 = math.tanh %213 : vector<2x32xf32>
    %215 = arith.mulf %210, %214 : vector<2x32xf32>
    %c0_151 = arith.constant 0 : index
    %c0_152 = arith.constant 0 : index
    %216 = vector.load %arg9[%c0_151, %c0_152] : memref<2x32xf32, #tpu.memory_space<vmem>>, vector<2x32xf32>
    tpu.vector_store %arg9[%c0_151, %c0_152], %215 {strides = array<i32>} : memref<2x32xf32, #tpu.memory_space<vmem>>, vector<2x32xf32>,
    %c0_153 = arith.constant 0 : index
    %c0_154 = arith.constant 0 : index
    %217 = vector.load %arg10[%c0_153, %c0_154] : memref<2x32xf32, #tpu.memory_space<vmem>>, vector<2x32xf32>
    tpu.vector_store %arg10[%c0_153, %c0_154], %213 {strides = array<i32>} : memref<2x32xf32, #tpu.memory_space<vmem>>, vector<2x32xf32>,
    %218 = arith.index_cast %c2_i32_118 : i32 to index
    %c0_155 = arith.constant 0 : index
    %c0_156 = arith.constant 0 : index
    %219 = vector.load %arg8[%218, %c0_155, %c0_156] : memref<8x2x32xf32, #tpu.memory_space<vmem>>, vector<1x2x32xf32>
    %220 = vector.shape_cast %219 : vector<1x2x32xf32> to vector<2x32xf32>
    %221 = vector.shape_cast %215 : vector<2x32xf32> to vector<1x2x32xf32>
    tpu.vector_store %arg8[%218, %c0_155, %c0_156], %221 {strides = array<i32>} : memref<8x2x32xf32, #tpu.memory_space<vmem>>, vector<1x2x32xf32>,
    %c3_i32 = arith.constant 3 : i32
    %c0_157 = arith.constant 0 : index
    %c0_158 = arith.constant 0 : index
    %222 = vector.load %arg9[%c0_157, %c0_158] : memref<2x32xf32, #tpu.memory_space<vmem>>, vector<2x32xf32>
    %c0_159 = arith.constant 0 : index
    %c0_160 = arith.constant 0 : index
    %223 = vector.load %arg10[%c0_159, %c0_160] : memref<2x32xf32, #tpu.memory_space<vmem>>, vector<2x32xf32>
    %224 = arith.truncf %222 : vector<2x32xf32> to vector<2x32xbf16>
    %c2_i32_161 = arith.constant 2 : i32
    %225 = arith.muli %c3_i32, %c2_i32_161 : i32
    %c0_162 = arith.constant 0 : index
    %226 = arith.index_cast %225 : i32 to index
    %c0_163 = arith.constant 0 : index
    %227 = vector.load %arg7[%c0_162, %226, %c0_163] : memref<4x16x32xf32, #tpu.memory_space<vmem>>, vector<1x2x32xf32>
    %228 = vector.shape_cast %227 : vector<1x2x32xf32> to vector<2x32xf32>
    %c0_164 = arith.constant 0 : index
    %c0_165 = arith.constant 0 : index
    %c0_166 = arith.constant 0 : index
    %229 = vector.load %arg2[%c0_164, %c0_165, %c0_166] : memref<4x32x32xbf16, #tpu.memory_space<vmem>>, vector<1x32x32xbf16>
    %230 = vector.shape_cast %229 : vector<1x32x32xbf16> to vector<32x32xbf16>
    %cst_167 = arith.constant dense<0.000000e+00> : vector<2x32xf32>
    %231 = tpu.matmul %224, %230, %cst_167 {dimension_numbers = #tpu.dot_dimension_numbers<[1], [0], [0], [1], [0, 0, 1, 1], [], []>} : vector<2x32xbf16>, vector<32x32xbf16>, vector<2x32xf32> -> vector<2x32xf32>
    %232 = arith.addf %228, %231 : vector<2x32xf32>
    %233 = arith.negf %232 : vector<2x32xf32>
    %234 = math.exp %233 : vector<2x32xf32>
    %cst_168 = arith.constant 1.000000e+00 : f32
    %235 = vector.broadcast %cst_168 : f32 to vector<2x32xf32>
    %236 = arith.addf %235, %234 : vector<2x32xf32>
    %237 = arith.divf %235, %236 : vector<2x32xf32>
    %c1_169 = arith.constant 1 : index
    %238 = arith.index_cast %225 : i32 to index
    %c0_170 = arith.constant 0 : index
    %239 = vector.load %arg7[%c1_169, %238, %c0_170] : memref<4x16x32xf32, #tpu.memory_space<vmem>>, vector<1x2x32xf32>
    %240 = vector.shape_cast %239 : vector<1x2x32xf32> to vector<2x32xf32>
    %c1_171 = arith.constant 1 : index
    %c0_172 = arith.constant 0 : index
    %c0_173 = arith.constant 0 : index
    %241 = vector.load %arg2[%c1_171, %c0_172, %c0_173] : memref<4x32x32xbf16, #tpu.memory_space<vmem>>, vector<1x32x32xbf16>
    %242 = vector.shape_cast %241 : vector<1x32x32xbf16> to vector<32x32xbf16>
    %cst_174 = arith.constant dense<0.000000e+00> : vector<2x32xf32>
    %243 = tpu.matmul %224, %242, %cst_174 {dimension_numbers = #tpu.dot_dimension_numbers<[1], [0], [0], [1], [0, 0, 1, 1], [], []>} : vector<2x32xbf16>, vector<32x32xbf16>, vector<2x32xf32> -> vector<2x32xf32>
    %244 = arith.addf %240, %243 : vector<2x32xf32>
    %245 = arith.negf %244 : vector<2x32xf32>
    %246 = math.exp %245 : vector<2x32xf32>
    %cst_175 = arith.constant 1.000000e+00 : f32
    %247 = vector.broadcast %cst_175 : f32 to vector<2x32xf32>
    %248 = arith.addf %247, %246 : vector<2x32xf32>
    %249 = arith.divf %247, %248 : vector<2x32xf32>
    %c2_176 = arith.constant 2 : index
    %250 = arith.index_cast %225 : i32 to index
    %c0_177 = arith.constant 0 : index
    %251 = vector.load %arg7[%c2_176, %250, %c0_177] : memref<4x16x32xf32, #tpu.memory_space<vmem>>, vector<1x2x32xf32>
    %252 = vector.shape_cast %251 : vector<1x2x32xf32> to vector<2x32xf32>
    %c2_178 = arith.constant 2 : index
    %c0_179 = arith.constant 0 : index
    %c0_180 = arith.constant 0 : index
    %253 = vector.load %arg2[%c2_178, %c0_179, %c0_180] : memref<4x32x32xbf16, #tpu.memory_space<vmem>>, vector<1x32x32xbf16>
    %254 = vector.shape_cast %253 : vector<1x32x32xbf16> to vector<32x32xbf16>
    %cst_181 = arith.constant dense<0.000000e+00> : vector<2x32xf32>
    %255 = tpu.matmul %224, %254, %cst_181 {dimension_numbers = #tpu.dot_dimension_numbers<[1], [0], [0], [1], [0, 0, 1, 1], [], []>} : vector<2x32xbf16>, vector<32x32xbf16>, vector<2x32xf32> -> vector<2x32xf32>
    %256 = arith.addf %252, %255 : vector<2x32xf32>
    %257 = math.tanh %256 : vector<2x32xf32>
    %c3_182 = arith.constant 3 : index
    %258 = arith.index_cast %225 : i32 to index
    %c0_183 = arith.constant 0 : index
    %259 = vector.load %arg7[%c3_182, %258, %c0_183] : memref<4x16x32xf32, #tpu.memory_space<vmem>>, vector<1x2x32xf32>
    %260 = vector.shape_cast %259 : vector<1x2x32xf32> to vector<2x32xf32>
    %c3_184 = arith.constant 3 : index
    %c0_185 = arith.constant 0 : index
    %c0_186 = arith.constant 0 : index
    %261 = vector.load %arg2[%c3_184, %c0_185, %c0_186] : memref<4x32x32xbf16, #tpu.memory_space<vmem>>, vector<1x32x32xbf16>
    %262 = vector.shape_cast %261 : vector<1x32x32xbf16> to vector<32x32xbf16>
    %cst_187 = arith.constant dense<0.000000e+00> : vector<2x32xf32>
    %263 = tpu.matmul %224, %262, %cst_187 {dimension_numbers = #tpu.dot_dimension_numbers<[1], [0], [0], [1], [0, 0, 1, 1], [], []>} : vector<2x32xbf16>, vector<32x32xbf16>, vector<2x32xf32> -> vector<2x32xf32>
    %264 = arith.addf %260, %263 : vector<2x32xf32>
    %265 = arith.negf %264 : vector<2x32xf32>
    %266 = math.exp %265 : vector<2x32xf32>
    %cst_188 = arith.constant 1.000000e+00 : f32
    %267 = vector.broadcast %cst_188 : f32 to vector<2x32xf32>
    %268 = arith.addf %267, %266 : vector<2x32xf32>
    %269 = arith.divf %267, %268 : vector<2x32xf32>
    %270 = arith.mulf %249, %223 : vector<2x32xf32>
    %271 = arith.mulf %237, %257 : vector<2x32xf32>
    %272 = arith.addf %270, %271 : vector<2x32xf32>
    %273 = math.tanh %272 : vector<2x32xf32>
    %274 = arith.mulf %269, %273 : vector<2x32xf32>
    %c0_189 = arith.constant 0 : index
    %c0_190 = arith.constant 0 : index
    %275 = vector.load %arg9[%c0_189, %c0_190] : memref<2x32xf32, #tpu.memory_space<vmem>>, vector<2x32xf32>
    tpu.vector_store %arg9[%c0_189, %c0_190], %274 {strides = array<i32>} : memref<2x32xf32, #tpu.memory_space<vmem>>, vector<2x32xf32>,
    %c0_191 = arith.constant 0 : index
    %c0_192 = arith.constant 0 : index
    %276 = vector.load %arg10[%c0_191, %c0_192] : memref<2x32xf32, #tpu.memory_space<vmem>>, vector<2x32xf32>
    tpu.vector_store %arg10[%c0_191, %c0_192], %272 {strides = array<i32>} : memref<2x32xf32, #tpu.memory_space<vmem>>, vector<2x32xf32>,
    %277 = arith.index_cast %c3_i32 : i32 to index
    %c0_193 = arith.constant 0 : index
    %c0_194 = arith.constant 0 : index
    %278 = vector.load %arg8[%277, %c0_193, %c0_194] : memref<8x2x32xf32, #tpu.memory_space<vmem>>, vector<1x2x32xf32>
    %279 = vector.shape_cast %278 : vector<1x2x32xf32> to vector<2x32xf32>
    %280 = vector.shape_cast %274 : vector<2x32xf32> to vector<1x2x32xf32>
    tpu.vector_store %arg8[%277, %c0_193, %c0_194], %280 {strides = array<i32>} : memref<8x2x32xf32, #tpu.memory_space<vmem>>, vector<1x2x32xf32>,
    %c4_i32 = arith.constant 4 : i32
    %c0_195 = arith.constant 0 : index
    %c0_196 = arith.constant 0 : index
    %281 = vector.load %arg9[%c0_195, %c0_196] : memref<2x32xf32, #tpu.memory_space<vmem>>, vector<2x32xf32>
    %c0_197 = arith.constant 0 : index
    %c0_198 = arith.constant 0 : index
    %282 = vector.load %arg10[%c0_197, %c0_198] : memref<2x32xf32, #tpu.memory_space<vmem>>, vector<2x32xf32>
    %283 = arith.truncf %281 : vector<2x32xf32> to vector<2x32xbf16>
    %c2_i32_199 = arith.constant 2 : i32
    %284 = arith.muli %c4_i32, %c2_i32_199 : i32
    %c0_200 = arith.constant 0 : index
    %285 = arith.index_cast %284 : i32 to index
    %c0_201 = arith.constant 0 : index
    %286 = vector.load %arg7[%c0_200, %285, %c0_201] : memref<4x16x32xf32, #tpu.memory_space<vmem>>, vector<1x2x32xf32>
    %287 = vector.shape_cast %286 : vector<1x2x32xf32> to vector<2x32xf32>
    %c0_202 = arith.constant 0 : index
    %c0_203 = arith.constant 0 : index
    %c0_204 = arith.constant 0 : index
    %288 = vector.load %arg2[%c0_202, %c0_203, %c0_204] : memref<4x32x32xbf16, #tpu.memory_space<vmem>>, vector<1x32x32xbf16>
    %289 = vector.shape_cast %288 : vector<1x32x32xbf16> to vector<32x32xbf16>
    %cst_205 = arith.constant dense<0.000000e+00> : vector<2x32xf32>
    %290 = tpu.matmul %283, %289, %cst_205 {dimension_numbers = #tpu.dot_dimension_numbers<[1], [0], [0], [1], [0, 0, 1, 1], [], []>} : vector<2x32xbf16>, vector<32x32xbf16>, vector<2x32xf32> -> vector<2x32xf32>
    %291 = arith.addf %287, %290 : vector<2x32xf32>
    %292 = arith.negf %291 : vector<2x32xf32>
    %293 = math.exp %292 : vector<2x32xf32>
    %cst_206 = arith.constant 1.000000e+00 : f32
    %294 = vector.broadcast %cst_206 : f32 to vector<2x32xf32>
    %295 = arith.addf %294, %293 : vector<2x32xf32>
    %296 = arith.divf %294, %295 : vector<2x32xf32>
    %c1_207 = arith.constant 1 : index
    %297 = arith.index_cast %284 : i32 to index
    %c0_208 = arith.constant 0 : index
    %298 = vector.load %arg7[%c1_207, %297, %c0_208] : memref<4x16x32xf32, #tpu.memory_space<vmem>>, vector<1x2x32xf32>
    %299 = vector.shape_cast %298 : vector<1x2x32xf32> to vector<2x32xf32>
    %c1_209 = arith.constant 1 : index
    %c0_210 = arith.constant 0 : index
    %c0_211 = arith.constant 0 : index
    %300 = vector.load %arg2[%c1_209, %c0_210, %c0_211] : memref<4x32x32xbf16, #tpu.memory_space<vmem>>, vector<1x32x32xbf16>
    %301 = vector.shape_cast %300 : vector<1x32x32xbf16> to vector<32x32xbf16>
    %cst_212 = arith.constant dense<0.000000e+00> : vector<2x32xf32>
    %302 = tpu.matmul %283, %301, %cst_212 {dimension_numbers = #tpu.dot_dimension_numbers<[1], [0], [0], [1], [0, 0, 1, 1], [], []>} : vector<2x32xbf16>, vector<32x32xbf16>, vector<2x32xf32> -> vector<2x32xf32>
    %303 = arith.addf %299, %302 : vector<2x32xf32>
    %304 = arith.negf %303 : vector<2x32xf32>
    %305 = math.exp %304 : vector<2x32xf32>
    %cst_213 = arith.constant 1.000000e+00 : f32
    %306 = vector.broadcast %cst_213 : f32 to vector<2x32xf32>
    %307 = arith.addf %306, %305 : vector<2x32xf32>
    %308 = arith.divf %306, %307 : vector<2x32xf32>
    %c2_214 = arith.constant 2 : index
    %309 = arith.index_cast %284 : i32 to index
    %c0_215 = arith.constant 0 : index
    %310 = vector.load %arg7[%c2_214, %309, %c0_215] : memref<4x16x32xf32, #tpu.memory_space<vmem>>, vector<1x2x32xf32>
    %311 = vector.shape_cast %310 : vector<1x2x32xf32> to vector<2x32xf32>
    %c2_216 = arith.constant 2 : index
    %c0_217 = arith.constant 0 : index
    %c0_218 = arith.constant 0 : index
    %312 = vector.load %arg2[%c2_216, %c0_217, %c0_218] : memref<4x32x32xbf16, #tpu.memory_space<vmem>>, vector<1x32x32xbf16>
    %313 = vector.shape_cast %312 : vector<1x32x32xbf16> to vector<32x32xbf16>
    %cst_219 = arith.constant dense<0.000000e+00> : vector<2x32xf32>
    %314 = tpu.matmul %283, %313, %cst_219 {dimension_numbers = #tpu.dot_dimension_numbers<[1], [0], [0], [1], [0, 0, 1, 1], [], []>} : vector<2x32xbf16>, vector<32x32xbf16>, vector<2x32xf32> -> vector<2x32xf32>
    %315 = arith.addf %311, %314 : vector<2x32xf32>
    %316 = math.tanh %315 : vector<2x32xf32>
    %c3_220 = arith.constant 3 : index
    %317 = arith.index_cast %284 : i32 to index
    %c0_221 = arith.constant 0 : index
    %318 = vector.load %arg7[%c3_220, %317, %c0_221] : memref<4x16x32xf32, #tpu.memory_space<vmem>>, vector<1x2x32xf32>
    %319 = vector.shape_cast %318 : vector<1x2x32xf32> to vector<2x32xf32>
    %c3_222 = arith.constant 3 : index
    %c0_223 = arith.constant 0 : index
    %c0_224 = arith.constant 0 : index
    %320 = vector.load %arg2[%c3_222, %c0_223, %c0_224] : memref<4x32x32xbf16, #tpu.memory_space<vmem>>, vector<1x32x32xbf16>
    %321 = vector.shape_cast %320 : vector<1x32x32xbf16> to vector<32x32xbf16>
    %cst_225 = arith.constant dense<0.000000e+00> : vector<2x32xf32>
    %322 = tpu.matmul %283, %321, %cst_225 {dimension_numbers = #tpu.dot_dimension_numbers<[1], [0], [0], [1], [0, 0, 1, 1], [], []>} : vector<2x32xbf16>, vector<32x32xbf16>, vector<2x32xf32> -> vector<2x32xf32>
    %323 = arith.addf %319, %322 : vector<2x32xf32>
    %324 = arith.negf %323 : vector<2x32xf32>
    %325 = math.exp %324 : vector<2x32xf32>
    %cst_226 = arith.constant 1.000000e+00 : f32
    %326 = vector.broadcast %cst_226 : f32 to vector<2x32xf32>
    %327 = arith.addf %326, %325 : vector<2x32xf32>
    %328 = arith.divf %326, %327 : vector<2x32xf32>
    %329 = arith.mulf %308, %282 : vector<2x32xf32>
    %330 = arith.mulf %296, %316 : vector<2x32xf32>
    %331 = arith.addf %329, %330 : vector<2x32xf32>
    %332 = math.tanh %331 : vector<2x32xf32>
    %333 = arith.mulf %328, %332 : vector<2x32xf32>
    %c0_227 = arith.constant 0 : index
    %c0_228 = arith.constant 0 : index
    %334 = vector.load %arg9[%c0_227, %c0_228] : memref<2x32xf32, #tpu.memory_space<vmem>>, vector<2x32xf32>
    tpu.vector_store %arg9[%c0_227, %c0_228], %333 {strides = array<i32>} : memref<2x32xf32, #tpu.memory_space<vmem>>, vector<2x32xf32>,
    %c0_229 = arith.constant 0 : index
    %c0_230 = arith.constant 0 : index
    %335 = vector.load %arg10[%c0_229, %c0_230] : memref<2x32xf32, #tpu.memory_space<vmem>>, vector<2x32xf32>
    tpu.vector_store %arg10[%c0_229, %c0_230], %331 {strides = array<i32>} : memref<2x32xf32, #tpu.memory_space<vmem>>, vector<2x32xf32>,
    %336 = arith.index_cast %c4_i32 : i32 to index
    %c0_231 = arith.constant 0 : index
    %c0_232 = arith.constant 0 : index
    %337 = vector.load %arg8[%336, %c0_231, %c0_232] : memref<8x2x32xf32, #tpu.memory_space<vmem>>, vector<1x2x32xf32>
    %338 = vector.shape_cast %337 : vector<1x2x32xf32> to vector<2x32xf32>
    %339 = vector.shape_cast %333 : vector<2x32xf32> to vector<1x2x32xf32>
    tpu.vector_store %arg8[%336, %c0_231, %c0_232], %339 {strides = array<i32>} : memref<8x2x32xf32, #tpu.memory_space<vmem>>, vector<1x2x32xf32>,
    %c5_i32 = arith.constant 5 : i32
    %c0_233 = arith.constant 0 : index
    %c0_234 = arith.constant 0 : index
    %340 = vector.load %arg9[%c0_233, %c0_234] : memref<2x32xf32, #tpu.memory_space<vmem>>, vector<2x32xf32>
    %c0_235 = arith.constant 0 : index
    %c0_236 = arith.constant 0 : index
    %341 = vector.load %arg10[%c0_235, %c0_236] : memref<2x32xf32, #tpu.memory_space<vmem>>, vector<2x32xf32>
    %342 = arith.truncf %340 : vector<2x32xf32> to vector<2x32xbf16>
    %c2_i32_237 = arith.constant 2 : i32
    %343 = arith.muli %c5_i32, %c2_i32_237 : i32
    %c0_238 = arith.constant 0 : index
    %344 = arith.index_cast %343 : i32 to index
    %c0_239 = arith.constant 0 : index
    %345 = vector.load %arg7[%c0_238, %344, %c0_239] : memref<4x16x32xf32, #tpu.memory_space<vmem>>, vector<1x2x32xf32>
    %346 = vector.shape_cast %345 : vector<1x2x32xf32> to vector<2x32xf32>
    %c0_240 = arith.constant 0 : index
    %c0_241 = arith.constant 0 : index
    %c0_242 = arith.constant 0 : index
    %347 = vector.load %arg2[%c0_240, %c0_241, %c0_242] : memref<4x32x32xbf16, #tpu.memory_space<vmem>>, vector<1x32x32xbf16>
    %348 = vector.shape_cast %347 : vector<1x32x32xbf16> to vector<32x32xbf16>
    %cst_243 = arith.constant dense<0.000000e+00> : vector<2x32xf32>
    %349 = tpu.matmul %342, %348, %cst_243 {dimension_numbers = #tpu.dot_dimension_numbers<[1], [0], [0], [1], [0, 0, 1, 1], [], []>} : vector<2x32xbf16>, vector<32x32xbf16>, vector<2x32xf32> -> vector<2x32xf32>
    %350 = arith.addf %346, %349 : vector<2x32xf32>
    %351 = arith.negf %350 : vector<2x32xf32>
    %352 = math.exp %351 : vector<2x32xf32>
    %cst_244 = arith.constant 1.000000e+00 : f32
    %353 = vector.broadcast %cst_244 : f32 to vector<2x32xf32>
    %354 = arith.addf %353, %352 : vector<2x32xf32>
    %355 = arith.divf %353, %354 : vector<2x32xf32>
    %c1_245 = arith.constant 1 : index
    %356 = arith.index_cast %343 : i32 to index
    %c0_246 = arith.constant 0 : index
    %357 = vector.load %arg7[%c1_245, %356, %c0_246] : memref<4x16x32xf32, #tpu.memory_space<vmem>>, vector<1x2x32xf32>
    %358 = vector.shape_cast %357 : vector<1x2x32xf32> to vector<2x32xf32>
    %c1_247 = arith.constant 1 : index
    %c0_248 = arith.constant 0 : index
    %c0_249 = arith.constant 0 : index
    %359 = vector.load %arg2[%c1_247, %c0_248, %c0_249] : memref<4x32x32xbf16, #tpu.memory_space<vmem>>, vector<1x32x32xbf16>
    %360 = vector.shape_cast %359 : vector<1x32x32xbf16> to vector<32x32xbf16>
    %cst_250 = arith.constant dense<0.000000e+00> : vector<2x32xf32>
    %361 = tpu.matmul %342, %360, %cst_250 {dimension_numbers = #tpu.dot_dimension_numbers<[1], [0], [0], [1], [0, 0, 1, 1], [], []>} : vector<2x32xbf16>, vector<32x32xbf16>, vector<2x32xf32> -> vector<2x32xf32>
    %362 = arith.addf %358, %361 : vector<2x32xf32>
    %363 = arith.negf %362 : vector<2x32xf32>
    %364 = math.exp %363 : vector<2x32xf32>
    %cst_251 = arith.constant 1.000000e+00 : f32
    %365 = vector.broadcast %cst_251 : f32 to vector<2x32xf32>
    %366 = arith.addf %365, %364 : vector<2x32xf32>
    %367 = arith.divf %365, %366 : vector<2x32xf32>
    %c2_252 = arith.constant 2 : index
    %368 = arith.index_cast %343 : i32 to index
    %c0_253 = arith.constant 0 : index
    %369 = vector.load %arg7[%c2_252, %368, %c0_253] : memref<4x16x32xf32, #tpu.memory_space<vmem>>, vector<1x2x32xf32>
    %370 = vector.shape_cast %369 : vector<1x2x32xf32> to vector<2x32xf32>
    %c2_254 = arith.constant 2 : index
    %c0_255 = arith.constant 0 : index
    %c0_256 = arith.constant 0 : index
    %371 = vector.load %arg2[%c2_254, %c0_255, %c0_256] : memref<4x32x32xbf16, #tpu.memory_space<vmem>>, vector<1x32x32xbf16>
    %372 = vector.shape_cast %371 : vector<1x32x32xbf16> to vector<32x32xbf16>
    %cst_257 = arith.constant dense<0.000000e+00> : vector<2x32xf32>
    %373 = tpu.matmul %342, %372, %cst_257 {dimension_numbers = #tpu.dot_dimension_numbers<[1], [0], [0], [1], [0, 0, 1, 1], [], []>} : vector<2x32xbf16>, vector<32x32xbf16>, vector<2x32xf32> -> vector<2x32xf32>
    %374 = arith.addf %370, %373 : vector<2x32xf32>
    %375 = math.tanh %374 : vector<2x32xf32>
    %c3_258 = arith.constant 3 : index
    %376 = arith.index_cast %343 : i32 to index
    %c0_259 = arith.constant 0 : index
    %377 = vector.load %arg7[%c3_258, %376, %c0_259] : memref<4x16x32xf32, #tpu.memory_space<vmem>>, vector<1x2x32xf32>
    %378 = vector.shape_cast %377 : vector<1x2x32xf32> to vector<2x32xf32>
    %c3_260 = arith.constant 3 : index
    %c0_261 = arith.constant 0 : index
    %c0_262 = arith.constant 0 : index
    %379 = vector.load %arg2[%c3_260, %c0_261, %c0_262] : memref<4x32x32xbf16, #tpu.memory_space<vmem>>, vector<1x32x32xbf16>
    %380 = vector.shape_cast %379 : vector<1x32x32xbf16> to vector<32x32xbf16>
    %cst_263 = arith.constant dense<0.000000e+00> : vector<2x32xf32>
    %381 = tpu.matmul %342, %380, %cst_263 {dimension_numbers = #tpu.dot_dimension_numbers<[1], [0], [0], [1], [0, 0, 1, 1], [], []>} : vector<2x32xbf16>, vector<32x32xbf16>, vector<2x32xf32> -> vector<2x32xf32>
    %382 = arith.addf %378, %381 : vector<2x32xf32>
    %383 = arith.negf %382 : vector<2x32xf32>
    %384 = math.exp %383 : vector<2x32xf32>
    %cst_264 = arith.constant 1.000000e+00 : f32
    %385 = vector.broadcast %cst_264 : f32 to vector<2x32xf32>
    %386 = arith.addf %385, %384 : vector<2x32xf32>
    %387 = arith.divf %385, %386 : vector<2x32xf32>
    %388 = arith.mulf %367, %341 : vector<2x32xf32>
    %389 = arith.mulf %355, %375 : vector<2x32xf32>
    %390 = arith.addf %388, %389 : vector<2x32xf32>
    %391 = math.tanh %390 : vector<2x32xf32>
    %392 = arith.mulf %387, %391 : vector<2x32xf32>
    %c0_265 = arith.constant 0 : index
    %c0_266 = arith.constant 0 : index
    %393 = vector.load %arg9[%c0_265, %c0_266] : memref<2x32xf32, #tpu.memory_space<vmem>>, vector<2x32xf32>
    tpu.vector_store %arg9[%c0_265, %c0_266], %392 {strides = array<i32>} : memref<2x32xf32, #tpu.memory_space<vmem>>, vector<2x32xf32>,
    %c0_267 = arith.constant 0 : index
    %c0_268 = arith.constant 0 : index
    %394 = vector.load %arg10[%c0_267, %c0_268] : memref<2x32xf32, #tpu.memory_space<vmem>>, vector<2x32xf32>
    tpu.vector_store %arg10[%c0_267, %c0_268], %390 {strides = array<i32>} : memref<2x32xf32, #tpu.memory_space<vmem>>, vector<2x32xf32>,
    %395 = arith.index_cast %c5_i32 : i32 to index
    %c0_269 = arith.constant 0 : index
    %c0_270 = arith.constant 0 : index
    %396 = vector.load %arg8[%395, %c0_269, %c0_270] : memref<8x2x32xf32, #tpu.memory_space<vmem>>, vector<1x2x32xf32>
    %397 = vector.shape_cast %396 : vector<1x2x32xf32> to vector<2x32xf32>
    %398 = vector.shape_cast %392 : vector<2x32xf32> to vector<1x2x32xf32>
    tpu.vector_store %arg8[%395, %c0_269, %c0_270], %398 {strides = array<i32>} : memref<8x2x32xf32, #tpu.memory_space<vmem>>, vector<1x2x32xf32>,
    %c6_i32 = arith.constant 6 : i32
    %c0_271 = arith.constant 0 : index
    %c0_272 = arith.constant 0 : index
    %399 = vector.load %arg9[%c0_271, %c0_272] : memref<2x32xf32, #tpu.memory_space<vmem>>, vector<2x32xf32>
    %c0_273 = arith.constant 0 : index
    %c0_274 = arith.constant 0 : index
    %400 = vector.load %arg10[%c0_273, %c0_274] : memref<2x32xf32, #tpu.memory_space<vmem>>, vector<2x32xf32>
    %401 = arith.truncf %399 : vector<2x32xf32> to vector<2x32xbf16>
    %c2_i32_275 = arith.constant 2 : i32
    %402 = arith.muli %c6_i32, %c2_i32_275 : i32
    %c0_276 = arith.constant 0 : index
    %403 = arith.index_cast %402 : i32 to index
    %c0_277 = arith.constant 0 : index
    %404 = vector.load %arg7[%c0_276, %403, %c0_277] : memref<4x16x32xf32, #tpu.memory_space<vmem>>, vector<1x2x32xf32>
    %405 = vector.shape_cast %404 : vector<1x2x32xf32> to vector<2x32xf32>
    %c0_278 = arith.constant 0 : index
    %c0_279 = arith.constant 0 : index
    %c0_280 = arith.constant 0 : index
    %406 = vector.load %arg2[%c0_278, %c0_279, %c0_280] : memref<4x32x32xbf16, #tpu.memory_space<vmem>>, vector<1x32x32xbf16>
    %407 = vector.shape_cast %406 : vector<1x32x32xbf16> to vector<32x32xbf16>
    %cst_281 = arith.constant dense<0.000000e+00> : vector<2x32xf32>
    %408 = tpu.matmul %401, %407, %cst_281 {dimension_numbers = #tpu.dot_dimension_numbers<[1], [0], [0], [1], [0, 0, 1, 1], [], []>} : vector<2x32xbf16>, vector<32x32xbf16>, vector<2x32xf32> -> vector<2x32xf32>
    %409 = arith.addf %405, %408 : vector<2x32xf32>
    %410 = arith.negf %409 : vector<2x32xf32>
    %411 = math.exp %410 : vector<2x32xf32>
    %cst_282 = arith.constant 1.000000e+00 : f32
    %412 = vector.broadcast %cst_282 : f32 to vector<2x32xf32>
    %413 = arith.addf %412, %411 : vector<2x32xf32>
    %414 = arith.divf %412, %413 : vector<2x32xf32>
    %c1_283 = arith.constant 1 : index
    %415 = arith.index_cast %402 : i32 to index
    %c0_284 = arith.constant 0 : index
    %416 = vector.load %arg7[%c1_283, %415, %c0_284] : memref<4x16x32xf32, #tpu.memory_space<vmem>>, vector<1x2x32xf32>
    %417 = vector.shape_cast %416 : vector<1x2x32xf32> to vector<2x32xf32>
    %c1_285 = arith.constant 1 : index
    %c0_286 = arith.constant 0 : index
    %c0_287 = arith.constant 0 : index
    %418 = vector.load %arg2[%c1_285, %c0_286, %c0_287] : memref<4x32x32xbf16, #tpu.memory_space<vmem>>, vector<1x32x32xbf16>
    %419 = vector.shape_cast %418 : vector<1x32x32xbf16> to vector<32x32xbf16>
    %cst_288 = arith.constant dense<0.000000e+00> : vector<2x32xf32>
    %420 = tpu.matmul %401, %419, %cst_288 {dimension_numbers = #tpu.dot_dimension_numbers<[1], [0], [0], [1], [0, 0, 1, 1], [], []>} : vector<2x32xbf16>, vector<32x32xbf16>, vector<2x32xf32> -> vector<2x32xf32>
    %421 = arith.addf %417, %420 : vector<2x32xf32>
    %422 = arith.negf %421 : vector<2x32xf32>
    %423 = math.exp %422 : vector<2x32xf32>
    %cst_289 = arith.constant 1.000000e+00 : f32
    %424 = vector.broadcast %cst_289 : f32 to vector<2x32xf32>
    %425 = arith.addf %424, %423 : vector<2x32xf32>
    %426 = arith.divf %424, %425 : vector<2x32xf32>
    %c2_290 = arith.constant 2 : index
    %427 = arith.index_cast %402 : i32 to index
    %c0_291 = arith.constant 0 : index
    %428 = vector.load %arg7[%c2_290, %427, %c0_291] : memref<4x16x32xf32, #tpu.memory_space<vmem>>, vector<1x2x32xf32>
    %429 = vector.shape_cast %428 : vector<1x2x32xf32> to vector<2x32xf32>
    %c2_292 = arith.constant 2 : index
    %c0_293 = arith.constant 0 : index
    %c0_294 = arith.constant 0 : index
    %430 = vector.load %arg2[%c2_292, %c0_293, %c0_294] : memref<4x32x32xbf16, #tpu.memory_space<vmem>>, vector<1x32x32xbf16>
    %431 = vector.shape_cast %430 : vector<1x32x32xbf16> to vector<32x32xbf16>
    %cst_295 = arith.constant dense<0.000000e+00> : vector<2x32xf32>
    %432 = tpu.matmul %401, %431, %cst_295 {dimension_numbers = #tpu.dot_dimension_numbers<[1], [0], [0], [1], [0, 0, 1, 1], [], []>} : vector<2x32xbf16>, vector<32x32xbf16>, vector<2x32xf32> -> vector<2x32xf32>
    %433 = arith.addf %429, %432 : vector<2x32xf32>
    %434 = math.tanh %433 : vector<2x32xf32>
    %c3_296 = arith.constant 3 : index
    %435 = arith.index_cast %402 : i32 to index
    %c0_297 = arith.constant 0 : index
    %436 = vector.load %arg7[%c3_296, %435, %c0_297] : memref<4x16x32xf32, #tpu.memory_space<vmem>>, vector<1x2x32xf32>
    %437 = vector.shape_cast %436 : vector<1x2x32xf32> to vector<2x32xf32>
    %c3_298 = arith.constant 3 : index
    %c0_299 = arith.constant 0 : index
    %c0_300 = arith.constant 0 : index
    %438 = vector.load %arg2[%c3_298, %c0_299, %c0_300] : memref<4x32x32xbf16, #tpu.memory_space<vmem>>, vector<1x32x32xbf16>
    %439 = vector.shape_cast %438 : vector<1x32x32xbf16> to vector<32x32xbf16>
    %cst_301 = arith.constant dense<0.000000e+00> : vector<2x32xf32>
    %440 = tpu.matmul %401, %439, %cst_301 {dimension_numbers = #tpu.dot_dimension_numbers<[1], [0], [0], [1], [0, 0, 1, 1], [], []>} : vector<2x32xbf16>, vector<32x32xbf16>, vector<2x32xf32> -> vector<2x32xf32>
    %441 = arith.addf %437, %440 : vector<2x32xf32>
    %442 = arith.negf %441 : vector<2x32xf32>
    %443 = math.exp %442 : vector<2x32xf32>
    %cst_302 = arith.constant 1.000000e+00 : f32
    %444 = vector.broadcast %cst_302 : f32 to vector<2x32xf32>
    %445 = arith.addf %444, %443 : vector<2x32xf32>
    %446 = arith.divf %444, %445 : vector<2x32xf32>
    %447 = arith.mulf %426, %400 : vector<2x32xf32>
    %448 = arith.mulf %414, %434 : vector<2x32xf32>
    %449 = arith.addf %447, %448 : vector<2x32xf32>
    %450 = math.tanh %449 : vector<2x32xf32>
    %451 = arith.mulf %446, %450 : vector<2x32xf32>
    %c0_303 = arith.constant 0 : index
    %c0_304 = arith.constant 0 : index
    %452 = vector.load %arg9[%c0_303, %c0_304] : memref<2x32xf32, #tpu.memory_space<vmem>>, vector<2x32xf32>
    tpu.vector_store %arg9[%c0_303, %c0_304], %451 {strides = array<i32>} : memref<2x32xf32, #tpu.memory_space<vmem>>, vector<2x32xf32>,
    %c0_305 = arith.constant 0 : index
    %c0_306 = arith.constant 0 : index
    %453 = vector.load %arg10[%c0_305, %c0_306] : memref<2x32xf32, #tpu.memory_space<vmem>>, vector<2x32xf32>
    tpu.vector_store %arg10[%c0_305, %c0_306], %449 {strides = array<i32>} : memref<2x32xf32, #tpu.memory_space<vmem>>, vector<2x32xf32>,
    %454 = arith.index_cast %c6_i32 : i32 to index
    %c0_307 = arith.constant 0 : index
    %c0_308 = arith.constant 0 : index
    %455 = vector.load %arg8[%454, %c0_307, %c0_308] : memref<8x2x32xf32, #tpu.memory_space<vmem>>, vector<1x2x32xf32>
    %456 = vector.shape_cast %455 : vector<1x2x32xf32> to vector<2x32xf32>
    %457 = vector.shape_cast %451 : vector<2x32xf32> to vector<1x2x32xf32>
    tpu.vector_store %arg8[%454, %c0_307, %c0_308], %457 {strides = array<i32>} : memref<8x2x32xf32, #tpu.memory_space<vmem>>, vector<1x2x32xf32>,
    %c7_i32 = arith.constant 7 : i32
    %c0_309 = arith.constant 0 : index
    %c0_310 = arith.constant 0 : index
    %458 = vector.load %arg9[%c0_309, %c0_310] : memref<2x32xf32, #tpu.memory_space<vmem>>, vector<2x32xf32>
    %c0_311 = arith.constant 0 : index
    %c0_312 = arith.constant 0 : index
    %459 = vector.load %arg10[%c0_311, %c0_312] : memref<2x32xf32, #tpu.memory_space<vmem>>, vector<2x32xf32>
    %460 = arith.truncf %458 : vector<2x32xf32> to vector<2x32xbf16>
    %c2_i32_313 = arith.constant 2 : i32
    %461 = arith.muli %c7_i32, %c2_i32_313 : i32
    %c0_314 = arith.constant 0 : index
    %462 = arith.index_cast %461 : i32 to index
    %c0_315 = arith.constant 0 : index
    %463 = vector.load %arg7[%c0_314, %462, %c0_315] : memref<4x16x32xf32, #tpu.memory_space<vmem>>, vector<1x2x32xf32>
    %464 = vector.shape_cast %463 : vector<1x2x32xf32> to vector<2x32xf32>
    %c0_316 = arith.constant 0 : index
    %c0_317 = arith.constant 0 : index
    %c0_318 = arith.constant 0 : index
    %465 = vector.load %arg2[%c0_316, %c0_317, %c0_318] : memref<4x32x32xbf16, #tpu.memory_space<vmem>>, vector<1x32x32xbf16>
    %466 = vector.shape_cast %465 : vector<1x32x32xbf16> to vector<32x32xbf16>
    %cst_319 = arith.constant dense<0.000000e+00> : vector<2x32xf32>
    %467 = tpu.matmul %460, %466, %cst_319 {dimension_numbers = #tpu.dot_dimension_numbers<[1], [0], [0], [1], [0, 0, 1, 1], [], []>} : vector<2x32xbf16>, vector<32x32xbf16>, vector<2x32xf32> -> vector<2x32xf32>
    %468 = arith.addf %464, %467 : vector<2x32xf32>
    %469 = arith.negf %468 : vector<2x32xf32>
    %470 = math.exp %469 : vector<2x32xf32>
    %cst_320 = arith.constant 1.000000e+00 : f32
    %471 = vector.broadcast %cst_320 : f32 to vector<2x32xf32>
    %472 = arith.addf %471, %470 : vector<2x32xf32>
    %473 = arith.divf %471, %472 : vector<2x32xf32>
    %c1_321 = arith.constant 1 : index
    %474 = arith.index_cast %461 : i32 to index
    %c0_322 = arith.constant 0 : index
    %475 = vector.load %arg7[%c1_321, %474, %c0_322] : memref<4x16x32xf32, #tpu.memory_space<vmem>>, vector<1x2x32xf32>
    %476 = vector.shape_cast %475 : vector<1x2x32xf32> to vector<2x32xf32>
    %c1_323 = arith.constant 1 : index
    %c0_324 = arith.constant 0 : index
    %c0_325 = arith.constant 0 : index
    %477 = vector.load %arg2[%c1_323, %c0_324, %c0_325] : memref<4x32x32xbf16, #tpu.memory_space<vmem>>, vector<1x32x32xbf16>
    %478 = vector.shape_cast %477 : vector<1x32x32xbf16> to vector<32x32xbf16>
    %cst_326 = arith.constant dense<0.000000e+00> : vector<2x32xf32>
    %479 = tpu.matmul %460, %478, %cst_326 {dimension_numbers = #tpu.dot_dimension_numbers<[1], [0], [0], [1], [0, 0, 1, 1], [], []>} : vector<2x32xbf16>, vector<32x32xbf16>, vector<2x32xf32> -> vector<2x32xf32>
    %480 = arith.addf %476, %479 : vector<2x32xf32>
    %481 = arith.negf %480 : vector<2x32xf32>
    %482 = math.exp %481 : vector<2x32xf32>
    %cst_327 = arith.constant 1.000000e+00 : f32
    %483 = vector.broadcast %cst_327 : f32 to vector<2x32xf32>
    %484 = arith.addf %483, %482 : vector<2x32xf32>
    %485 = arith.divf %483, %484 : vector<2x32xf32>
    %c2_328 = arith.constant 2 : index
    %486 = arith.index_cast %461 : i32 to index
    %c0_329 = arith.constant 0 : index
    %487 = vector.load %arg7[%c2_328, %486, %c0_329] : memref<4x16x32xf32, #tpu.memory_space<vmem>>, vector<1x2x32xf32>
    %488 = vector.shape_cast %487 : vector<1x2x32xf32> to vector<2x32xf32>
    %c2_330 = arith.constant 2 : index
    %c0_331 = arith.constant 0 : index
    %c0_332 = arith.constant 0 : index
    %489 = vector.load %arg2[%c2_330, %c0_331, %c0_332] : memref<4x32x32xbf16, #tpu.memory_space<vmem>>, vector<1x32x32xbf16>
    %490 = vector.shape_cast %489 : vector<1x32x32xbf16> to vector<32x32xbf16>
    %cst_333 = arith.constant dense<0.000000e+00> : vector<2x32xf32>
    %491 = tpu.matmul %460, %490, %cst_333 {dimension_numbers = #tpu.dot_dimension_numbers<[1], [0], [0], [1], [0, 0, 1, 1], [], []>} : vector<2x32xbf16>, vector<32x32xbf16>, vector<2x32xf32> -> vector<2x32xf32>
    %492 = arith.addf %488, %491 : vector<2x32xf32>
    %493 = math.tanh %492 : vector<2x32xf32>
    %c3_334 = arith.constant 3 : index
    %494 = arith.index_cast %461 : i32 to index
    %c0_335 = arith.constant 0 : index
    %495 = vector.load %arg7[%c3_334, %494, %c0_335] : memref<4x16x32xf32, #tpu.memory_space<vmem>>, vector<1x2x32xf32>
    %496 = vector.shape_cast %495 : vector<1x2x32xf32> to vector<2x32xf32>
    %c3_336 = arith.constant 3 : index
    %c0_337 = arith.constant 0 : index
    %c0_338 = arith.constant 0 : index
    %497 = vector.load %arg2[%c3_336, %c0_337, %c0_338] : memref<4x32x32xbf16, #tpu.memory_space<vmem>>, vector<1x32x32xbf16>
    %498 = vector.shape_cast %497 : vector<1x32x32xbf16> to vector<32x32xbf16>
    %cst_339 = arith.constant dense<0.000000e+00> : vector<2x32xf32>
    %499 = tpu.matmul %460, %498, %cst_339 {dimension_numbers = #tpu.dot_dimension_numbers<[1], [0], [0], [1], [0, 0, 1, 1], [], []>} : vector<2x32xbf16>, vector<32x32xbf16>, vector<2x32xf32> -> vector<2x32xf32>
    %500 = arith.addf %496, %499 : vector<2x32xf32>
    %501 = arith.negf %500 : vector<2x32xf32>
    %502 = math.exp %501 : vector<2x32xf32>
    %cst_340 = arith.constant 1.000000e+00 : f32
    %503 = vector.broadcast %cst_340 : f32 to vector<2x32xf32>
    %504 = arith.addf %503, %502 : vector<2x32xf32>
    %505 = arith.divf %503, %504 : vector<2x32xf32>
    %506 = arith.mulf %485, %459 : vector<2x32xf32>
    %507 = arith.mulf %473, %493 : vector<2x32xf32>
    %508 = arith.addf %506, %507 : vector<2x32xf32>
    %509 = math.tanh %508 : vector<2x32xf32>
    %510 = arith.mulf %505, %509 : vector<2x32xf32>
    %c0_341 = arith.constant 0 : index
    %c0_342 = arith.constant 0 : index
    %511 = vector.load %arg9[%c0_341, %c0_342] : memref<2x32xf32, #tpu.memory_space<vmem>>, vector<2x32xf32>
    tpu.vector_store %arg9[%c0_341, %c0_342], %510 {strides = array<i32>} : memref<2x32xf32, #tpu.memory_space<vmem>>, vector<2x32xf32>,
    %c0_343 = arith.constant 0 : index
    %c0_344 = arith.constant 0 : index
    %512 = vector.load %arg10[%c0_343, %c0_344] : memref<2x32xf32, #tpu.memory_space<vmem>>, vector<2x32xf32>
    tpu.vector_store %arg10[%c0_343, %c0_344], %508 {strides = array<i32>} : memref<2x32xf32, #tpu.memory_space<vmem>>, vector<2x32xf32>,
    %513 = arith.index_cast %c7_i32 : i32 to index
    %c0_345 = arith.constant 0 : index
    %c0_346 = arith.constant 0 : index
    %514 = vector.load %arg8[%513, %c0_345, %c0_346] : memref<8x2x32xf32, #tpu.memory_space<vmem>>, vector<1x2x32xf32>
    %515 = vector.shape_cast %514 : vector<1x2x32xf32> to vector<2x32xf32>
    %516 = vector.shape_cast %510 : vector<2x32xf32> to vector<1x2x32xf32>
    tpu.vector_store %arg8[%513, %c0_345, %c0_346], %516 {strides = array<i32>} : memref<8x2x32xf32, #tpu.memory_space<vmem>>, vector<1x2x32xf32>,
    %c8_i32 = arith.constant 8 : i32
    %c0_347 = arith.constant 0 : index
    %c0_348 = arith.constant 0 : index
    %c0_349 = arith.constant 0 : index
    %517 = vector.load %arg8[%c0_347, %c0_348, %c0_349] : memref<8x2x32xf32, #tpu.memory_space<vmem>>, vector<8x2x32xf32>
    %c0_350 = arith.constant 0 : index
    %c0_351 = arith.constant 0 : index
    %518 = vector.load %arg9[%c0_350, %c0_351] : memref<2x32xf32, #tpu.memory_space<vmem>>, vector<2x32xf32>
    %519 = vector.shape_cast %518 : vector<2x32xf32> to vector<1x2x32xf32>
    %520 = vector.broadcast %519 : vector<1x2x32xf32> to vector<8x2x32xf32>
    %521 = arith.mulf %517, %520 : vector<8x2x32xf32>
    %cst_352 = arith.constant dense<0.000000e+00> : vector<8x2xf32>
    %522 = vector.multi_reduction <add>, %521, %cst_352 [2] : vector<8x2x32xf32> to vector<8x2xf32>
    %523 = vector.shape_cast %522 : vector<8x2xf32> to vector<8x2x1xf32>
    %cst_353 = arith.constant dense<0xFF800000> : vector<2x1xf32>
    %524 = vector.multi_reduction <maximumf>, %523, %cst_353 [0] : vector<8x2x1xf32> to vector<2x1xf32>
    %525 = vector.shape_cast %524 : vector<2x1xf32> to vector<1x2x1xf32>
    %526 = vector.broadcast %525 : vector<1x2x1xf32> to vector<8x2x1xf32>
    %527 = arith.subf %523, %526 : vector<8x2x1xf32>
    %528 = math.exp %527 : vector<8x2x1xf32>
    %cst_354 = arith.constant dense<0.000000e+00> : vector<2x1xf32>
    %529 = vector.multi_reduction <add>, %528, %cst_354 [0] : vector<8x2x1xf32> to vector<2x1xf32>
    %530 = vector.shape_cast %529 : vector<2x1xf32> to vector<1x2x1xf32>
    %531 = tpu.reciprocal %530 {approx = true} : vector<1x2x1xf32> -> vector<1x2x1xf32>
    %532 = vector.broadcast %531 : vector<1x2x1xf32> to vector<8x2x1xf32>
    %533 = arith.mulf %528, %532 : vector<8x2x1xf32>
    %534 = vector.broadcast %533 : vector<8x2x1xf32> to vector<8x2x32xf32>
    %535 = arith.mulf %534, %517 : vector<8x2x32xf32>
    %cst_355 = arith.constant dense<0.000000e+00> : vector<2x32xf32>
    %536 = vector.multi_reduction <add>, %535, %cst_355 [0] : vector<8x2x32xf32> to vector<2x32xf32>
    %537 = arith.truncf %536 : vector<2x32xf32> to vector<2x32xbf16>
    %c0_356 = arith.constant 0 : index
    %c0_357 = arith.constant 0 : index
    %538 = vector.load %arg4[%c0_356, %c0_357] : memref<32x4xbf16, #tpu.memory_space<vmem>>, vector<32x4xbf16>
    %cst_358 = arith.constant dense<0.000000e+00> : vector<2x4xf32>
    %539 = tpu.matmul %537, %538, %cst_358 {dimension_numbers = #tpu.dot_dimension_numbers<[1], [0], [0], [1], [0, 0, 1, 1], [], []>} : vector<2x32xbf16>, vector<32x4xbf16>, vector<2x4xf32> -> vector<2x4xf32>
    %c0_359 = arith.constant 0 : index
    %c0_360 = arith.constant 0 : index
    %540 = vector.load %arg5[%c0_359, %c0_360] : memref<1x4xf32, #tpu.memory_space<vmem>>, vector<1x4xf32>
    %541 = vector.broadcast %540 : vector<1x4xf32> to vector<2x4xf32>
    %542 = arith.addf %539, %541 : vector<2x4xf32>
    %c0_361 = arith.constant 0 : index
    %c0_362 = arith.constant 0 : index
    %543 = vector.load %arg6[%c0_361, %c0_362] : memref<2x4xf32, #tpu.memory_space<vmem>>, vector<2x4xf32>
    tpu.vector_store %arg6[%c0_361, %c0_362], %542 {strides = array<i32>} : memref<2x4xf32, #tpu.memory_space<vmem>>, vector<2x4xf32>,
    return
  }
}

</mosaic_0001>

<llo_original>
// kernel: tpu_custom_call.1
$region0: #{tpu_custom_call.1}
  #allocation0 [shape = 'u32[]', space=smem, size = 0x4, offset = 0x4, fixed_abs, tag = 'smem constant byte address 0x4 - core index']
  #allocation1 [shape = 'u32[144,128]{1,0:T(1,128)}', space=vmem, size = 0x12000, scoped, tag = 'internal scratch']
  #allocation2 [shape = 'f32[4,16,32]{2,1,0:T(8,128)}', space=vmem, size = 0x8000, scoped, tag = 'scratch operand']
  #allocation3 [shape = 'f32[8,2,32]{2,1,0:T(2,128)}', space=vmem, size = 0x2000, scoped, tag = 'scratch operand']
  #allocation4 [shape = 'f32[2,32]{1,0:T(2,128)}', space=vmem, size = 0x400, scoped, tag = 'scratch operand']
  #allocation5 [shape = 'f32[2,32]{1,0:T(2,128)}', space=vmem, size = 0x400, scoped, tag = 'scratch operand']
  %s0 = inlined_call_operand.vmem [shape: bf16[16,16], index: 0, kind: input, shape index: {}]
  %s1 = inlined_call_operand.hbm [shape: bf16[4,16,32], index: 1, kind: input, shape index: {}]
  %s2 = inlined_call_operand.hbm [shape: bf16[4,32,32], index: 2, kind: input, shape index: {}]
  %s3 = inlined_call_operand.vmem [shape: f32[4,1,32], index: 3, kind: input, shape index: {}]
  %s4 = inlined_call_operand.vmem [shape: bf16[32,4], index: 4, kind: input, shape index: {}]
  %s5 = inlined_call_operand.vmem [shape: f32[1,4], index: 5, kind: input, shape index: {}]
  %s6 = inlined_call_operand.hbm [shape: f32[2,4], index: 6, kind: output, shape index: {}]
  %s7 = sld [smem:[#allocation0]]
  $region42: #{tpu_custom_call.1} parent=0
    _
  %s9 = ssub.s32 1, %s7
  %s10 = scalar_select 0, %s9, %s7
  $region1: #{tpu_custom_call.1} parent=0
    #allocation6 [shape = 'u8[16384]{0}', space=vmem, size = 0x4000, scoped, tag = 'input window, operand 1, single buffered']
    #allocation7 [shape = 's32[1]{0}', space=sflag, size = 0x4, scoped, tag = 'scoped memory for tpu_custom_call.1']
    #allocation8 [shape = 's32[1]{0}', space=sflag, size = 0x4, scoped, tag = 'scoped memory for tpu_custom_call.1']
    #allocation9 [shape = 'u8[32768]{0}', space=vmem, size = 0x8000, scoped, tag = 'input window, operand 2, single buffered']
    #allocation10 [shape = 's32[1]{0}', space=sflag, size = 0x4, scoped, tag = 'scoped memory for tpu_custom_call.1']
    #allocation11 [shape = 'u8[1024]{0}', space=vmem, size = 0x400, scoped, tag = 'output window, operand 0, single buffered']
    %11 = vsyncpa [#allocation7], 0
    %12 = vsyncpa [#allocation10], 0
    %13 = vsyncpa [#allocation8], 0
    // Predicated region
    $region2: #{tpu_custom_call.1} parent=1 // pred_check
      _
    $region3: #{tpu_custom_call.1} parent=1 // pred_check_branch
      %15 = sbr.rel (0) target = $region5
    $region4: #{tpu_custom_call.1} parent=1 // pred_region
      _
    $region5: #{tpu_custom_call.1} parent=1 // pred_fallthru
      _
    // Predicated region
    $region6: #{tpu_custom_call.1} parent=1 // pred_check
      _
    $region7: #{tpu_custom_call.1} parent=1 // pred_check_branch
      %17 = sbr.rel (0) target = $region9
    $region8: #{tpu_custom_call.1} parent=1 // pred_region
      %s19 = ssub.s32 512, 512
      %20 = vsyncadd [#allocation7], %s19
      %s21 = sshll.u32 [#allocation6], 4
      %s22 = int_to_ptr.vmem [resolvable:$true] %s21
      %27 = dma.hbm_to_vmem [thread:$0]  %s1, 512, %s22, [#allocation7], 64, 64, 4
    $region9: #{tpu_custom_call.1} parent=1 // pred_fallthru
      _
    // Predicated region
    $region10: #{tpu_custom_call.1} parent=1 // pred_check
      _
    $region11: #{tpu_custom_call.1} parent=1 // pred_check_branch
      %29 = sbr.rel (0) target = $region13
    $region12: #{tpu_custom_call.1} parent=1 // pred_region
      %s31 = ssub.s32 1024, 1024
      %32 = vsyncadd [#allocation10], %s31
      %s33 = sshll.u32 [#allocation9], 4
      %s34 = int_to_ptr.vmem [resolvable:$true] %s33
      %39 = dma.hbm_to_vmem [thread:$0]  %s2, 1024, %s34, [#allocation10], 64, 64, 4
    $region13: #{tpu_custom_call.1} parent=1 // pred_fallthru
      _
    // Predicated region
    $region14: #{tpu_custom_call.1} parent=1 // pred_check
      _
    $region15: #{tpu_custom_call.1} parent=1 // pred_check_branch
      %41 = sbr.rel (0) target = $region17
    $region16: #{tpu_custom_call.1} parent=1 // pred_region
      _
    $region17: #{tpu_custom_call.1} parent=1 // pred_fallthru
      _
    // Predicated region
    $region18: #{tpu_custom_call.1} parent=1 // pred_check
      _
    $region19: #{tpu_custom_call.1} parent=1 // pred_check_branch
      %43 = sbr.rel (0) target = $region21
    $region20: #{tpu_custom_call.1} parent=1 // pred_region
      _
    $region21: #{tpu_custom_call.1} parent=1 // pred_fallthru
      _
    // Predicated region
    $region22: #{tpu_custom_call.1} parent=1 // pred_check
      _
    $region23: #{tpu_custom_call.1} parent=1 // pred_check_branch
      %45 = sbr.rel (0) target = $region25
    $region24: #{tpu_custom_call.1} parent=1 // pred_region
      _
    $region25: #{tpu_custom_call.1} parent=1 // pred_fallthru
      _
    // Predicated region
    $region26: #{tpu_custom_call.1} parent=1 // pred_check
      _
    $region27: #{tpu_custom_call.1} parent=1 // pred_check_branch
      %47 = sbr.rel (0) target = $region29
    $region28: #{tpu_custom_call.1} parent=1 // pred_region
      %48 = dma.done [#allocation7], 512
    $region29: #{tpu_custom_call.1} parent=1 // pred_fallthru
      _
    // Predicated region
    $region30: #{tpu_custom_call.1} parent=1 // pred_check
      _
    $region31: #{tpu_custom_call.1} parent=1 // pred_check_branch
      %50 = sbr.rel (0) target = $region33
    $region32: #{tpu_custom_call.1} parent=1 // pred_region
      %51 = dma.done [#allocation10], 1024
    $region33: #{tpu_custom_call.1} parent=1 // pred_fallthru
      _
    %v53 = vld [vmem:[%s0] sm:$0xf]
    %v54 = vld [vmem:[%s0 + $0x4] sm:$0xf]
    %v55 = vld [vmem:[#allocation6] sm:$0xf]
    %v56 = vld [vmem:[#allocation6 + $0x4] sm:$0xf]
    %v57 = vld [vmem:[%s3] sm:$0x1]
    %v59 = vlaneseq
    %v60 = vshrl.u32 %v59, 7
    %v61 = vsub.s32 0, %v60
    %v62 = vrot.slane %v57, %v61
    %v66 = vunpack.c.l.b16 %v53
    %v67 = vunpack.c.l.b16 %v54
    %v68 = vpack.c.b16 %v67, %v66
    %v71 = vunpack.c.l.b16 %v55
    %v72 = vunpack.c.l.b16 %v56
    %v73 = vpack.c.b16 %v72, %v71
    %vm75 = vcmask 130048
    %v77 = vsel %vm75, %v68, 0
    %79 = vmatprep.subr.bf16.mxu0 0
    %80 = vmatpush1.bf16.msra.mxu0 %v73
    %81 = vmatprep.subr.bf16.mxu0 0
    %82 = vmatpush1.bf16.msra.mxu0 0
    %83 = vmatprep.subr.bf16.mxu0 0
    %84 = vmatpush1.bf16.msra.mxu0 0
    %85 = vmatprep.subr.bf16.mxu0 0
    %86 = vmatpush1.bf16.msra.mxu0 0
    %87 = vmatprep.subr.bf16.mxu0 0
    %88 = vmatpush1.bf16.msra.mxu0 0
    %89 = vmatprep.subr.bf16.mxu0 0
    %90 = vmatpush1.bf16.msra.mxu0 0
    %91 = vmatprep.subr.bf16.mxu0 0
    %92 = vmatpush1.bf16.msra.mxu0 0
    %93 = vmatprep.subr.bf16.mxu0 0
    %94 = vmatpush1.bf16.msra.mxu0 0
    %95 = vmatprep.subr.bf16.mxu0 0
    %96 = vmatpush1.bf16.msra.mxu0 0
    %97 = vmatprep.subr.bf16.mxu0 0
    %98 = vmatpush1.bf16.msra.mxu0 0
    %99 = vmatprep.subr.bf16.mxu0 0
    %100 = vmatpush1.bf16.msra.mxu0 0
    %101 = vmatprep.subr.bf16.mxu0 0
    %102 = vmatpush1.bf16.msra.mxu0 0
    %103 = vmatprep.subr.bf16.mxu0 0
    %104 = vmatpush1.bf16.msra.mxu0 0
    %105 = vmatprep.subr.bf16.mxu0 0
    %106 = vmatpush1.bf16.msra.mxu0 0
    %107 = vmatprep.subr.bf16.mxu0 0
    %108 = vmatpush1.bf16.msra.mxu0 0
    %109 = vmatprep.subr.bf16.mxu0 0
    %110 = vmatpush1.bf16.msra.mxu0 0
    %111 = vmatprep.mubr.bf16.mxu0 0
    %112 = vmatmul.mubr.bf16.gmra.mrb[0].mxu0 %v77
    %v113 = vpop.f32.mrb[0].mxu0
    %v114 = vadd.f32 %v62, %v113
    %v115 = vpop.f32.mrb[0].mxu0
    %v116 = vpop.f32.mrb[0].mxu0
    %v117 = vadd.f32 %v62, %v116
    %v118 = vpop.f32.mrb[0].mxu0
    %119 = vdwg.mxu0
    %vm120 = vcmask 261120
    %121 = vst.msk [vmem:[#allocation2] sm:$0xff] %vm120, %v114
    %122 = vst.msk [vmem:[#allocation2 + $0x8] sm:$0xff] %vm120, %v117
    %s123 = scalar_lea.vmem [#allocation6], 8
    %v124 = vld [vmem:[%s123] sm:$0xf]
    %v125 = vld [vmem:[%s123 + $0x4] sm:$0xf]
    %s126 = scalar_lea.vmem %s3, 1
    %v127 = vld [vmem:[%s126] sm:$0x1]
    %v129 = vlaneseq
    %v130 = vshrl.u32 %v129, 7
    %v131 = vsub.s32 0, %v130
    %v132 = vrot.slane %v127, %v131
    %v136 = vunpack.c.l.b16 %v124
    %v137 = vunpack.c.l.b16 %v125
    %v138 = vpack.c.b16 %v137, %v136
    %140 = vmatprep.subr.bf16.mxu0 0
    %141 = vmatpush1.bf16.msra.mxu0 %v138
    %142 = vmatprep.subr.bf16.mxu0 0
    %143 = vmatpush1.bf16.msra.mxu0 0
    %144 = vmatprep.subr.bf16.mxu0 0
    %145 = vmatpush1.bf16.msra.mxu0 0
    %146 = vmatprep.subr.bf16.mxu0 0
    %147 = vmatpush1.bf16.msra.mxu0 0
    %148 = vmatprep.subr.bf16.mxu0 0
    %149 = vmatpush1.bf16.msra.mxu0 0
    %150 = vmatprep.subr.bf16.mxu0 0
    %151 = vmatpush1.bf16.msra.mxu0 0
    %152 = vmatprep.subr.bf16.mxu0 0
    %153 = vmatpush1.bf16.msra.mxu0 0
    %154 = vmatprep.subr.bf16.mxu0 0
    %155 = vmatpush1.bf16.msra.mxu0 0
    %156 = vmatprep.subr.bf16.mxu0 0
    %157 = vmatpush1.bf16.msra.mxu0 0
    %158 = vmatprep.subr.bf16.mxu0 0
    %159 = vmatpush1.bf16.msra.mxu0 0
    %160 = vmatprep.subr.bf16.mxu0 0
    %161 = vmatpush1.bf16.msra.mxu0 0
    %162 = vmatprep.subr.bf16.mxu0 0
    %163 = vmatpush1.bf16.msra.mxu0 0
    %164 = vmatprep.subr.bf16.mxu0 0
    %165 = vmatpush1.bf16.msra.mxu0 0
    %166 = vmatprep.subr.bf16.mxu0 0
    %167 = vmatpush1.bf16.msra.mxu0 0
    %168 = vmatprep.subr.bf16.mxu0 0
    %169 = vmatpush1.bf16.msra.mxu0 0
    %170 = vmatprep.subr.bf16.mxu0 0
    %171 = vmatpush1.bf16.msra.mxu0 0
    %172 = vmatprep.mubr.bf16.mxu0 0
    %173 = vmatmul.mubr.bf16.gmra.mrb[0].mxu0 %v77
    %v174 = vpop.f32.mrb[0].mxu0
    %v175 = vadd.f32 %v132, %v174
    %v176 = vpop.f32.mrb[0].mxu0
    %v177 = vpop.f32.mrb[0].mxu0
    %v178 = vadd.f32 %v132, %v177
    %v179 = vpop.f32.mrb[0].mxu0
    %180 = vdwg.mxu0
    %s181 = scalar_lea.vmem [#allocation2], 16
    %182 = vst.msk [vmem:[%s181] sm:$0xff] %vm120, %v175
    %183 = vst.msk [vmem:[%s181 + $0x8] sm:$0xff] %vm120, %v178
    %s184 = scalar_lea.vmem [#allocation6], 16
    %v185 = vld [vmem:[%s184] sm:$0xf]
    %v186 = vld [vmem:[%s184 + $0x4] sm:$0xf]
    %s187 = scalar_lea.vmem %s3, 2
    %v188 = vld [vmem:[%s187] sm:$0x1]
    %v190 = vlaneseq
    %v191 = vshrl.u32 %v190, 7
    %v192 = vsub.s32 0, %v191
    %v193 = vrot.slane %v188, %v192
    %v197 = vunpack.c.l.b16 %v185
    %v198 = vunpack.c.l.b16 %v186
    %v199 = vpack.c.b16 %v198, %v197
    %201 = vmatprep.subr.bf16.mxu0 0
    %202 = vmatpush1.bf16.msra.mxu0 %v199
    %203 = vmatprep.subr.bf16.mxu0 0
    %204 = vmatpush1.bf16.msra.mxu0 0
    %205 = vmatprep.subr.bf16.mxu0 0
    %206 = vmatpush1.bf16.msra.mxu0 0
    %207 = vmatprep.subr.bf16.mxu0 0
    %208 = vmatpush1.bf16.msra.mxu0 0
    %209 = vmatprep.subr.bf16.mxu0 0
    %210 = vmatpush1.bf16.msra.mxu0 0
    %211 = vmatprep.subr.bf16.mxu0 0
    %212 = vmatpush1.bf16.msra.mxu0 0
    %213 = vmatprep.subr.bf16.mxu0 0
    %214 = vmatpush1.bf16.msra.mxu0 0
    %215 = vmatprep.subr.bf16.mxu0 0
    %216 = vmatpush1.bf16.msra.mxu0 0
    %217 = vmatprep.subr.bf16.mxu0 0
    %218 = vmatpush1.bf16.msra.mxu0 0
    %219 = vmatprep.subr.bf16.mxu0 0
    %220 = vmatpush1.bf16.msra.mxu0 0
    %221 = vmatprep.subr.bf16.mxu0 0
    %222 = vmatpush1.bf16.msra.mxu0 0
    %223 = vmatprep.subr.bf16.mxu0 0
    %224 = vmatpush1.bf16.msra.mxu0 0
    %225 = vmatprep.subr.bf16.mxu0 0
    %226 = vmatpush1.bf16.msra.mxu0 0
    %227 = vmatprep.subr.bf16.mxu0 0
    %228 = vmatpush1.bf16.msra.mxu0 0
    %229 = vmatprep.subr.bf16.mxu0 0
    %230 = vmatpush1.bf16.msra.mxu0 0
    %231 = vmatprep.subr.bf16.mxu0 0
    %232 = vmatpush1.bf16.msra.mxu0 0
    %233 = vmatprep.mubr.bf16.mxu0 0
    %234 = vmatmul.mubr.bf16.gmra.mrb[0].mxu0 %v77
    %v235 = vpop.f32.mrb[0].mxu0
    %v236 = vadd.f32 %v193, %v235
    %v237 = vpop.f32.mrb[0].mxu0
    %v238 = vpop.f32.mrb[0].mxu0
    %v239 = vadd.f32 %v193, %v238
    %v240 = vpop.f32.mrb[0].mxu0
    %241 = vdwg.mxu0
    %s242 = scalar_lea.vmem [#allocation2], 32
    %243 = vst.msk [vmem:[%s242] sm:$0xff] %vm120, %v236
    %244 = vst.msk [vmem:[%s242 + $0x8] sm:$0xff] %vm120, %v239
    %s245 = scalar_lea.vmem [#allocation6], 24
    %v246 = vld [vmem:[%s245] sm:$0xf]
    %v247 = vld [vmem:[%s245 + $0x4] sm:$0xf]
    %s248 = scalar_lea.vmem %s3, 3
    %v249 = vld [vmem:[%s248] sm:$0x1]
    %v251 = vlaneseq
    %v252 = vshrl.u32 %v251, 7
    %v253 = vsub.s32 0, %v252
    %v254 = vrot.slane %v249, %v253
    %v258 = vunpack.c.l.b16 %v246
    %v259 = vunpack.c.l.b16 %v247
    %v260 = vpack.c.b16 %v259, %v258
    %262 = vmatprep.subr.bf16.mxu0 0
    %263 = vmatpush1.bf16.msra.mxu0 %v260
    %264 = vmatprep.subr.bf16.mxu0 0
    %265 = vmatpush1.bf16.msra.mxu0 0
    %266 = vmatprep.subr.bf16.mxu0 0
    %267 = vmatpush1.bf16.msra.mxu0 0
    %268 = vmatprep.subr.bf16.mxu0 0
    %269 = vmatpush1.bf16.msra.mxu0 0
    %270 = vmatprep.subr.bf16.mxu0 0
    %271 = vmatpush1.bf16.msra.mxu0 0
    %272 = vmatprep.subr.bf16.mxu0 0
    %273 = vmatpush1.bf16.msra.mxu0 0
    %274 = vmatprep.subr.bf16.mxu0 0
    %275 = vmatpush1.bf16.msra.mxu0 0
    %276 = vmatprep.subr.bf16.mxu0 0
    %277 = vmatpush1.bf16.msra.mxu0 0
    %278 = vmatprep.subr.bf16.mxu0 0
    %279 = vmatpush1.bf16.msra.mxu0 0
    %280 = vmatprep.subr.bf16.mxu0 0
    %281 = vmatpush1.bf16.msra.mxu0 0
    %282 = vmatprep.subr.bf16.mxu0 0
    %283 = vmatpush1.bf16.msra.mxu0 0
    %284 = vmatprep.subr.bf16.mxu0 0
    %285 = vmatpush1.bf16.msra.mxu0 0
    %286 = vmatprep.subr.bf16.mxu0 0
    %287 = vmatpush1.bf16.msra.mxu0 0
    %288 = vmatprep.subr.bf16.mxu0 0
    %289 = vmatpush1.bf16.msra.mxu0 0
    %290 = vmatprep.subr.bf16.mxu0 0
    %291 = vmatpush1.bf16.msra.mxu0 0
    %292 = vmatprep.subr.bf16.mxu0 0
    %293 = vmatpush1.bf16.msra.mxu0 0
    %294 = vmatprep.mubr.bf16.mxu0 0
    %295 = vmatmul.mubr.bf16.gmra.mrb[0].mxu0 %v77
    %v296 = vpop.f32.mrb[0].mxu0
    %v297 = vadd.f32 %v254, %v296
    %v298 = vpop.f32.mrb[0].mxu0
    %v299 = vpop.f32.mrb[0].mxu0
    %v300 = vadd.f32 %v254, %v299
    %v301 = vpop.f32.mrb[0].mxu0
    %302 = vdwg.mxu0
    %s303 = scalar_lea.vmem [#allocation2], 48
    %304 = vst.msk [vmem:[%s303] sm:$0xff] %vm120, %v297
    %305 = vst.msk [vmem:[%s303 + $0x8] sm:$0xff] %vm120, %v300
    %vm306 = vcmask 254976
    %307 = vst.msk [vmem:[#allocation4] sm:$0x3] %vm306, 0.0
    %308 = vst.msk [vmem:[#allocation5] sm:$0x3] %vm306, 0.0
    %v309 = vld [vmem:[#allocation4] sm:$0x3]
    %v310 = vld [vmem:[#allocation5] sm:$0x3]
    %v311 = vpack.c.bf16 %v309, %v309
    %v312 = vld [vmem:[#allocation2] sm:$0x3]
    %v313 = vld [vmem:[#allocation9] sm:$0xf]
    %v314 = vld [vmem:[#allocation9 + $0x4] sm:$0xf]
    %v315 = vld [vmem:[#allocation9 + $0x8] sm:$0xf]
    %v316 = vld [vmem:[#allocation9 + $0xc] sm:$0xf]
    %v321 = vunpack.c.l.b16 %v313
    %v322 = vunpack.c.l.b16 %v314
    %v323 = vunpack.c.l.b16 %v315
    %v324 = vunpack.c.l.b16 %v316
    %v325 = vpack.c.b16 %v322, %v321
    %v326 = vpack.c.b16 %v324, %v323
    %v330 = vsel %vm120, %v311, 0
    %332 = vmatprep.subr.bf16.mxu0 0
    %333 = vmatpush1.bf16.msra.mxu0 %v325
    %334 = vmatprep.subr.bf16.mxu0 0
    %335 = vmatpush1.bf16.msra.mxu0 %v326
    %336 = vmatprep.subr.bf16.mxu0 0
    %337 = vmatpush1.bf16.msra.mxu0 0
    %338 = vmatprep.subr.bf16.mxu0 0
    %339 = vmatpush1.bf16.msra.mxu0 0
    %340 = vmatprep.subr.bf16.mxu0 0
    %341 = vmatpush1.bf16.msra.mxu0 0
    %342 = vmatprep.subr.bf16.mxu0 0
    %343 = vmatpush1.bf16.msra.mxu0 0
    %344 = vmatprep.subr.bf16.mxu0 0
    %345 = vmatpush1.bf16.msra.mxu0 0
    %346 = vmatprep.subr.bf16.mxu0 0
    %347 = vmatpush1.bf16.msra.mxu0 0
    %348 = vmatprep.subr.bf16.mxu0 0
    %349 = vmatpush1.bf16.msra.mxu0 0
    %350 = vmatprep.subr.bf16.mxu0 0
    %351 = vmatpush1.bf16.msra.mxu0 0
    %352 = vmatprep.subr.bf16.mxu0 0
    %353 = vmatpush1.bf16.msra.mxu0 0
    %354 = vmatprep.subr.bf16.mxu0 0
    %355 = vmatpush1.bf16.msra.mxu0 0
    %356 = vmatprep.subr.bf16.mxu0 0
    %357 = vmatpush1.bf16.msra.mxu0 0
    %358 = vmatprep.subr.bf16.mxu0 0
    %359 = vmatpush1.bf16.msra.mxu0 0
    %360 = vmatprep.subr.bf16.mxu0 0
    %361 = vmatpush1.bf16.msra.mxu0 0
    %362 = vmatprep.subr.bf16.mxu0 0
    %363 = vmatpush1.bf16.msra.mxu0 0
    %364 = vmatprep.mubr.bf16.mxu0 0
    %365 = vmatmul.mubr.bf16.gmra.mrb[0].mxu0 %v330
    %v366 = vpop.f32.mrb[0].mxu0
    %v367 = vadd.f32 0.0, %v366
    %v368 = vpop.f32.mrb[0].mxu0
    %v369 = vpop.f32.mrb[0].mxu0
    %v370 = vpop.f32.mrb[0].mxu0
    %371 = vdwg.mxu0
    %v372 = vadd.f32 %v312, %v367
    %v373 = vxor.u32 %v372, 2147483648
    %v374 = vmul.f32 %v373, 1.442695
    %v375 = vpow.pop %v374
    %v376 = vadd.f32 %v375, 1.0
    %v377 = vrcp.pop %v376
    %v378 = vmul.f32 1.0, %v377
    %v379 = vld [vmem:[%s181] sm:$0x3]
    %s380 = scalar_lea.vmem [#allocation9], 16
    %v381 = vld [vmem:[%s380] sm:$0xf]
    %v382 = vld [vmem:[%s380 + $0x4] sm:$0xf]
    %v383 = vld [vmem:[%s380 + $0x8] sm:$0xf]
    %v384 = vld [vmem:[%s380 + $0xc] sm:$0xf]
    %v389 = vunpack.c.l.b16 %v381
    %v390 = vunpack.c.l.b16 %v382
    %v391 = vunpack.c.l.b16 %v383
    %v392 = vunpack.c.l.b16 %v384
    %v393 = vpack.c.b16 %v390, %v389
    %v394 = vpack.c.b16 %v392, %v391
    %397 = vmatprep.subr.bf16.mxu0 0
    %398 = vmatpush1.bf16.msra.mxu0 %v393
    %399 = vmatprep.subr.bf16.mxu0 0
    %400 = vmatpush1.bf16.msra.mxu0 %v394
    %401 = vmatprep.subr.bf16.mxu0 0
    %402 = vmatpush1.bf16.msra.mxu0 0
    %403 = vmatprep.subr.bf16.mxu0 0
    %404 = vmatpush1.bf16.msra.mxu0 0
    %405 = vmatprep.subr.bf16.mxu0 0
    %406 = vmatpush1.bf16.msra.mxu0 0
    %407 = vmatprep.subr.bf16.mxu0 0
    %408 = vmatpush1.bf16.msra.mxu0 0
    %409 = vmatprep.subr.bf16.mxu0 0
    %410 = vmatpush1.bf16.msra.mxu0 0
    %411 = vmatprep.subr.bf16.mxu0 0
    %412 = vmatpush1.bf16.msra.mxu0 0
    %413 = vmatprep.subr.bf16.mxu0 0
    %414 = vmatpush1.bf16.msra.mxu0 0
    %415 = vmatprep.subr.bf16.mxu0 0
    %416 = vmatpush1.bf16.msra.mxu0 0
    %417 = vmatprep.subr.bf16.mxu0 0
    %418 = vmatpush1.bf16.msra.mxu0 0
    %419 = vmatprep.subr.bf16.mxu0 0
    %420 = vmatpush1.bf16.msra.mxu0 0
    %421 = vmatprep.subr.bf16.mxu0 0
    %422 = vmatpush1.bf16.msra.mxu0 0
    %423 = vmatprep.subr.bf16.mxu0 0
    %424 = vmatpush1.bf16.msra.mxu0 0
    %425 = vmatprep.subr.bf16.mxu0 0
    %426 = vmatpush1.bf16.msra.mxu0 0
    %427 = vmatprep.subr.bf16.mxu0 0
    %428 = vmatpush1.bf16.msra.mxu0 0
    %429 = vmatprep.mubr.bf16.mxu0 0
    %430 = vmatmul.mubr.bf16.gmra.mrb[0].mxu0 %v330
    %v431 = vpop.f32.mrb[0].mxu0
    %v432 = vadd.f32 0.0, %v431
    %v433 = vpop.f32.mrb[0].mxu0
    %v434 = vpop.f32.mrb[0].mxu0
    %v435 = vpop.f32.mrb[0].mxu0
    %436 = vdwg.mxu0
    %v437 = vadd.f32 %v379, %v432
    %v438 = vxor.u32 %v437, 2147483648
    %v439 = vmul.f32 %v438, 1.442695
    %v440 = vpow.pop %v439
    %v441 = vadd.f32 %v440, 1.0
    %v442 = vrcp.pop %v441
    %v443 = vmul.f32 1.0, %v442
    %v444 = vld [vmem:[%s242] sm:$0x3]
    %s445 = scalar_lea.vmem [#allocation9], 32
    %v446 = vld [vmem:[%s445] sm:$0xf]
    %v447 = vld [vmem:[%s445 + $0x4] sm:$0xf]
    %v448 = vld [vmem:[%s445 + $0x8] sm:$0xf]
    %v449 = vld [vmem:[%s445 + $0xc] sm:$0xf]
    %v454 = vunpack.c.l.b16 %v446
    %v455 = vunpack.c.l.b16 %v447
    %v456 = vunpack.c.l.b16 %v448
    %v457 = vunpack.c.l.b16 %v449
    %v458 = vpack.c.b16 %v455, %v454
    %v459 = vpack.c.b16 %v457, %v456
    %462 = vmatprep.subr.bf16.mxu0 0
    %463 = vmatpush1.bf16.msra.mxu0 %v458
    %464 = vmatprep.subr.bf16.mxu0 0
    %465 = vmatpush1.bf16.msra.mxu0 %v459
    %466 = vmatprep.subr.bf16.mxu0 0
    %467 = vmatpush1.bf16.msra.mxu0 0
    %468 = vmatprep.subr.bf16.mxu0 0
    %469 = vmatpush1.bf16.msra.mxu0 0
    %470 = vmatprep.subr.bf16.mxu0 0
    %471 = vmatpush1.bf16.msra.mxu0 0
    %472 = vmatprep.subr.bf16.mxu0 0
    %473 = vmatpush1.bf16.msra.mxu0 0
    %474 = vmatprep.subr.bf16.mxu0 0
    %475 = vmatpush1.bf16.msra.mxu0 0
    %476 = vmatprep.subr.bf16.mxu0 0
    %477 = vmatpush1.bf16.msra.mxu0 0
    %478 = vmatprep.subr.bf16.mxu0 0
    %479 = vmatpush1.bf16.msra.mxu0 0
    %480 = vmatprep.subr.bf16.mxu0 0
    %481 = vmatpush1.bf16.msra.mxu0 0
    %482 = vmatprep.subr.bf16.mxu0 0
    %483 = vmatpush1.bf16.msra.mxu0 0
    %484 = vmatprep.subr.bf16.mxu0 0
    %485 = vmatpush1.bf16.msra.mxu0 0
    %486 = vmatprep.subr.bf16.mxu0 0
    %487 = vmatpush1.bf16.msra.mxu0 0
    %488 = vmatprep.subr.bf16.mxu0 0
    %489 = vmatpush1.bf16.msra.mxu0 0
    %490 = vmatprep.subr.bf16.mxu0 0
    %491 = vmatpush1.bf16.msra.mxu0 0
    %492 = vmatprep.subr.bf16.mxu0 0
    %493 = vmatpush1.bf16.msra.mxu0 0
    %494 = vmatprep.mubr.bf16.mxu0 0
    %495 = vmatmul.mubr.bf16.gmra.mrb[0].mxu0 %v330
    %v496 = vpop.f32.mrb[0].mxu0
    %v497 = vadd.f32 0.0, %v496
    %v498 = vpop.f32.mrb[0].mxu0
    %v499 = vpop.f32.mrb[0].mxu0
    %v500 = vpop.f32.mrb[0].mxu0
    %501 = vdwg.mxu0
    %v502 = vadd.f32 %v444, %v497
    %v503 = vtanh.pop %v502
    %v504 = vld [vmem:[%s303] sm:$0x3]
    %s505 = scalar_lea.vmem [#allocation9], 48
    %v506 = vld [vmem:[%s505] sm:$0xf]
    %v507 = vld [vmem:[%s505 + $0x4] sm:$0xf]
    %v508 = vld [vmem:[%s505 + $0x8] sm:$0xf]
    %v509 = vld [vmem:[%s505 + $0xc] sm:$0xf]
    %v514 = vunpack.c.l.b16 %v506
    %v515 = vunpack.c.l.b16 %v507
    %v516 = vunpack.c.l.b16 %v508
    %v517 = vunpack.c.l.b16 %v509
    %v518 = vpack.c.b16 %v515, %v514
    %v519 = vpack.c.b16 %v517, %v516
    %522 = vmatprep.subr.bf16.mxu0 0
    %523 = vmatpush1.bf16.msra.mxu0 %v518
    %524 = vmatprep.subr.bf16.mxu0 0
    %525 = vmatpush1.bf16.msra.mxu0 %v519
    %526 = vmatprep.subr.bf16.mxu0 0
    %527 = vmatpush1.bf16.msra.mxu0 0
    %528 = vmatprep.subr.bf16.mxu0 0
    %529 = vmatpush1.bf16.msra.mxu0 0
    %530 = vmatprep.subr.bf16.mxu0 0
    %531 = vmatpush1.bf16.msra.mxu0 0
    %532 = vmatprep.subr.bf16.mxu0 0
    %533 = vmatpush1.bf16.msra.mxu0 0
    %534 = vmatprep.subr.bf16.mxu0 0
    %535 = vmatpush1.bf16.msra.mxu0 0
    %536 = vmatprep.subr.bf16.mxu0 0
    %537 = vmatpush1.bf16.msra.mxu0 0
    %538 = vmatprep.subr.bf16.mxu0 0
    %539 = vmatpush1.bf16.msra.mxu0 0
    %540 = vmatprep.subr.bf16.mxu0 0
    %541 = vmatpush1.bf16.msra.mxu0 0
    %542 = vmatprep.subr.bf16.mxu0 0
    %543 = vmatpush1.bf16.msra.mxu0 0
    %544 = vmatprep.subr.bf16.mxu0 0
    %545 = vmatpush1.bf16.msra.mxu0 0
    %546 = vmatprep.subr.bf16.mxu0 0
    %547 = vmatpush1.bf16.msra.mxu0 0
    %548 = vmatprep.subr.bf16.mxu0 0
    %549 = vmatpush1.bf16.msra.mxu0 0
    %550 = vmatprep.subr.bf16.mxu0 0
    %551 = vmatpush1.bf16.msra.mxu0 0
    %552 = vmatprep.subr.bf16.mxu0 0
    %553 = vmatpush1.bf16.msra.mxu0 0
    %554 = vmatprep.mubr.bf16.mxu0 0
    %555 = vmatmul.mubr.bf16.gmra.mrb[0].mxu0 %v330
    %v556 = vpop.f32.mrb[0].mxu0
    %v557 = vadd.f32 0.0, %v556
    %v558 = vpop.f32.mrb[0].mxu0
    %v559 = vpop.f32.mrb[0].mxu0
    %v560 = vpop.f32.mrb[0].mxu0
    %561 = vdwg.mxu0
    %v562 = vadd.f32 %v504, %v557
    %v563 = vxor.u32 %v562, 2147483648
    %v564 = vmul.f32 %v563, 1.442695
    %v565 = vpow.pop %v564
    %v566 = vadd.f32 %v565, 1.0
    %v567 = vrcp.pop %v566
    %v568 = vmul.f32 1.0, %v567
    %v569 = vmul.f32 %v443, %v310
    %v570 = vmul.f32 %v378, %v503
    %v571 = vadd.f32 %v569, %v570
    %v572 = vtanh.pop %v571
    %v573 = vmul.f32 %v568, %v572
    %574 = vst.msk [vmem:[#allocation4] sm:$0x3] %vm306, %v573
    %575 = vst.msk [vmem:[#allocation5] sm:$0x3] %vm306, %v571
    %576 = vst.msk [vmem:[#allocation3] sm:$0x3] %vm306, %v573
    %v577 = vld [vmem:[#allocation4] sm:$0x3]
    %v578 = vld [vmem:[#allocation5] sm:$0x3]
    %v579 = vpack.c.bf16 %v577, %v577
    %v580 = vld [vmem:[#allocation2 + $0x2] sm:$0x3]
    %v581 = vld [vmem:[#allocation9] sm:$0xf]
    %v582 = vld [vmem:[#allocation9 + $0x4] sm:$0xf]
    %v583 = vld [vmem:[#allocation9 + $0x8] sm:$0xf]
    %v584 = vld [vmem:[#allocation9 + $0xc] sm:$0xf]
    %v589 = vunpack.c.l.b16 %v581
    %v590 = vunpack.c.l.b16 %v582
    %v591 = vunpack.c.l.b16 %v583
    %v592 = vunpack.c.l.b16 %v584
    %v593 = vpack.c.b16 %v590, %v589
    %v594 = vpack.c.b16 %v592, %v591
    %v598 = vsel %vm120, %v579, 0
    %600 = vmatprep.subr.bf16.mxu0 0
    %601 = vmatpush1.bf16.msra.mxu0 %v593
    %602 = vmatprep.subr.bf16.mxu0 0
    %603 = vmatpush1.bf16.msra.mxu0 %v594
    %604 = vmatprep.subr.bf16.mxu0 0
    %605 = vmatpush1.bf16.msra.mxu0 0
    %606 = vmatprep.subr.bf16.mxu0 0
    %607 = vmatpush1.bf16.msra.mxu0 0
    %608 = vmatprep.subr.bf16.mxu0 0
    %609 = vmatpush1.bf16.msra.mxu0 0
    %610 = vmatprep.subr.bf16.mxu0 0
    %611 = vmatpush1.bf16.msra.mxu0 0
    %612 = vmatprep.subr.bf16.mxu0 0
    %613 = vmatpush1.bf16.msra.mxu0 0
    %614 = vmatprep.subr.bf16.mxu0 0
    %615 = vmatpush1.bf16.msra.mxu0 0
    %616 = vmatprep.subr.bf16.mxu0 0
    %617 = vmatpush1.bf16.msra.mxu0 0
    %618 = vmatprep.subr.bf16.mxu0 0
    %619 = vmatpush1.bf16.msra.mxu0 0
    %620 = vmatprep.subr.bf16.mxu0 0
    %621 = vmatpush1.bf16.msra.mxu0 0
    %622 = vmatprep.subr.bf16.mxu0 0
    %623 = vmatpush1.bf16.msra.mxu0 0
    %624 = vmatprep.subr.bf16.mxu0 0
    %625 = vmatpush1.bf16.msra.mxu0 0
    %626 = vmatprep.subr.bf16.mxu0 0
    %627 = vmatpush1.bf16.msra.mxu0 0
    %628 = vmatprep.subr.bf16.mxu0 0
    %629 = vmatpush1.bf16.msra.mxu0 0
    %630 = vmatprep.subr.bf16.mxu0 0
    %631 = vmatpush1.bf16.msra.mxu0 0
    %632 = vmatprep.mubr.bf16.mxu0 0
    %633 = vmatmul.mubr.bf16.gmra.mrb[0].mxu0 %v598
    %v634 = vpop.f32.mrb[0].mxu0
    %v635 = vadd.f32 0.0, %v634
    %v636 = vpop.f32.mrb[0].mxu0
    %v637 = vpop.f32.mrb[0].mxu0
    %v638 = vpop.f32.mrb[0].mxu0
    %639 = vdwg.mxu0
    %v640 = vadd.f32 %v580, %v635
    %v641 = vxor.u32 %v640, 2147483648
    %v642 = vmul.f32 %v641, 1.442695
    %v643 = vpow.pop %v642
    %v644 = vadd.f32 %v643, 1.0
    %v645 = vrcp.pop %v644
    %v646 = vmul.f32 1.0, %v645
    %v647 = vld [vmem:[%s181 + $0x2] sm:$0x3]
    %v648 = vld [vmem:[%s380] sm:$0xf]
    %v649 = vld [vmem:[%s380 + $0x4] sm:$0xf]
    %v650 = vld [vmem:[%s380 + $0x8] sm:$0xf]
    %v651 = vld [vmem:[%s380 + $0xc] sm:$0xf]
    %v656 = vunpack.c.l.b16 %v648
    %v657 = vunpack.c.l.b16 %v649
    %v658 = vunpack.c.l.b16 %v650
    %v659 = vunpack.c.l.b16 %v651
    %v660 = vpack.c.b16 %v657, %v656
    %v661 = vpack.c.b16 %v659, %v658
    %664 = vmatprep.subr.bf16.mxu0 0
    %665 = vmatpush1.bf16.msra.mxu0 %v660
    %666 = vmatprep.subr.bf16.mxu0 0
    %667 = vmatpush1.bf16.msra.mxu0 %v661
    %668 = vmatprep.subr.bf16.mxu0 0
    %669 = vmatpush1.bf16.msra.mxu0 0
    %670 = vmatprep.subr.bf16.mxu0 0
    %671 = vmatpush1.bf16.msra.mxu0 0
    %672 = vmatprep.subr.bf16.mxu0 0
    %673 = vmatpush1.bf16.msra.mxu0 0
    %674 = vmatprep.subr.bf16.mxu0 0
    %675 = vmatpush1.bf16.msra.mxu0 0
    %676 = vmatprep.subr.bf16.mxu0 0
    %677 = vmatpush1.bf16.msra.mxu0 0
    %678 = vmatprep.subr.bf16.mxu0 0
    %679 = vmatpush1.bf16.msra.mxu0 0
    %680 = vmatprep.subr.bf16.mxu0 0
    %681 = vmatpush1.bf16.msra.mxu0 0
    %682 = vmatprep.subr.bf16.mxu0 0
    %683 = vmatpush1.bf16.msra.mxu0 0
    %684 = vmatprep.subr.bf16.mxu0 0
    %685 = vmatpush1.bf16.msra.mxu0 0
    %686 = vmatprep.subr.bf16.mxu0 0
    %687 = vmatpush1.bf16.msra.mxu0 0
    %688 = vmatprep.subr.bf16.mxu0 0
    %689 = vmatpush1.bf16.msra.mxu0 0
    %690 = vmatprep.subr.bf16.mxu0 0
    %691 = vmatpush1.bf16.msra.mxu0 0
    %692 = vmatprep.subr.bf16.mxu0 0
    %693 = vmatpush1.bf16.msra.mxu0 0
    %694 = vmatprep.subr.bf16.mxu0 0
    %695 = vmatpush1.bf16.msra.mxu0 0
    %696 = vmatprep.mubr.bf16.mxu0 0
    %697 = vmatmul.mubr.bf16.gmra.mrb[0].mxu0 %v598
    %v698 = vpop.f32.mrb[0].mxu0
    %v699 = vadd.f32 0.0, %v698
    %v700 = vpop.f32.mrb[0].mxu0
    %v701 = vpop.f32.mrb[0].mxu0
    %v702 = vpop.f32.mrb[0].mxu0
    %703 = vdwg.mxu0
    %v704 = vadd.f32 %v647, %v699
    %v705 = vxor.u32 %v704, 2147483648
    %v706 = vmul.f32 %v705, 1.442695
    %v707 = vpow.pop %v706
    %v708 = vadd.f32 %v707, 1.0
    %v709 = vrcp.pop %v708
    %v710 = vmul.f32 1.0, %v709
    %v711 = vld [vmem:[%s242 + $0x2] sm:$0x3]
    %v712 = vld [vmem:[%s445] sm:$0xf]
    %v713 = vld [vmem:[%s445 + $0x4] sm:$0xf]
    %v714 = vld [vmem:[%s445 + $0x8] sm:$0xf]
    %v715 = vld [vmem:[%s445 + $0xc] sm:$0xf]
    %v720 = vunpack.c.l.b16 %v712
    %v721 = vunpack.c.l.b16 %v713
    %v722 = vunpack.c.l.b16 %v714
    %v723 = vunpack.c.l.b16 %v715
    %v724 = vpack.c.b16 %v721, %v720
    %v725 = vpack.c.b16 %v723, %v722
    %728 = vmatprep.subr.bf16.mxu0 0
    %729 = vmatpush1.bf16.msra.mxu0 %v724
    %730 = vmatprep.subr.bf16.mxu0 0
    %731 = vmatpush1.bf16.msra.mxu0 %v725
    %732 = vmatprep.subr.bf16.mxu0 0
    %733 = vmatpush1.bf16.msra.mxu0 0
    %734 = vmatprep.subr.bf16.mxu0 0
    %735 = vmatpush1.bf16.msra.mxu0 0
    %736 = vmatprep.subr.bf16.mxu0 0
    %737 = vmatpush1.bf16.msra.mxu0 0
    %738 = vmatprep.subr.bf16.mxu0 0
    %739 = vmatpush1.bf16.msra.mxu0 0
    %740 = vmatprep.subr.bf16.mxu0 0
    %741 = vmatpush1.bf16.msra.mxu0 0
    %742 = vmatprep.subr.bf16.mxu0 0
    %743 = vmatpush1.bf16.msra.mxu0 0
    %744 = vmatprep.subr.bf16.mxu0 0
    %745 = vmatpush1.bf16.msra.mxu0 0
    %746 = vmatprep.subr.bf16.mxu0 0
    %747 = vmatpush1.bf16.msra.mxu0 0
    %748 = vmatprep.subr.bf16.mxu0 0
    %749 = vmatpush1.bf16.msra.mxu0 0
    %750 = vmatprep.subr.bf16.mxu0 0
    %751 = vmatpush1.bf16.msra.mxu0 0
    %752 = vmatprep.subr.bf16.mxu0 0
    %753 = vmatpush1.bf16.msra.mxu0 0
    %754 = vmatprep.subr.bf16.mxu0 0
    %755 = vmatpush1.bf16.msra.mxu0 0
    %756 = vmatprep.subr.bf16.mxu0 0
    %757 = vmatpush1.bf16.msra.mxu0 0
    %758 = vmatprep.subr.bf16.mxu0 0
    %759 = vmatpush1.bf16.msra.mxu0 0
    %760 = vmatprep.mubr.bf16.mxu0 0
    %761 = vmatmul.mubr.bf16.gmra.mrb[0].mxu0 %v598
    %v762 = vpop.f32.mrb[0].mxu0
    %v763 = vadd.f32 0.0, %v762
    %v764 = vpop.f32.mrb[0].mxu0
    %v765 = vpop.f32.mrb[0].mxu0
    %v766 = vpop.f32.mrb[0].mxu0
    %767 = vdwg.mxu0
    %v768 = vadd.f32 %v711, %v763
    %v769 = vtanh.pop %v768
    %v770 = vld [vmem:[%s303 + $0x2] sm:$0x3]
    %v771 = vld [vmem:[%s505] sm:$0xf]
    %v772 = vld [vmem:[%s505 + $0x4] sm:$0xf]
    %v773 = vld [vmem:[%s505 + $0x8] sm:$0xf]
    %v774 = vld [vmem:[%s505 + $0xc] sm:$0xf]
    %v779 = vunpack.c.l.b16 %v771
    %v780 = vunpack.c.l.b16 %v772
    %v781 = vunpack.c.l.b16 %v773
    %v782 = vunpack.c.l.b16 %v774
    %v783 = vpack.c.b16 %v780, %v779
    %v784 = vpack.c.b16 %v782, %v781
    %787 = vmatprep.subr.bf16.mxu0 0
    %788 = vmatpush1.bf16.msra.mxu0 %v783
    %789 = vmatprep.subr.bf16.mxu0 0
    %790 = vmatpush1.bf16.msra.mxu0 %v784
    %791 = vmatprep.subr.bf16.mxu0 0
    %792 = vmatpush1.bf16.msra.mxu0 0
    %793 = vmatprep.subr.bf16.mxu0 0
    %794 = vmatpush1.bf16.msra.mxu0 0
    %795 = vmatprep.subr.bf16.mxu0 0
    %796 = vmatpush1.bf16.msra.mxu0 0
    %797 = vmatprep.subr.bf16.mxu0 0
    %798 = vmatpush1.bf16.msra.mxu0 0
    %799 = vmatprep.subr.bf16.mxu0 0
    %800 = vmatpush1.bf16.msra.mxu0 0
    %801 = vmatprep.subr.bf16.mxu0 0
    %802 = vmatpush1.bf16.msra.mxu0 0
    %803 = vmatprep.subr.bf16.mxu0 0
    %804 = vmatpush1.bf16.msra.mxu0 0
    %805 = vmatprep.subr.bf16.mxu0 0
    %806 = vmatpush1.bf16.msra.mxu0 0
    %807 = vmatprep.subr.bf16.mxu0 0
    %808 = vmatpush1.bf16.msra.mxu0 0
    %809 = vmatprep.subr.bf16.mxu0 0
    %810 = vmatpush1.bf16.msra.mxu0 0
    %811 = vmatprep.subr.bf16.mxu0 0
    %812 = vmatpush1.bf16.msra.mxu0 0
    %813 = vmatprep.subr.bf16.mxu0 0
    %814 = vmatpush1.bf16.msra.mxu0 0
    %815 = vmatprep.subr.bf16.mxu0 0
    %816 = vmatpush1.bf16.msra.mxu0 0
    %817 = vmatprep.subr.bf16.mxu0 0
    %818 = vmatpush1.bf16.msra.mxu0 0
    %819 = vmatprep.mubr.bf16.mxu0 0
    %820 = vmatmul.mubr.bf16.gmra.mrb[0].mxu0 %v598
    %v821 = vpop.f32.mrb[0].mxu0
    %v822 = vadd.f32 0.0, %v821
    %v823 = vpop.f32.mrb[0].mxu0
    %v824 = vpop.f32.mrb[0].mxu0
    %v825 = vpop.f32.mrb[0].mxu0
    %826 = vdwg.mxu0
    %v827 = vadd.f32 %v770, %v822
    %v828 = vxor.u32 %v827, 2147483648
    %v829 = vmul.f32 %v828, 1.442695
    %v830 = vpow.pop %v829
    %v831 = vadd.f32 %v830, 1.0
    %v832 = vrcp.pop %v831
    %v833 = vmul.f32 1.0, %v832
    %v834 = vmul.f32 %v710, %v578
    %v835 = vmul.f32 %v646, %v769
    %v836 = vadd.f32 %v834, %v835
    %v837 = vtanh.pop %v836
    %v838 = vmul.f32 %v833, %v837
    %839 = vst.msk [vmem:[#allocation4] sm:$0x3] %vm306, %v838
    %840 = vst.msk [vmem:[#allocation5] sm:$0x3] %vm306, %v836
    %s841 = scalar_lea.vmem [#allocation3], 2
    %842 = vst.msk [vmem:[%s841] sm:$0x3] %vm306, %v838
    %v843 = vld [vmem:[#allocation4] sm:$0x3]
    %v844 = vld [vmem:[#allocation5] sm:$0x3]
    %v845 = vpack.c.bf16 %v843, %v843
    %v846 = vld [vmem:[#allocation2 + $0x4] sm:$0x3]
    %v847 = vld [vmem:[#allocation9] sm:$0xf]
    %v848 = vld [vmem:[#allocation9 + $0x4] sm:$0xf]
    %v849 = vld [vmem:[#allocation9 + $0x8] sm:$0xf]
    %v850 = vld [vmem:[#allocation9 + $0xc] sm:$0xf]
    %v855 = vunpack.c.l.b16 %v847
    %v856 = vunpack.c.l.b16 %v848
    %v857 = vunpack.c.l.b16 %v849
    %v858 = vunpack.c.l.b16 %v850
    %v859 = vpack.c.b16 %v856, %v855
    %v860 = vpack.c.b16 %v858, %v857
    %v864 = vsel %vm120, %v845, 0
    %866 = vmatprep.subr.bf16.mxu0 0
    %867 = vmatpush1.bf16.msra.mxu0 %v859
    %868 = vmatprep.subr.bf16.mxu0 0
    %869 = vmatpush1.bf16.msra.mxu0 %v860
    %870 = vmatprep.subr.bf16.mxu0 0
    %871 = vmatpush1.bf16.msra.mxu0 0
    %872 = vmatprep.subr.bf16.mxu0 0
    %873 = vmatpush1.bf16.msra.mxu0 0
    %874 = vmatprep.subr.bf16.mxu0 0
    %875 = vmatpush1.bf16.msra.mxu0 0
    %876 = vmatprep.subr.bf16.mxu0 0
    %877 = vmatpush1.bf16.msra.mxu0 0
    %878 = vmatprep.subr.bf16.mxu0 0
    %879 = vmatpush1.bf16.msra.mxu0 0
    %880 = vmatprep.subr.bf16.mxu0 0
    %881 = vmatpush1.bf16.msra.mxu0 0
    %882 = vmatprep.subr.bf16.mxu0 0
    %883 = vmatpush1.bf16.msra.mxu0 0
    %884 = vmatprep.subr.bf16.mxu0 0
    %885 = vmatpush1.bf16.msra.mxu0 0
    %886 = vmatprep.subr.bf16.mxu0 0
    %887 = vmatpush1.bf16.msra.mxu0 0
    %888 = vmatprep.subr.bf16.mxu0 0
    %889 = vmatpush1.bf16.msra.mxu0 0
    %890 = vmatprep.subr.bf16.mxu0 0
    %891 = vmatpush1.bf16.msra.mxu0 0
    %892 = vmatprep.subr.bf16.mxu0 0
    %893 = vmatpush1.bf16.msra.mxu0 0
    %894 = vmatprep.subr.bf16.mxu0 0
    %895 = vmatpush1.bf16.msra.mxu0 0
    %896 = vmatprep.subr.bf16.mxu0 0
    %897 = vmatpush1.bf16.msra.mxu0 0
    %898 = vmatprep.mubr.bf16.mxu0 0
    %899 = vmatmul.mubr.bf16.gmra.mrb[0].mxu0 %v864
    %v900 = vpop.f32.mrb[0].mxu0
    %v901 = vadd.f32 0.0, %v900
    %v902 = vpop.f32.mrb[0].mxu0
    %v903 = vpop.f32.mrb[0].mxu0
    %v904 = vpop.f32.mrb[0].mxu0
    %905 = vdwg.mxu0
    %v906 = vadd.f32 %v846, %v901
    %v907 = vxor.u32 %v906, 2147483648
    %v908 = vmul.f32 %v907, 1.442695
    %v909 = vpow.pop %v908
    %v910 = vadd.f32 %v909, 1.0
    %v911 = vrcp.pop %v910
    %v912 = vmul.f32 1.0, %v911
    %v913 = vld [vmem:[%s181 + $0x4] sm:$0x3]
    %v914 = vld [vmem:[%s380] sm:$0xf]
    %v915 = vld [vmem:[%s380 + $0x4] sm:$0xf]
    %v916 = vld [vmem:[%s380 + $0x8] sm:$0xf]
    %v917 = vld [vmem:[%s380 + $0xc] sm:$0xf]
    %v922 = vunpack.c.l.b16 %v914
    %v923 = vunpack.c.l.b16 %v915
    %v924 = vunpack.c.l.b16 %v916
    %v925 = vunpack.c.l.b16 %v917
    %v926 = vpack.c.b16 %v923, %v922
    %v927 = vpack.c.b16 %v925, %v924
    %930 = vmatprep.subr.bf16.mxu0 0
    %931 = vmatpush1.bf16.msra.mxu0 %v926
    %932 = vmatprep.subr.bf16.mxu0 0
    %933 = vmatpush1.bf16.msra.mxu0 %v927
    %934 = vmatprep.subr.bf16.mxu0 0
    %935 = vmatpush1.bf16.msra.mxu0 0
    %936 = vmatprep.subr.bf16.mxu0 0
    %937 = vmatpush1.bf16.msra.mxu0 0
    %938 = vmatprep.subr.bf16.mxu0 0
    %939 = vmatpush1.bf16.msra.mxu0 0
    %940 = vmatprep.subr.bf16.mxu0 0
    %941 = vmatpush1.bf16.msra.mxu0 0
    %942 = vmatprep.subr.bf16.mxu0 0
    %943 = vmatpush1.bf16.msra.mxu0 0
    %944 = vmatprep.subr.bf16.mxu0 0
    %945 = vmatpush1.bf16.msra.mxu0 0
    %946 = vmatprep.subr.bf16.mxu0 0
    %947 = vmatpush1.bf16.msra.mxu0 0
    %948 = vmatprep.subr.bf16.mxu0 0
    %949 = vmatpush1.bf16.msra.mxu0 0
    %950 = vmatprep.subr.bf16.mxu0 0
    %951 = vmatpush1.bf16.msra.mxu0 0
    %952 = vmatprep.subr.bf16.mxu0 0
    %953 = vmatpush1.bf16.msra.mxu0 0
    %954 = vmatprep.subr.bf16.mxu0 0
    %955 = vmatpush1.bf16.msra.mxu0 0
    %956 = vmatprep.subr.bf16.mxu0 0
    %957 = vmatpush1.bf16.msra.mxu0 0
    %958 = vmatprep.subr.bf16.mxu0 0
    %959 = vmatpush1.bf16.msra.mxu0 0
    %960 = vmatprep.subr.bf16.mxu0 0
    %961 = vmatpush1.bf16.msra.mxu0 0
    %962 = vmatprep.mubr.bf16.mxu0 0
    %963 = vmatmul.mubr.bf16.gmra.mrb[0].mxu0 %v864
    %v964 = vpop.f32.mrb[0].mxu0
    %v965 = vadd.f32 0.0, %v964
    %v966 = vpop.f32.mrb[0].mxu0
    %v967 = vpop.f32.mrb[0].mxu0
    %v968 = vpop.f32.mrb[0].mxu0
    %969 = vdwg.mxu0
    %v970 = vadd.f32 %v913, %v965
    %v971 = vxor.u32 %v970, 2147483648
    %v972 = vmul.f32 %v971, 1.442695
    %v973 = vpow.pop %v972
    %v974 = vadd.f32 %v973, 1.0
    %v975 = vrcp.pop %v974
    %v976 = vmul.f32 1.0, %v975
    %v977 = vld [vmem:[%s242 + $0x4] sm:$0x3]
    %v978 = vld [vmem:[%s445] sm:$0xf]
    %v979 = vld [vmem:[%s445 + $0x4] sm:$0xf]
    %v980 = vld [vmem:[%s445 + $0x8] sm:$0xf]
    %v981 = vld [vmem:[%s445 + $0xc] sm:$0xf]
    %v986 = vunpack.c.l.b16 %v978
    %v987 = vunpack.c.l.b16 %v979
    %v988 = vunpack.c.l.b16 %v980
    %v989 = vunpack.c.l.b16 %v981
    %v990 = vpack.c.b16 %v987, %v986
    %v991 = vpack.c.b16 %v989, %v988
    %994 = vmatprep.subr.bf16.mxu0 0
    %995 = vmatpush1.bf16.msra.mxu0 %v990
    %996 = vmatprep.subr.bf16.mxu0 0
    %997 = vmatpush1.bf16.msra.mxu0 %v991
    %998 = vmatprep.subr.bf16.mxu0 0
    %999 = vmatpush1.bf16.msra.mxu0 0
    %1000 = vmatprep.subr.bf16.mxu0 0
    %1001 = vmatpush1.bf16.msra.mxu0 0
    %1002 = vmatprep.subr.bf16.mxu0 0
    %1003 = vmatpush1.bf16.msra.mxu0 0
    %1004 = vmatprep.subr.bf16.mxu0 0
    %1005 = vmatpush1.bf16.msra.mxu0 0
    %1006 = vmatprep.subr.bf16.mxu0 0
    %1007 = vmatpush1.bf16.msra.mxu0 0
    %1008 = vmatprep.subr.bf16.mxu0 0
    %1009 = vmatpush1.bf16.msra.mxu0 0
    %1010 = vmatprep.subr.bf16.mxu0 0
    %1011 = vmatpush1.bf16.msra.mxu0 0
    %1012 = vmatprep.subr.bf16.mxu0 0
    %1013 = vmatpush1.bf16.msra.mxu0 0
    %1014 = vmatprep.subr.bf16.mxu0 0
    %1015 = vmatpush1.bf16.msra.mxu0 0
    %1016 = vmatprep.subr.bf16.mxu0 0
    %1017 = vmatpush1.bf16.msra.mxu0 0
    %1018 = vmatprep.subr.bf16.mxu0 0
    %1019 = vmatpush1.bf16.msra.mxu0 0
    %1020 = vmatprep.subr.bf16.mxu0 0
    %1021 = vmatpush1.bf16.msra.mxu0 0
    %1022 = vmatprep.subr.bf16.mxu0 0
    %1023 = vmatpush1.bf16.msra.mxu0 0
    %1024 = vmatprep.subr.bf16.mxu0 0
    %1025 = vmatpush1.bf16.msra.mxu0 0
    %1026 = vmatprep.mubr.bf16.mxu0 0
    %1027 = vmatmul.mubr.bf16.gmra.mrb[0].mxu0 %v864
    %v1028 = vpop.f32.mrb[0].mxu0
    %v1029 = vadd.f32 0.0, %v1028
    %v1030 = vpop.f32.mrb[0].mxu0
    %v1031 = vpop.f32.mrb[0].mxu0
    %v1032 = vpop.f32.mrb[0].mxu0
    %1033 = vdwg.mxu0
    %v1034 = vadd.f32 %v977, %v1029
    %v1035 = vtanh.pop %v1034
    %v1036 = vld [vmem:[%s303 + $0x4] sm:$0x3]
    %v1037 = vld [vmem:[%s505] sm:$0xf]
    %v1038 = vld [vmem:[%s505 + $0x4] sm:$0xf]
    %v1039 = vld [vmem:[%s505 + $0x8] sm:$0xf]
    %v1040 = vld [vmem:[%s505 + $0xc] sm:$0xf]
    %v1045 = vunpack.c.l.b16 %v1037
    %v1046 = vunpack.c.l.b16 %v1038
    %v1047 = vunpack.c.l.b16 %v1039
    %v1048 = vunpack.c.l.b16 %v1040
    %v1049 = vpack.c.b16 %v1046, %v1045
    %v1050 = vpack.c.b16 %v1048, %v1047
    %1053 = vmatprep.subr.bf16.mxu0 0
    %1054 = vmatpush1.bf16.msra.mxu0 %v1049
    %1055 = vmatprep.subr.bf16.mxu0 0
    %1056 = vmatpush1.bf16.msra.mxu0 %v1050
    %1057 = vmatprep.subr.bf16.mxu0 0
    %1058 = vmatpush1.bf16.msra.mxu0 0
    %1059 = vmatprep.subr.bf16.mxu0 0
    %1060 = vmatpush1.bf16.msra.mxu0 0
    %1061 = vmatprep.subr.bf16.mxu0 0
    %1062 = vmatpush1.bf16.msra.mxu0 0
    %1063 = vmatprep.subr.bf16.mxu0 0
    %1064 = vmatpush1.bf16.msra.mxu0 0
    %1065 = vmatprep.subr.bf16.mxu0 0
    %1066 = vmatpush1.bf16.msra.mxu0 0
    %1067 = vmatprep.subr.bf16.mxu0 0
    %1068 = vmatpush1.bf16.msra.mxu0 0
    %1069 = vmatprep.subr.bf16.mxu0 0
    %1070 = vmatpush1.bf16.msra.mxu0 0
    %1071 = vmatprep.subr.bf16.mxu0 0
    %1072 = vmatpush1.bf16.msra.mxu0 0
    %1073 = vmatprep.subr.bf16.mxu0 0
    %1074 = vmatpush1.bf16.msra.mxu0 0
    %1075 = vmatprep.subr.bf16.mxu0 0
    %1076 = vmatpush1.bf16.msra.mxu0 0
    %1077 = vmatprep.subr.bf16.mxu0 0
    %1078 = vmatpush1.bf16.msra.mxu0 0
    %1079 = vmatprep.subr.bf16.mxu0 0
    %1080 = vmatpush1.bf16.msra.mxu0 0
    %1081 = vmatprep.subr.bf16.mxu0 0
    %1082 = vmatpush1.bf16.msra.mxu0 0
    %1083 = vmatprep.subr.bf16.mxu0 0
    %1084 = vmatpush1.bf16.msra.mxu0 0
    %1085 = vmatprep.mubr.bf16.mxu0 0
    %1086 = vmatmul.mubr.bf16.gmra.mrb[0].mxu0 %v864
    %v1087 = vpop.f32.mrb[0].mxu0
    %v1088 = vadd.f32 0.0, %v1087
    %v1089 = vpop.f32.mrb[0].mxu0
    %v1090 = vpop.f32.mrb[0].mxu0
    %v1091 = vpop.f32.mrb[0].mxu0
    %1092 = vdwg.mxu0
    %v1093 = vadd.f32 %v1036, %v1088
    %v1094 = vxor.u32 %v1093, 2147483648
    %v1095 = vmul.f32 %v1094, 1.442695
    %v1096 = vpow.pop %v1095
    %v1097 = vadd.f32 %v1096, 1.0
    %v1098 = vrcp.pop %v1097
    %v1099 = vmul.f32 1.0, %v1098
    %v1100 = vmul.f32 %v976, %v844
    %v1101 = vmul.f32 %v912, %v1035
    %v1102 = vadd.f32 %v1100, %v1101
    %v1103 = vtanh.pop %v1102
    %v1104 = vmul.f32 %v1099, %v1103
    %1105 = vst.msk [vmem:[#allocation4] sm:$0x3] %vm306, %v1104
    %1106 = vst.msk [vmem:[#allocation5] sm:$0x3] %vm306, %v1102
    %s1107 = scalar_lea.vmem [#allocation3], 4
    %1108 = vst.msk [vmem:[%s1107] sm:$0x3] %vm306, %v1104
    %v1109 = vld [vmem:[#allocation4] sm:$0x3]
    %v1110 = vld [vmem:[#allocation5] sm:$0x3]
    %v1111 = vpack.c.bf16 %v1109, %v1109
    %v1112 = vld [vmem:[#allocation2 + $0x6] sm:$0x3]
    %v1113 = vld [vmem:[#allocation9] sm:$0xf]
    %v1114 = vld [vmem:[#allocation9 + $0x4] sm:$0xf]
    %v1115 = vld [vmem:[#allocation9 + $0x8] sm:$0xf]
    %v1116 = vld [vmem:[#allocation9 + $0xc] sm:$0xf]
    %v1121 = vunpack.c.l.b16 %v1113
    %v1122 = vunpack.c.l.b16 %v1114
    %v1123 = vunpack.c.l.b16 %v1115
    %v1124 = vunpack.c.l.b16 %v1116
    %v1125 = vpack.c.b16 %v1122, %v1121
    %v1126 = vpack.c.b16 %v1124, %v1123
    %v1130 = vsel %vm120, %v1111, 0
    %1132 = vmatprep.subr.bf16.mxu0 0
    %1133 = vmatpush1.bf16.msra.mxu0 %v1125
    %1134 = vmatprep.subr.bf16.mxu0 0
    %1135 = vmatpush1.bf16.msra.mxu0 %v1126
    %1136 = vmatprep.subr.bf16.mxu0 0
    %1137 = vmatpush1.bf16.msra.mxu0 0
    %1138 = vmatprep.subr.bf16.mxu0 0
    %1139 = vmatpush1.bf16.msra.mxu0 0
    %1140 = vmatprep.subr.bf16.mxu0 0
    %1141 = vmatpush1.bf16.msra.mxu0 0
    %1142 = vmatprep.subr.bf16.mxu0 0
    %1143 = vmatpush1.bf16.msra.mxu0 0
    %1144 = vmatprep.subr.bf16.mxu0 0
    %1145 = vmatpush1.bf16.msra.mxu0 0
    %1146 = vmatprep.subr.bf16.mxu0 0
    %1147 = vmatpush1.bf16.msra.mxu0 0
    %1148 = vmatprep.subr.bf16.mxu0 0
    %1149 = vmatpush1.bf16.msra.mxu0 0
    %1150 = vmatprep.subr.bf16.mxu0 0
    %1151 = vmatpush1.bf16.msra.mxu0 0
    %1152 = vmatprep.subr.bf16.mxu0 0
    %1153 = vmatpush1.bf16.msra.mxu0 0
    %1154 = vmatprep.subr.bf16.mxu0 0
    %1155 = vmatpush1.bf16.msra.mxu0 0
    %1156 = vmatprep.subr.bf16.mxu0 0
    %1157 = vmatpush1.bf16.msra.mxu0 0
    %1158 = vmatprep.subr.bf16.mxu0 0
    %1159 = vmatpush1.bf16.msra.mxu0 0
    %1160 = vmatprep.subr.bf16.mxu0 0
    %1161 = vmatpush1.bf16.msra.mxu0 0
    %1162 = vmatprep.subr.bf16.mxu0 0
    %1163 = vmatpush1.bf16.msra.mxu0 0
    %1164 = vmatprep.mubr.bf16.mxu0 0
    %1165 = vmatmul.mubr.bf16.gmra.mrb[0].mxu0 %v1130
    %v1166 = vpop.f32.mrb[0].mxu0
    %v1167 = vadd.f32 0.0, %v1166
    %v1168 = vpop.f32.mrb[0].mxu0
    %v1169 = vpop.f32.mrb[0].mxu0
    %v1170 = vpop.f32.mrb[0].mxu0
    %1171 = vdwg.mxu0
    %v1172 = vadd.f32 %v1112, %v1167
    %v1173 = vxor.u32 %v1172, 2147483648
    %v1174 = vmul.f32 %v1173, 1.442695
    %v1175 = vpow.pop %v1174
    %v1176 = vadd.f32 %v1175, 1.0
    %v1177 = vrcp.pop %v1176
    %v1178 = vmul.f32 1.0, %v1177
    %v1179 = vld [vmem:[%s181 + $0x6] sm:$0x3]
    %v1180 = vld [vmem:[%s380] sm:$0xf]
    %v1181 = vld [vmem:[%s380 + $0x4] sm:$0xf]
    %v1182 = vld [vmem:[%s380 + $0x8] sm:$0xf]
    %v1183 = vld [vmem:[%s380 + $0xc] sm:$0xf]
    %v1188 = vunpack.c.l.b16 %v1180
    %v1189 = vunpack.c.l.b16 %v1181
    %v1190 = vunpack.c.l.b16 %v1182
    %v1191 = vunpack.c.l.b16 %v1183
    %v1192 = vpack.c.b16 %v1189, %v1188
    %v1193 = vpack.c.b16 %v1191, %v1190
    %1196 = vmatprep.subr.bf16.mxu0 0
    %1197 = vmatpush1.bf16.msra.mxu0 %v1192
    %1198 = vmatprep.subr.bf16.mxu0 0
    %1199 = vmatpush1.bf16.msra.mxu0 %v1193
    %1200 = vmatprep.subr.bf16.mxu0 0
    %1201 = vmatpush1.bf16.msra.mxu0 0
    %1202 = vmatprep.subr.bf16.mxu0 0
    %1203 = vmatpush1.bf16.msra.mxu0 0
    %1204 = vmatprep.subr.bf16.mxu0 0
    %1205 = vmatpush1.bf16.msra.mxu0 0
    %1206 = vmatprep.subr.bf16.mxu0 0
    %1207 = vmatpush1.bf16.msra.mxu0 0
    %1208 = vmatprep.subr.bf16.mxu0 0
    %1209 = vmatpush1.bf16.msra.mxu0 0
    %1210 = vmatprep.subr.bf16.mxu0 0
    %1211 = vmatpush1.bf16.msra.mxu0 0
    %1212 = vmatprep.subr.bf16.mxu0 0
    %1213 = vmatpush1.bf16.msra.mxu0 0
    %1214 = vmatprep.subr.bf16.mxu0 0
    %1215 = vmatpush1.bf16.msra.mxu0 0
    %1216 = vmatprep.subr.bf16.mxu0 0
    %1217 = vmatpush1.bf16.msra.mxu0 0
    %1218 = vmatprep.subr.bf16.mxu0 0
    %1219 = vmatpush1.bf16.msra.mxu0 0
    %1220 = vmatprep.subr.bf16.mxu0 0
    %1221 = vmatpush1.bf16.msra.mxu0 0
    %1222 = vmatprep.subr.bf16.mxu0 0
    %1223 = vmatpush1.bf16.msra.mxu0 0
    %1224 = vmatprep.subr.bf16.mxu0 0
    %1225 = vmatpush1.bf16.msra.mxu0 0
    %1226 = vmatprep.subr.bf16.mxu0 0
    %1227 = vmatpush1.bf16.msra.mxu0 0
    %1228 = vmatprep.mubr.bf16.mxu0 0
    %1229 = vmatmul.mubr.bf16.gmra.mrb[0].mxu0 %v1130
    %v1230 = vpop.f32.mrb[0].mxu0
    %v1231 = vadd.f32 0.0, %v1230
    %v1232 = vpop.f32.mrb[0].mxu0
    %v1233 = vpop.f32.mrb[0].mxu0
    %v1234 = vpop.f32.mrb[0].mxu0
    %1235 = vdwg.mxu0
    %v1236 = vadd.f32 %v1179, %v1231
    %v1237 = vxor.u32 %v1236, 2147483648
    %v1238 = vmul.f32 %v1237, 1.442695
    %v1239 = vpow.pop %v1238
    %v1240 = vadd.f32 %v1239, 1.0
    %v1241 = vrcp.pop %v1240
    %v1242 = vmul.f32 1.0, %v1241
    %v1243 = vld [vmem:[%s242 + $0x6] sm:$0x3]
    %v1244 = vld [vmem:[%s445] sm:$0xf]
    %v1245 = vld [vmem:[%s445 + $0x4] sm:$0xf]
    %v1246 = vld [vmem:[%s445 + $0x8] sm:$0xf]
    %v1247 = vld [vmem:[%s445 + $0xc] sm:$0xf]
    %v1252 = vunpack.c.l.b16 %v1244
    %v1253 = vunpack.c.l.b16 %v1245
    %v1254 = vunpack.c.l.b16 %v1246
    %v1255 = vunpack.c.l.b16 %v1247
    %v1256 = vpack.c.b16 %v1253, %v1252
    %v1257 = vpack.c.b16 %v1255, %v1254
    %1260 = vmatprep.subr.bf16.mxu0 0
    %1261 = vmatpush1.bf16.msra.mxu0 %v1256
    %1262 = vmatprep.subr.bf16.mxu0 0
    %1263 = vmatpush1.bf16.msra.mxu0 %v1257
    %1264 = vmatprep.subr.bf16.mxu0 0
    %1265 = vmatpush1.bf16.msra.mxu0 0
    %1266 = vmatprep.subr.bf16.mxu0 0
    %1267 = vmatpush1.bf16.msra.mxu0 0
    %1268 = vmatprep.subr.bf16.mxu0 0
    %1269 = vmatpush1.bf16.msra.mxu0 0
    %1270 = vmatprep.subr.bf16.mxu0 0
    %1271 = vmatpush1.bf16.msra.mxu0 0
    %1272 = vmatprep.subr.bf16.mxu0 0
    %1273 = vmatpush1.bf16.msra.mxu0 0
    %1274 = vmatprep.subr.bf16.mxu0 0
    %1275 = vmatpush1.bf16.msra.mxu0 0
    %1276 = vmatprep.subr.bf16.mxu0 0
    %1277 = vmatpush1.bf16.msra.mxu0 0
    %1278 = vmatprep.subr.bf16.mxu0 0
    %1279 = vmatpush1.bf16.msra.mxu0 0
    %1280 = vmatprep.subr.bf16.mxu0 0
    %1281 = vmatpush1.bf16.msra.mxu0 0
    %1282 = vmatprep.subr.bf16.mxu0 0
    %1283 = vmatpush1.bf16.msra.mxu0 0
    %1284 = vmatprep.subr.bf16.mxu0 0
    %1285 = vmatpush1.bf16.msra.mxu0 0
    %1286 = vmatprep.subr.bf16.mxu0 0
    %1287 = vmatpush1.bf16.msra.mxu0 0
    %1288 = vmatprep.subr.bf16.mxu0 0
    %1289 = vmatpush1.bf16.msra.mxu0 0
    %1290 = vmatprep.subr.bf16.mxu0 0
    %1291 = vmatpush1.bf16.msra.mxu0 0
    %1292 = vmatprep.mubr.bf16.mxu0 0
    %1293 = vmatmul.mubr.bf16.gmra.mrb[0].mxu0 %v1130
    %v1294 = vpop.f32.mrb[0].mxu0
    %v1295 = vadd.f32 0.0, %v1294
    %v1296 = vpop.f32.mrb[0].mxu0
    %v1297 = vpop.f32.mrb[0].mxu0
    %v1298 = vpop.f32.mrb[0].mxu0
    %1299 = vdwg.mxu0
    %v1300 = vadd.f32 %v1243, %v1295
    %v1301 = vtanh.pop %v1300
    %v1302 = vld [vmem:[%s303 + $0x6] sm:$0x3]
    %v1303 = vld [vmem:[%s505] sm:$0xf]
    %v1304 = vld [vmem:[%s505 + $0x4] sm:$0xf]
    %v1305 = vld [vmem:[%s505 + $0x8] sm:$0xf]
    %v1306 = vld [vmem:[%s505 + $0xc] sm:$0xf]
    %v1311 = vunpack.c.l.b16 %v1303
    %v1312 = vunpack.c.l.b16 %v1304
    %v1313 = vunpack.c.l.b16 %v1305
    %v1314 = vunpack.c.l.b16 %v1306
    %v1315 = vpack.c.b16 %v1312, %v1311
    %v1316 = vpack.c.b16 %v1314, %v1313
    %1319 = vmatprep.subr.bf16.mxu0 0
    %1320 = vmatpush1.bf16.msra.mxu0 %v1315
    %1321 = vmatprep.subr.bf16.mxu0 0
    %1322 = vmatpush1.bf16.msra.mxu0 %v1316
    %1323 = vmatprep.subr.bf16.mxu0 0
    %1324 = vmatpush1.bf16.msra.mxu0 0
    %1325 = vmatprep.subr.bf16.mxu0 0
    %1326 = vmatpush1.bf16.msra.mxu0 0
    %1327 = vmatprep.subr.bf16.mxu0 0
    %1328 = vmatpush1.bf16.msra.mxu0 0
    %1329 = vmatprep.subr.bf16.mxu0 0
    %1330 = vmatpush1.bf16.msra.mxu0 0
    %1331 = vmatprep.subr.bf16.mxu0 0
    %1332 = vmatpush1.bf16.msra.mxu0 0
    %1333 = vmatprep.subr.bf16.mxu0 0
    %1334 = vmatpush1.bf16.msra.mxu0 0
    %1335 = vmatprep.subr.bf16.mxu0 0
    %1336 = vmatpush1.bf16.msra.mxu0 0
    %1337 = vmatprep.subr.bf16.mxu0 0
    %1338 = vmatpush1.bf16.msra.mxu0 0
    %1339 = vmatprep.subr.bf16.mxu0 0
    %1340 = vmatpush1.bf16.msra.mxu0 0
    %1341 = vmatprep.subr.bf16.mxu0 0
    %1342 = vmatpush1.bf16.msra.mxu0 0
    %1343 = vmatprep.subr.bf16.mxu0 0
    %1344 = vmatpush1.bf16.msra.mxu0 0
    %1345 = vmatprep.subr.bf16.mxu0 0
    %1346 = vmatpush1.bf16.msra.mxu0 0
    %1347 = vmatprep.subr.bf16.mxu0 0
    %1348 = vmatpush1.bf16.msra.mxu0 0
    %1349 = vmatprep.subr.bf16.mxu0 0
    %1350 = vmatpush1.bf16.msra.mxu0 0
    %1351 = vmatprep.mubr.bf16.mxu0 0
    %1352 = vmatmul.mubr.bf16.gmra.mrb[0].mxu0 %v1130
    %v1353 = vpop.f32.mrb[0].mxu0
    %v1354 = vadd.f32 0.0, %v1353
    %v1355 = vpop.f32.mrb[0].mxu0
    %v1356 = vpop.f32.mrb[0].mxu0
    %v1357 = vpop.f32.mrb[0].mxu0
    %1358 = vdwg.mxu0
    %v1359 = vadd.f32 %v1302, %v1354
    %v1360 = vxor.u32 %v1359, 2147483648
    %v1361 = vmul.f32 %v1360, 1.442695
    %v1362 = vpow.pop %v1361
    %v1363 = vadd.f32 %v1362, 1.0
    %v1364 = vrcp.pop %v1363
    %v1365 = vmul.f32 1.0, %v1364
    %v1366 = vmul.f32 %v1242, %v1110
    %v1367 = vmul.f32 %v1178, %v1301
    %v1368 = vadd.f32 %v1366, %v1367
    %v1369 = vtanh.pop %v1368
    %v1370 = vmul.f32 %v1365, %v1369
    %1371 = vst.msk [vmem:[#allocation4] sm:$0x3] %vm306, %v1370
    %1372 = vst.msk [vmem:[#allocation5] sm:$0x3] %vm306, %v1368
    %s1373 = scalar_lea.vmem [#allocation3], 6
    %1374 = vst.msk [vmem:[%s1373] sm:$0x3] %vm306, %v1370
    %v1375 = vld [vmem:[#allocation4] sm:$0x3]
    %v1376 = vld [vmem:[#allocation5] sm:$0x3]
    %v1377 = vpack.c.bf16 %v1375, %v1375
    %v1378 = vld [vmem:[#allocation2 + $0x8] sm:$0x3]
    %v1379 = vld [vmem:[#allocation9] sm:$0xf]
    %v1380 = vld [vmem:[#allocation9 + $0x4] sm:$0xf]
    %v1381 = vld [vmem:[#allocation9 + $0x8] sm:$0xf]
    %v1382 = vld [vmem:[#allocation9 + $0xc] sm:$0xf]
    %v1387 = vunpack.c.l.b16 %v1379
    %v1388 = vunpack.c.l.b16 %v1380
    %v1389 = vunpack.c.l.b16 %v1381
    %v1390 = vunpack.c.l.b16 %v1382
    %v1391 = vpack.c.b16 %v1388, %v1387
    %v1392 = vpack.c.b16 %v1390, %v1389
    %v1396 = vsel %vm120, %v1377, 0
    %1398 = vmatprep.subr.bf16.mxu0 0
    %1399 = vmatpush1.bf16.msra.mxu0 %v1391
    %1400 = vmatprep.subr.bf16.mxu0 0
    %1401 = vmatpush1.bf16.msra.mxu0 %v1392
    %1402 = vmatprep.subr.bf16.mxu0 0
    %1403 = vmatpush1.bf16.msra.mxu0 0
    %1404 = vmatprep.subr.bf16.mxu0 0
    %1405 = vmatpush1.bf16.msra.mxu0 0
    %1406 = vmatprep.subr.bf16.mxu0 0
    %1407 = vmatpush1.bf16.msra.mxu0 0
    %1408 = vmatprep.subr.bf16.mxu0 0
    %1409 = vmatpush1.bf16.msra.mxu0 0
    %1410 = vmatprep.subr.bf16.mxu0 0
    %1411 = vmatpush1.bf16.msra.mxu0 0
    %1412 = vmatprep.subr.bf16.mxu0 0
    %1413 = vmatpush1.bf16.msra.mxu0 0
    %1414 = vmatprep.subr.bf16.mxu0 0
    %1415 = vmatpush1.bf16.msra.mxu0 0
    %1416 = vmatprep.subr.bf16.mxu0 0
    %1417 = vmatpush1.bf16.msra.mxu0 0
    %1418 = vmatprep.subr.bf16.mxu0 0
    %1419 = vmatpush1.bf16.msra.mxu0 0
    %1420 = vmatprep.subr.bf16.mxu0 0
    %1421 = vmatpush1.bf16.msra.mxu0 0
    %1422 = vmatprep.subr.bf16.mxu0 0
    %1423 = vmatpush1.bf16.msra.mxu0 0
    %1424 = vmatprep.subr.bf16.mxu0 0
    %1425 = vmatpush1.bf16.msra.mxu0 0
    %1426 = vmatprep.subr.bf16.mxu0 0
    %1427 = vmatpush1.bf16.msra.mxu0 0
    %1428 = vmatprep.subr.bf16.mxu0 0
    %1429 = vmatpush1.bf16.msra.mxu0 0
    %1430 = vmatprep.mubr.bf16.mxu0 0
    %1431 = vmatmul.mubr.bf16.gmra.mrb[0].mxu0 %v1396
    %v1432 = vpop.f32.mrb[0].mxu0
    %v1433 = vadd.f32 0.0, %v1432
    %v1434 = vpop.f32.mrb[0].mxu0
    %v1435 = vpop.f32.mrb[0].mxu0
    %v1436 = vpop.f32.mrb[0].mxu0
    %1437 = vdwg.mxu0
    %v1438 = vadd.f32 %v1378, %v1433
    %v1439 = vxor.u32 %v1438, 2147483648
    %v1440 = vmul.f32 %v1439, 1.442695
    %v1441 = vpow.pop %v1440
    %v1442 = vadd.f32 %v1441, 1.0
    %v1443 = vrcp.pop %v1442
    %v1444 = vmul.f32 1.0, %v1443
    %v1445 = vld [vmem:[%s181 + $0x8] sm:$0x3]
    %v1446 = vld [vmem:[%s380] sm:$0xf]
    %v1447 = vld [vmem:[%s380 + $0x4] sm:$0xf]
    %v1448 = vld [vmem:[%s380 + $0x8] sm:$0xf]
    %v1449 = vld [vmem:[%s380 + $0xc] sm:$0xf]
    %v1454 = vunpack.c.l.b16 %v1446
    %v1455 = vunpack.c.l.b16 %v1447
    %v1456 = vunpack.c.l.b16 %v1448
    %v1457 = vunpack.c.l.b16 %v1449
    %v1458 = vpack.c.b16 %v1455, %v1454
    %v1459 = vpack.c.b16 %v1457, %v1456
    %1462 = vmatprep.subr.bf16.mxu0 0
    %1463 = vmatpush1.bf16.msra.mxu0 %v1458
    %1464 = vmatprep.subr.bf16.mxu0 0
    %1465 = vmatpush1.bf16.msra.mxu0 %v1459
    %1466 = vmatprep.subr.bf16.mxu0 0
    %1467 = vmatpush1.bf16.msra.mxu0 0
    %1468 = vmatprep.subr.bf16.mxu0 0
    %1469 = vmatpush1.bf16.msra.mxu0 0
    %1470 = vmatprep.subr.bf16.mxu0 0
    %1471 = vmatpush1.bf16.msra.mxu0 0
    %1472 = vmatprep.subr.bf16.mxu0 0
    %1473 = vmatpush1.bf16.msra.mxu0 0
    %1474 = vmatprep.subr.bf16.mxu0 0
    %1475 = vmatpush1.bf16.msra.mxu0 0
    %1476 = vmatprep.subr.bf16.mxu0 0
    %1477 = vmatpush1.bf16.msra.mxu0 0
    %1478 = vmatprep.subr.bf16.mxu0 0
    %1479 = vmatpush1.bf16.msra.mxu0 0
    %1480 = vmatprep.subr.bf16.mxu0 0
    %1481 = vmatpush1.bf16.msra.mxu0 0
    %1482 = vmatprep.subr.bf16.mxu0 0
    %1483 = vmatpush1.bf16.msra.mxu0 0
    %1484 = vmatprep.subr.bf16.mxu0 0
    %1485 = vmatpush1.bf16.msra.mxu0 0
    %1486 = vmatprep.subr.bf16.mxu0 0
    %1487 = vmatpush1.bf16.msra.mxu0 0
    %1488 = vmatprep.subr.bf16.mxu0 0
    %1489 = vmatpush1.bf16.msra.mxu0 0
    %1490 = vmatprep.subr.bf16.mxu0 0
    %1491 = vmatpush1.bf16.msra.mxu0 0
    %1492 = vmatprep.subr.bf16.mxu0 0
    %1493 = vmatpush1.bf16.msra.mxu0 0
    %1494 = vmatprep.mubr.bf16.mxu0 0
    %1495 = vmatmul.mubr.bf16.gmra.mrb[0].mxu0 %v1396
    %v1496 = vpop.f32.mrb[0].mxu0
    %v1497 = vadd.f32 0.0, %v1496
    %v1498 = vpop.f32.mrb[0].mxu0
    %v1499 = vpop.f32.mrb[0].mxu0
    %v1500 = vpop.f32.mrb[0].mxu0
    %1501 = vdwg.mxu0
    %v1502 = vadd.f32 %v1445, %v1497
    %v1503 = vxor.u32 %v1502, 2147483648
    %v1504 = vmul.f32 %v1503, 1.442695
    %v1505 = vpow.pop %v1504
    %v1506 = vadd.f32 %v1505, 1.0
    %v1507 = vrcp.pop %v1506
    %v1508 = vmul.f32 1.0, %v1507
    %v1509 = vld [vmem:[%s242 + $0x8] sm:$0x3]
    %v1510 = vld [vmem:[%s445] sm:$0xf]
    %v1511 = vld [vmem:[%s445 + $0x4] sm:$0xf]
    %v1512 = vld [vmem:[%s445 + $0x8] sm:$0xf]
    %v1513 = vld [vmem:[%s445 + $0xc] sm:$0xf]
    %v1518 = vunpack.c.l.b16 %v1510
    %v1519 = vunpack.c.l.b16 %v1511
    %v1520 = vunpack.c.l.b16 %v1512
    %v1521 = vunpack.c.l.b16 %v1513
    %v1522 = vpack.c.b16 %v1519, %v1518
    %v1523 = vpack.c.b16 %v1521, %v1520
    %1526 = vmatprep.subr.bf16.mxu0 0
    %1527 = vmatpush1.bf16.msra.mxu0 %v1522
    %1528 = vmatprep.subr.bf16.mxu0 0
    %1529 = vmatpush1.bf16.msra.mxu0 %v1523
    %1530 = vmatprep.subr.bf16.mxu0 0
    %1531 = vmatpush1.bf16.msra.mxu0 0
    %1532 = vmatprep.subr.bf16.mxu0 0
    %1533 = vmatpush1.bf16.msra.mxu0 0
    %1534 = vmatprep.subr.bf16.mxu0 0
    %1535 = vmatpush1.bf16.msra.mxu0 0
    %1536 = vmatprep.subr.bf16.mxu0 0
    %1537 = vmatpush1.bf16.msra.mxu0 0
    %1538 = vmatprep.subr.bf16.mxu0 0
    %1539 = vmatpush1.bf16.msra.mxu0 0
    %1540 = vmatprep.subr.bf16.mxu0 0
    %1541 = vmatpush1.bf16.msra.mxu0 0
    %1542 = vmatprep.subr.bf16.mxu0 0
    %1543 = vmatpush1.bf16.msra.mxu0 0
    %1544 = vmatprep.subr.bf16.mxu0 0
    %1545 = vmatpush1.bf16.msra.mxu0 0
    %1546 = vmatprep.subr.bf16.mxu0 0
    %1547 = vmatpush1.bf16.msra.mxu0 0
    %1548 = vmatprep.subr.bf16.mxu0 0
    %1549 = vmatpush1.bf16.msra.mxu0 0
    %1550 = vmatprep.subr.bf16.mxu0 0
    %1551 = vmatpush1.bf16.msra.mxu0 0
    %1552 = vmatprep.subr.bf16.mxu0 0
    %1553 = vmatpush1.bf16.msra.mxu0 0
    %1554 = vmatprep.subr.bf16.mxu0 0
    %1555 = vmatpush1.bf16.msra.mxu0 0
    %1556 = vmatprep.subr.bf16.mxu0 0
    %1557 = vmatpush1.bf16.msra.mxu0 0
    %1558 = vmatprep.mubr.bf16.mxu0 0
    %1559 = vmatmul.mubr.bf16.gmra.mrb[0].mxu0 %v1396
    %v1560 = vpop.f32.mrb[0].mxu0
    %v1561 = vadd.f32 0.0, %v1560
    %v1562 = vpop.f32.mrb[0].mxu0
    %v1563 = vpop.f32.mrb[0].mxu0
    %v1564 = vpop.f32.mrb[0].mxu0
    %1565 = vdwg.mxu0
    %v1566 = vadd.f32 %v1509, %v1561
    %v1567 = vtanh.pop %v1566
    %v1568 = vld [vmem:[%s303 + $0x8] sm:$0x3]
    %v1569 = vld [vmem:[%s505] sm:$0xf]
    %v1570 = vld [vmem:[%s505 + $0x4] sm:$0xf]
    %v1571 = vld [vmem:[%s505 + $0x8] sm:$0xf]
    %v1572 = vld [vmem:[%s505 + $0xc] sm:$0xf]
    %v1577 = vunpack.c.l.b16 %v1569
    %v1578 = vunpack.c.l.b16 %v1570
    %v1579 = vunpack.c.l.b16 %v1571
    %v1580 = vunpack.c.l.b16 %v1572
    %v1581 = vpack.c.b16 %v1578, %v1577
    %v1582 = vpack.c.b16 %v1580, %v1579
    %1585 = vmatprep.subr.bf16.mxu0 0
    %1586 = vmatpush1.bf16.msra.mxu0 %v1581
    %1587 = vmatprep.subr.bf16.mxu0 0
    %1588 = vmatpush1.bf16.msra.mxu0 %v1582
    %1589 = vmatprep.subr.bf16.mxu0 0
    %1590 = vmatpush1.bf16.msra.mxu0 0
    %1591 = vmatprep.subr.bf16.mxu0 0
    %1592 = vmatpush1.bf16.msra.mxu0 0
    %1593 = vmatprep.subr.bf16.mxu0 0
    %1594 = vmatpush1.bf16.msra.mxu0 0
    %1595 = vmatprep.subr.bf16.mxu0 0
    %1596 = vmatpush1.bf16.msra.mxu0 0
    %1597 = vmatprep.subr.bf16.mxu0 0
    %1598 = vmatpush1.bf16.msra.mxu0 0
    %1599 = vmatprep.subr.bf16.mxu0 0
    %1600 = vmatpush1.bf16.msra.mxu0 0
    %1601 = vmatprep.subr.bf16.mxu0 0
    %1602 = vmatpush1.bf16.msra.mxu0 0
    %1603 = vmatprep.subr.bf16.mxu0 0
    %1604 = vmatpush1.bf16.msra.mxu0 0
    %1605 = vmatprep.subr.bf16.mxu0 0
    %1606 = vmatpush1.bf16.msra.mxu0 0
    %1607 = vmatprep.subr.bf16.mxu0 0
    %1608 = vmatpush1.bf16.msra.mxu0 0
    %1609 = vmatprep.subr.bf16.mxu0 0
    %1610 = vmatpush1.bf16.msra.mxu0 0
    %1611 = vmatprep.subr.bf16.mxu0 0
    %1612 = vmatpush1.bf16.msra.mxu0 0
    %1613 = vmatprep.subr.bf16.mxu0 0
    %1614 = vmatpush1.bf16.msra.mxu0 0
    %1615 = vmatprep.subr.bf16.mxu0 0
    %1616 = vmatpush1.bf16.msra.mxu0 0
    %1617 = vmatprep.mubr.bf16.mxu0 0
    %1618 = vmatmul.mubr.bf16.gmra.mrb[0].mxu0 %v1396
    %v1619 = vpop.f32.mrb[0].mxu0
    %v1620 = vadd.f32 0.0, %v1619
    %v1621 = vpop.f32.mrb[0].mxu0
    %v1622 = vpop.f32.mrb[0].mxu0
    %v1623 = vpop.f32.mrb[0].mxu0
    %1624 = vdwg.mxu0
    %v1625 = vadd.f32 %v1568, %v1620
    %v1626 = vxor.u32 %v1625, 2147483648
    %v1627 = vmul.f32 %v1626, 1.442695
    %v1628 = vpow.pop %v1627
    %v1629 = vadd.f32 %v1628, 1.0
    %v1630 = vrcp.pop %v1629
    %v1631 = vmul.f32 1.0, %v1630
    %v1632 = vmul.f32 %v1508, %v1376
    %v1633 = vmul.f32 %v1444, %v1567
    %v1634 = vadd.f32 %v1632, %v1633
    %v1635 = vtanh.pop %v1634
    %v1636 = vmul.f32 %v1631, %v1635
    %1637 = vst.msk [vmem:[#allocation4] sm:$0x3] %vm306, %v1636
    %1638 = vst.msk [vmem:[#allocation5] sm:$0x3] %vm306, %v1634
    %s1639 = scalar_lea.vmem [#allocation3], 8
    %1640 = vst.msk [vmem:[%s1639] sm:$0x3] %vm306, %v1636
    %v1641 = vld [vmem:[#allocation4] sm:$0x3]
    %v1642 = vld [vmem:[#allocation5] sm:$0x3]
    %v1643 = vpack.c.bf16 %v1641, %v1641
    %v1644 = vld [vmem:[#allocation2 + $0xa] sm:$0x3]
    %v1645 = vld [vmem:[#allocation9] sm:$0xf]
    %v1646 = vld [vmem:[#allocation9 + $0x4] sm:$0xf]
    %v1647 = vld [vmem:[#allocation9 + $0x8] sm:$0xf]
    %v1648 = vld [vmem:[#allocation9 + $0xc] sm:$0xf]
    %v1653 = vunpack.c.l.b16 %v1645
    %v1654 = vunpack.c.l.b16 %v1646
    %v1655 = vunpack.c.l.b16 %v1647
    %v1656 = vunpack.c.l.b16 %v1648
    %v1657 = vpack.c.b16 %v1654, %v1653
    %v1658 = vpack.c.b16 %v1656, %v1655
    %v1662 = vsel %vm120, %v1643, 0
    %1664 = vmatprep.subr.bf16.mxu0 0
    %1665 = vmatpush1.bf16.msra.mxu0 %v1657
    %1666 = vmatprep.subr.bf16.mxu0 0
    %1667 = vmatpush1.bf16.msra.mxu0 %v1658
    %1668 = vmatprep.subr.bf16.mxu0 0
    %1669 = vmatpush1.bf16.msra.mxu0 0
    %1670 = vmatprep.subr.bf16.mxu0 0
    %1671 = vmatpush1.bf16.msra.mxu0 0
    %1672 = vmatprep.subr.bf16.mxu0 0
    %1673 = vmatpush1.bf16.msra.mxu0 0
    %1674 = vmatprep.subr.bf16.mxu0 0
    %1675 = vmatpush1.bf16.msra.mxu0 0
    %1676 = vmatprep.subr.bf16.mxu0 0
    %1677 = vmatpush1.bf16.msra.mxu0 0
    %1678 = vmatprep.subr.bf16.mxu0 0
    %1679 = vmatpush1.bf16.msra.mxu0 0
    %1680 = vmatprep.subr.bf16.mxu0 0
    %1681 = vmatpush1.bf16.msra.mxu0 0
    %1682 = vmatprep.subr.bf16.mxu0 0
    %1683 = vmatpush1.bf16.msra.mxu0 0
    %1684 = vmatprep.subr.bf16.mxu0 0
    %1685 = vmatpush1.bf16.msra.mxu0 0
    %1686 = vmatprep.subr.bf16.mxu0 0
    %1687 = vmatpush1.bf16.msra.mxu0 0
    %1688 = vmatprep.subr.bf16.mxu0 0
    %1689 = vmatpush1.bf16.msra.mxu0 0
    %1690 = vmatprep.subr.bf16.mxu0 0
    %1691 = vmatpush1.bf16.msra.mxu0 0
    %1692 = vmatprep.subr.bf16.mxu0 0
    %1693 = vmatpush1.bf16.msra.mxu0 0
    %1694 = vmatprep.subr.bf16.mxu0 0
    %1695 = vmatpush1.bf16.msra.mxu0 0
    %1696 = vmatprep.mubr.bf16.mxu0 0
    %1697 = vmatmul.mubr.bf16.gmra.mrb[0].mxu0 %v1662
    %v1698 = vpop.f32.mrb[0].mxu0
    %v1699 = vadd.f32 0.0, %v1698
    %v1700 = vpop.f32.mrb[0].mxu0
    %v1701 = vpop.f32.mrb[0].mxu0
    %v1702 = vpop.f32.mrb[0].mxu0
    %1703 = vdwg.mxu0
    %v1704 = vadd.f32 %v1644, %v1699
    %v1705 = vxor.u32 %v1704, 2147483648
    %v1706 = vmul.f32 %v1705, 1.442695
    %v1707 = vpow.pop %v1706
    %v1708 = vadd.f32 %v1707, 1.0
    %v1709 = vrcp.pop %v1708
    %v1710 = vmul.f32 1.0, %v1709
    %v1711 = vld [vmem:[%s181 + $0xa] sm:$0x3]
    %v1712 = vld [vmem:[%s380] sm:$0xf]
    %v1713 = vld [vmem:[%s380 + $0x4] sm:$0xf]
    %v1714 = vld [vmem:[%s380 + $0x8] sm:$0xf]
    %v1715 = vld [vmem:[%s380 + $0xc] sm:$0xf]
    %v1720 = vunpack.c.l.b16 %v1712
    %v1721 = vunpack.c.l.b16 %v1713
    %v1722 = vunpack.c.l.b16 %v1714
    %v1723 = vunpack.c.l.b16 %v1715
    %v1724 = vpack.c.b16 %v1721, %v1720
    %v1725 = vpack.c.b16 %v1723, %v1722
    %1728 = vmatprep.subr.bf16.mxu0 0
    %1729 = vmatpush1.bf16.msra.mxu0 %v1724
    %1730 = vmatprep.subr.bf16.mxu0 0
    %1731 = vmatpush1.bf16.msra.mxu0 %v1725
    %1732 = vmatprep.subr.bf16.mxu0 0
    %1733 = vmatpush1.bf16.msra.mxu0 0
    %1734 = vmatprep.subr.bf16.mxu0 0
    %1735 = vmatpush1.bf16.msra.mxu0 0
    %1736 = vmatprep.subr.bf16.mxu0 0
    %1737 = vmatpush1.bf16.msra.mxu0 0
    %1738 = vmatprep.subr.bf16.mxu0 0
    %1739 = vmatpush1.bf16.msra.mxu0 0
    %1740 = vmatprep.subr.bf16.mxu0 0
    %1741 = vmatpush1.bf16.msra.mxu0 0
    %1742 = vmatprep.subr.bf16.mxu0 0
    %1743 = vmatpush1.bf16.msra.mxu0 0
    %1744 = vmatprep.subr.bf16.mxu0 0
    %1745 = vmatpush1.bf16.msra.mxu0 0
    %1746 = vmatprep.subr.bf16.mxu0 0
    %1747 = vmatpush1.bf16.msra.mxu0 0
    %1748 = vmatprep.subr.bf16.mxu0 0
    %1749 = vmatpush1.bf16.msra.mxu0 0
    %1750 = vmatprep.subr.bf16.mxu0 0
    %1751 = vmatpush1.bf16.msra.mxu0 0
    %1752 = vmatprep.subr.bf16.mxu0 0
    %1753 = vmatpush1.bf16.msra.mxu0 0
    %1754 = vmatprep.subr.bf16.mxu0 0
    %1755 = vmatpush1.bf16.msra.mxu0 0
    %1756 = vmatprep.subr.bf16.mxu0 0
    %1757 = vmatpush1.bf16.msra.mxu0 0
    %1758 = vmatprep.subr.bf16.mxu0 0
    %1759 = vmatpush1.bf16.msra.mxu0 0
    %1760 = vmatprep.mubr.bf16.mxu0 0
    %1761 = vmatmul.mubr.bf16.gmra.mrb[0].mxu0 %v1662
    %v1762 = vpop.f32.mrb[0].mxu0
    %v1763 = vadd.f32 0.0, %v1762
    %v1764 = vpop.f32.mrb[0].mxu0
    %v1765 = vpop.f32.mrb[0].mxu0
    %v1766 = vpop.f32.mrb[0].mxu0
    %1767 = vdwg.mxu0
    %v1768 = vadd.f32 %v1711, %v1763
    %v1769 = vxor.u32 %v1768, 2147483648
    %v1770 = vmul.f32 %v1769, 1.442695
    %v1771 = vpow.pop %v1770
    %v1772 = vadd.f32 %v1771, 1.0
    %v1773 = vrcp.pop %v1772
    %v1774 = vmul.f32 1.0, %v1773
    %v1775 = vld [vmem:[%s242 + $0xa] sm:$0x3]
    %v1776 = vld [vmem:[%s445] sm:$0xf]
    %v1777 = vld [vmem:[%s445 + $0x4] sm:$0xf]
    %v1778 = vld [vmem:[%s445 + $0x8] sm:$0xf]
    %v1779 = vld [vmem:[%s445 + $0xc] sm:$0xf]
    %v1784 = vunpack.c.l.b16 %v1776
    %v1785 = vunpack.c.l.b16 %v1777
    %v1786 = vunpack.c.l.b16 %v1778
    %v1787 = vunpack.c.l.b16 %v1779
    %v1788 = vpack.c.b16 %v1785, %v1784
    %v1789 = vpack.c.b16 %v1787, %v1786
    %1792 = vmatprep.subr.bf16.mxu0 0
    %1793 = vmatpush1.bf16.msra.mxu0 %v1788
    %1794 = vmatprep.subr.bf16.mxu0 0
    %1795 = vmatpush1.bf16.msra.mxu0 %v1789
    %1796 = vmatprep.subr.bf16.mxu0 0
    %1797 = vmatpush1.bf16.msra.mxu0 0
    %1798 = vmatprep.subr.bf16.mxu0 0
    %1799 = vmatpush1.bf16.msra.mxu0 0
    %1800 = vmatprep.subr.bf16.mxu0 0
    %1801 = vmatpush1.bf16.msra.mxu0 0
    %1802 = vmatprep.subr.bf16.mxu0 0
    %1803 = vmatpush1.bf16.msra.mxu0 0
    %1804 = vmatprep.subr.bf16.mxu0 0
    %1805 = vmatpush1.bf16.msra.mxu0 0
    %1806 = vmatprep.subr.bf16.mxu0 0
    %1807 = vmatpush1.bf16.msra.mxu0 0
    %1808 = vmatprep.subr.bf16.mxu0 0
    %1809 = vmatpush1.bf16.msra.mxu0 0
    %1810 = vmatprep.subr.bf16.mxu0 0
    %1811 = vmatpush1.bf16.msra.mxu0 0
    %1812 = vmatprep.subr.bf16.mxu0 0
    %1813 = vmatpush1.bf16.msra.mxu0 0
    %1814 = vmatprep.subr.bf16.mxu0 0
    %1815 = vmatpush1.bf16.msra.mxu0 0
    %1816 = vmatprep.subr.bf16.mxu0 0
    %1817 = vmatpush1.bf16.msra.mxu0 0
    %1818 = vmatprep.subr.bf16.mxu0 0
    %1819 = vmatpush1.bf16.msra.mxu0 0
    %1820 = vmatprep.subr.bf16.mxu0 0
    %1821 = vmatpush1.bf16.msra.mxu0 0
    %1822 = vmatprep.subr.bf16.mxu0 0
    %1823 = vmatpush1.bf16.msra.mxu0 0
    %1824 = vmatprep.mubr.bf16.mxu0 0
    %1825 = vmatmul.mubr.bf16.gmra.mrb[0].mxu0 %v1662
    %v1826 = vpop.f32.mrb[0].mxu0
    %v1827 = vadd.f32 0.0, %v1826
    %v1828 = vpop.f32.mrb[0].mxu0
    %v1829 = vpop.f32.mrb[0].mxu0
    %v1830 = vpop.f32.mrb[0].mxu0
    %1831 = vdwg.mxu0
    %v1832 = vadd.f32 %v1775, %v1827
    %v1833 = vtanh.pop %v1832
    %v1834 = vld [vmem:[%s303 + $0xa] sm:$0x3]
    %v1835 = vld [vmem:[%s505] sm:$0xf]
    %v1836 = vld [vmem:[%s505 + $0x4] sm:$0xf]
    %v1837 = vld [vmem:[%s505 + $0x8] sm:$0xf]
    %v1838 = vld [vmem:[%s505 + $0xc] sm:$0xf]
    %v1843 = vunpack.c.l.b16 %v1835
    %v1844 = vunpack.c.l.b16 %v1836
    %v1845 = vunpack.c.l.b16 %v1837
    %v1846 = vunpack.c.l.b16 %v1838
    %v1847 = vpack.c.b16 %v1844, %v1843
    %v1848 = vpack.c.b16 %v1846, %v1845
    %1851 = vmatprep.subr.bf16.mxu0 0
    %1852 = vmatpush1.bf16.msra.mxu0 %v1847
    %1853 = vmatprep.subr.bf16.mxu0 0
    %1854 = vmatpush1.bf16.msra.mxu0 %v1848
    %1855 = vmatprep.subr.bf16.mxu0 0
    %1856 = vmatpush1.bf16.msra.mxu0 0
    %1857 = vmatprep.subr.bf16.mxu0 0
    %1858 = vmatpush1.bf16.msra.mxu0 0
    %1859 = vmatprep.subr.bf16.mxu0 0
    %1860 = vmatpush1.bf16.msra.mxu0 0
    %1861 = vmatprep.subr.bf16.mxu0 0
    %1862 = vmatpush1.bf16.msra.mxu0 0
    %1863 = vmatprep.subr.bf16.mxu0 0
    %1864 = vmatpush1.bf16.msra.mxu0 0
    %1865 = vmatprep.subr.bf16.mxu0 0
    %1866 = vmatpush1.bf16.msra.mxu0 0
    %1867 = vmatprep.subr.bf16.mxu0 0
    %1868 = vmatpush1.bf16.msra.mxu0 0
    %1869 = vmatprep.subr.bf16.mxu0 0
    %1870 = vmatpush1.bf16.msra.mxu0 0
    %1871 = vmatprep.subr.bf16.mxu0 0
    %1872 = vmatpush1.bf16.msra.mxu0 0
    %1873 = vmatprep.subr.bf16.mxu0 0
    %1874 = vmatpush1.bf16.msra.mxu0 0
    %1875 = vmatprep.subr.bf16.mxu0 0
    %1876 = vmatpush1.bf16.msra.mxu0 0
    %1877 = vmatprep.subr.bf16.mxu0 0
    %1878 = vmatpush1.bf16.msra.mxu0 0
    %1879 = vmatprep.subr.bf16.mxu0 0
    %1880 = vmatpush1.bf16.msra.mxu0 0
    %1881 = vmatprep.subr.bf16.mxu0 0
    %1882 = vmatpush1.bf16.msra.mxu0 0
    %1883 = vmatprep.mubr.bf16.mxu0 0
    %1884 = vmatmul.mubr.bf16.gmra.mrb[0].mxu0 %v1662
    %v1885 = vpop.f32.mrb[0].mxu0
    %v1886 = vadd.f32 0.0, %v1885
    %v1887 = vpop.f32.mrb[0].mxu0
    %v1888 = vpop.f32.mrb[0].mxu0
    %v1889 = vpop.f32.mrb[0].mxu0
    %1890 = vdwg.mxu0
    %v1891 = vadd.f32 %v1834, %v1886
    %v1892 = vxor.u32 %v1891, 2147483648
    %v1893 = vmul.f32 %v1892, 1.442695
    %v1894 = vpow.pop %v1893
    %v1895 = vadd.f32 %v1894, 1.0
    %v1896 = vrcp.pop %v1895
    %v1897 = vmul.f32 1.0, %v1896
    %v1898 = vmul.f32 %v1774, %v1642
    %v1899 = vmul.f32 %v1710, %v1833
    %v1900 = vadd.f32 %v1898, %v1899
    %v1901 = vtanh.pop %v1900
    %v1902 = vmul.f32 %v1897, %v1901
    %1903 = vst.msk [vmem:[#allocation4] sm:$0x3] %vm306, %v1902
    %1904 = vst.msk [vmem:[#allocation5] sm:$0x3] %vm306, %v1900
    %s1905 = scalar_lea.vmem [#allocation3], 10
    %1906 = vst.msk [vmem:[%s1905] sm:$0x3] %vm306, %v1902
    %v1907 = vld [vmem:[#allocation4] sm:$0x3]
    %v1908 = vld [vmem:[#allocation5] sm:$0x3]
    %v1909 = vpack.c.bf16 %v1907, %v1907
    %v1910 = vld [vmem:[#allocation2 + $0xc] sm:$0x3]
    %v1911 = vld [vmem:[#allocation9] sm:$0xf]
    %v1912 = vld [vmem:[#allocation9 + $0x4] sm:$0xf]
    %v1913 = vld [vmem:[#allocation9 + $0x8] sm:$0xf]
    %v1914 = vld [vmem:[#allocation9 + $0xc] sm:$0xf]
    %v1919 = vunpack.c.l.b16 %v1911
    %v1920 = vunpack.c.l.b16 %v1912
    %v1921 = vunpack.c.l.b16 %v1913
    %v1922 = vunpack.c.l.b16 %v1914
    %v1923 = vpack.c.b16 %v1920, %v1919
    %v1924 = vpack.c.b16 %v1922, %v1921
    %v1928 = vsel %vm120, %v1909, 0
    %1930 = vmatprep.subr.bf16.mxu0 0
    %1931 = vmatpush1.bf16.msra.mxu0 %v1923
    %1932 = vmatprep.subr.bf16.mxu0 0
    %1933 = vmatpush1.bf16.msra.mxu0 %v1924
    %1934 = vmatprep.subr.bf16.mxu0 0
    %1935 = vmatpush1.bf16.msra.mxu0 0
    %1936 = vmatprep.subr.bf16.mxu0 0
    %1937 = vmatpush1.bf16.msra.mxu0 0
    %1938 = vmatprep.subr.bf16.mxu0 0
    %1939 = vmatpush1.bf16.msra.mxu0 0
    %1940 = vmatprep.subr.bf16.mxu0 0
    %1941 = vmatpush1.bf16.msra.mxu0 0
    %1942 = vmatprep.subr.bf16.mxu0 0
    %1943 = vmatpush1.bf16.msra.mxu0 0
    %1944 = vmatprep.subr.bf16.mxu0 0
    %1945 = vmatpush1.bf16.msra.mxu0 0
    %1946 = vmatprep.subr.bf16.mxu0 0
    %1947 = vmatpush1.bf16.msra.mxu0 0
    %1948 = vmatprep.subr.bf16.mxu0 0
    %1949 = vmatpush1.bf16.msra.mxu0 0
    %1950 = vmatprep.subr.bf16.mxu0 0
    %1951 = vmatpush1.bf16.msra.mxu0 0
    %1952 = vmatprep.subr.bf16.mxu0 0
    %1953 = vmatpush1.bf16.msra.mxu0 0
    %1954 = vmatprep.subr.bf16.mxu0 0
    %1955 = vmatpush1.bf16.msra.mxu0 0
    %1956 = vmatprep.subr.bf16.mxu0 0
    %1957 = vmatpush1.bf16.msra.mxu0 0
    %1958 = vmatprep.subr.bf16.mxu0 0
    %1959 = vmatpush1.bf16.msra.mxu0 0
    %1960 = vmatprep.subr.bf16.mxu0 0
    %1961 = vmatpush1.bf16.msra.mxu0 0
    %1962 = vmatprep.mubr.bf16.mxu0 0
    %1963 = vmatmul.mubr.bf16.gmra.mrb[0].mxu0 %v1928
    %v1964 = vpop.f32.mrb[0].mxu0
    %v1965 = vadd.f32 0.0, %v1964
    %v1966 = vpop.f32.mrb[0].mxu0
    %v1967 = vpop.f32.mrb[0].mxu0
    %v1968 = vpop.f32.mrb[0].mxu0
    %1969 = vdwg.mxu0
    %v1970 = vadd.f32 %v1910, %v1965
    %v1971 = vxor.u32 %v1970, 2147483648
    %v1972 = vmul.f32 %v1971, 1.442695
    %v1973 = vpow.pop %v1972
    %v1974 = vadd.f32 %v1973, 1.0
    %v1975 = vrcp.pop %v1974
    %v1976 = vmul.f32 1.0, %v1975
    %v1977 = vld [vmem:[%s181 + $0xc] sm:$0x3]
    %v1978 = vld [vmem:[%s380] sm:$0xf]
    %v1979 = vld [vmem:[%s380 + $0x4] sm:$0xf]
    %v1980 = vld [vmem:[%s380 + $0x8] sm:$0xf]
    %v1981 = vld [vmem:[%s380 + $0xc] sm:$0xf]
    %v1986 = vunpack.c.l.b16 %v1978
    %v1987 = vunpack.c.l.b16 %v1979
    %v1988 = vunpack.c.l.b16 %v1980
    %v1989 = vunpack.c.l.b16 %v1981
    %v1990 = vpack.c.b16 %v1987, %v1986
    %v1991 = vpack.c.b16 %v1989, %v1988
    %1994 = vmatprep.subr.bf16.mxu0 0
    %1995 = vmatpush1.bf16.msra.mxu0 %v1990
    %1996 = vmatprep.subr.bf16.mxu0 0
    %1997 = vmatpush1.bf16.msra.mxu0 %v1991
    %1998 = vmatprep.subr.bf16.mxu0 0
    %1999 = vmatpush1.bf16.msra.mxu0 0
    %2000 = vmatprep.subr.bf16.mxu0 0
    %2001 = vmatpush1.bf16.msra.mxu0 0
    %2002 = vmatprep.subr.bf16.mxu0 0
    %2003 = vmatpush1.bf16.msra.mxu0 0
    %2004 = vmatprep.subr.bf16.mxu0 0
    %2005 = vmatpush1.bf16.msra.mxu0 0
    %2006 = vmatprep.subr.bf16.mxu0 0
    %2007 = vmatpush1.bf16.msra.mxu0 0
    %2008 = vmatprep.subr.bf16.mxu0 0
    %2009 = vmatpush1.bf16.msra.mxu0 0
    %2010 = vmatprep.subr.bf16.mxu0 0
    %2011 = vmatpush1.bf16.msra.mxu0 0
    %2012 = vmatprep.subr.bf16.mxu0 0
    %2013 = vmatpush1.bf16.msra.mxu0 0
    %2014 = vmatprep.subr.bf16.mxu0 0
    %2015 = vmatpush1.bf16.msra.mxu0 0
    %2016 = vmatprep.subr.bf16.mxu0 0
    %2017 = vmatpush1.bf16.msra.mxu0 0
    %2018 = vmatprep.subr.bf16.mxu0 0
    %2019 = vmatpush1.bf16.msra.mxu0 0
    %2020 = vmatprep.subr.bf16.mxu0 0
    %2021 = vmatpush1.bf16.msra.mxu0 0
    %2022 = vmatprep.subr.bf16.mxu0 0
    %2023 = vmatpush1.bf16.msra.mxu0 0
    %2024 = vmatprep.subr.bf16.mxu0 0
    %2025 = vmatpush1.bf16.msra.mxu0 0
    %2026 = vmatprep.mubr.bf16.mxu0 0
    %2027 = vmatmul.mubr.bf16.gmra.mrb[0].mxu0 %v1928
    %v2028 = vpop.f32.mrb[0].mxu0
    %v2029 = vadd.f32 0.0, %v2028
    %v2030 = vpop.f32.mrb[0].mxu0
    %v2031 = vpop.f32.mrb[0].mxu0
    %v2032 = vpop.f32.mrb[0].mxu0
    %2033 = vdwg.mxu0
    %v2034 = vadd.f32 %v1977, %v2029
    %v2035 = vxor.u32 %v2034, 2147483648
    %v2036 = vmul.f32 %v2035, 1.442695
    %v2037 = vpow.pop %v2036
    %v2038 = vadd.f32 %v2037, 1.0
    %v2039 = vrcp.pop %v2038
    %v2040 = vmul.f32 1.0, %v2039
    %v2041 = vld [vmem:[%s242 + $0xc] sm:$0x3]
    %v2042 = vld [vmem:[%s445] sm:$0xf]
    %v2043 = vld [vmem:[%s445 + $0x4] sm:$0xf]
    %v2044 = vld [vmem:[%s445 + $0x8] sm:$0xf]
    %v2045 = vld [vmem:[%s445 + $0xc] sm:$0xf]
    %v2050 = vunpack.c.l.b16 %v2042
    %v2051 = vunpack.c.l.b16 %v2043
    %v2052 = vunpack.c.l.b16 %v2044
    %v2053 = vunpack.c.l.b16 %v2045
    %v2054 = vpack.c.b16 %v2051, %v2050
    %v2055 = vpack.c.b16 %v2053, %v2052
    %2058 = vmatprep.subr.bf16.mxu0 0
    %2059 = vmatpush1.bf16.msra.mxu0 %v2054
    %2060 = vmatprep.subr.bf16.mxu0 0
    %2061 = vmatpush1.bf16.msra.mxu0 %v2055
    %2062 = vmatprep.subr.bf16.mxu0 0
    %2063 = vmatpush1.bf16.msra.mxu0 0
    %2064 = vmatprep.subr.bf16.mxu0 0
    %2065 = vmatpush1.bf16.msra.mxu0 0
    %2066 = vmatprep.subr.bf16.mxu0 0
    %2067 = vmatpush1.bf16.msra.mxu0 0
    %2068 = vmatprep.subr.bf16.mxu0 0
    %2069 = vmatpush1.bf16.msra.mxu0 0
    %2070 = vmatprep.subr.bf16.mxu0 0
    %2071 = vmatpush1.bf16.msra.mxu0 0
    %2072 = vmatprep.subr.bf16.mxu0 0
    %2073 = vmatpush1.bf16.msra.mxu0 0
    %2074 = vmatprep.subr.bf16.mxu0 0
    %2075 = vmatpush1.bf16.msra.mxu0 0
    %2076 = vmatprep.subr.bf16.mxu0 0
    %2077 = vmatpush1.bf16.msra.mxu0 0
    %2078 = vmatprep.subr.bf16.mxu0 0
    %2079 = vmatpush1.bf16.msra.mxu0 0
    %2080 = vmatprep.subr.bf16.mxu0 0
    %2081 = vmatpush1.bf16.msra.mxu0 0
    %2082 = vmatprep.subr.bf16.mxu0 0
    %2083 = vmatpush1.bf16.msra.mxu0 0
    %2084 = vmatprep.subr.bf16.mxu0 0
    %2085 = vmatpush1.bf16.msra.mxu0 0
    %2086 = vmatprep.subr.bf16.mxu0 0
    %2087 = vmatpush1.bf16.msra.mxu0 0
    %2088 = vmatprep.subr.bf16.mxu0 0
    %2089 = vmatpush1.bf16.msra.mxu0 0
    %2090 = vmatprep.mubr.bf16.mxu0 0
    %2091 = vmatmul.mubr.bf16.gmra.mrb[0].mxu0 %v1928
    %v2092 = vpop.f32.mrb[0].mxu0
    %v2093 = vadd.f32 0.0, %v2092
    %v2094 = vpop.f32.mrb[0].mxu0
    %v2095 = vpop.f32.mrb[0].mxu0
    %v2096 = vpop.f32.mrb[0].mxu0
    %2097 = vdwg.mxu0
    %v2098 = vadd.f32 %v2041, %v2093
    %v2099 = vtanh.pop %v2098
    %v2100 = vld [vmem:[%s303 + $0xc] sm:$0x3]
    %v2101 = vld [vmem:[%s505] sm:$0xf]
    %v2102 = vld [vmem:[%s505 + $0x4] sm:$0xf]
    %v2103 = vld [vmem:[%s505 + $0x8] sm:$0xf]
    %v2104 = vld [vmem:[%s505 + $0xc] sm:$0xf]
    %v2109 = vunpack.c.l.b16 %v2101
    %v2110 = vunpack.c.l.b16 %v2102
    %v2111 = vunpack.c.l.b16 %v2103
    %v2112 = vunpack.c.l.b16 %v2104
    %v2113 = vpack.c.b16 %v2110, %v2109
    %v2114 = vpack.c.b16 %v2112, %v2111
    %2117 = vmatprep.subr.bf16.mxu0 0
    %2118 = vmatpush1.bf16.msra.mxu0 %v2113
    %2119 = vmatprep.subr.bf16.mxu0 0
    %2120 = vmatpush1.bf16.msra.mxu0 %v2114
    %2121 = vmatprep.subr.bf16.mxu0 0
    %2122 = vmatpush1.bf16.msra.mxu0 0
    %2123 = vmatprep.subr.bf16.mxu0 0
    %2124 = vmatpush1.bf16.msra.mxu0 0
    %2125 = vmatprep.subr.bf16.mxu0 0
    %2126 = vmatpush1.bf16.msra.mxu0 0
    %2127 = vmatprep.subr.bf16.mxu0 0
    %2128 = vmatpush1.bf16.msra.mxu0 0
    %2129 = vmatprep.subr.bf16.mxu0 0
    %2130 = vmatpush1.bf16.msra.mxu0 0
    %2131 = vmatprep.subr.bf16.mxu0 0
    %2132 = vmatpush1.bf16.msra.mxu0 0
    %2133 = vmatprep.subr.bf16.mxu0 0
    %2134 = vmatpush1.bf16.msra.mxu0 0
    %2135 = vmatprep.subr.bf16.mxu0 0
    %2136 = vmatpush1.bf16.msra.mxu0 0
    %2137 = vmatprep.subr.bf16.mxu0 0
    %2138 = vmatpush1.bf16.msra.mxu0 0
    %2139 = vmatprep.subr.bf16.mxu0 0
    %2140 = vmatpush1.bf16.msra.mxu0 0
    %2141 = vmatprep.subr.bf16.mxu0 0
    %2142 = vmatpush1.bf16.msra.mxu0 0
    %2143 = vmatprep.subr.bf16.mxu0 0
    %2144 = vmatpush1.bf16.msra.mxu0 0
    %2145 = vmatprep.subr.bf16.mxu0 0
    %2146 = vmatpush1.bf16.msra.mxu0 0
    %2147 = vmatprep.subr.bf16.mxu0 0
    %2148 = vmatpush1.bf16.msra.mxu0 0
    %2149 = vmatprep.mubr.bf16.mxu0 0
    %2150 = vmatmul.mubr.bf16.gmra.mrb[0].mxu0 %v1928
    %v2151 = vpop.f32.mrb[0].mxu0
    %v2152 = vadd.f32 0.0, %v2151
    %v2153 = vpop.f32.mrb[0].mxu0
    %v2154 = vpop.f32.mrb[0].mxu0
    %v2155 = vpop.f32.mrb[0].mxu0
    %2156 = vdwg.mxu0
    %v2157 = vadd.f32 %v2100, %v2152
    %v2158 = vxor.u32 %v2157, 2147483648
    %v2159 = vmul.f32 %v2158, 1.442695
    %v2160 = vpow.pop %v2159
    %v2161 = vadd.f32 %v2160, 1.0
    %v2162 = vrcp.pop %v2161
    %v2163 = vmul.f32 1.0, %v2162
    %v2164 = vmul.f32 %v2040, %v1908
    %v2165 = vmul.f32 %v1976, %v2099
    %v2166 = vadd.f32 %v2164, %v2165
    %v2167 = vtanh.pop %v2166
    %v2168 = vmul.f32 %v2163, %v2167
    %2169 = vst.msk [vmem:[#allocation4] sm:$0x3] %vm306, %v2168
    %2170 = vst.msk [vmem:[#allocation5] sm:$0x3] %vm306, %v2166
    %s2171 = scalar_lea.vmem [#allocation3], 12
    %2172 = vst.msk [vmem:[%s2171] sm:$0x3] %vm306, %v2168
    %v2173 = vld [vmem:[#allocation4] sm:$0x3]
    %v2174 = vld [vmem:[#allocation5] sm:$0x3]
    %v2175 = vpack.c.bf16 %v2173, %v2173
    %v2176 = vld [vmem:[#allocation2 + $0xe] sm:$0x3]
    %v2177 = vld [vmem:[#allocation9] sm:$0xf]
    %v2178 = vld [vmem:[#allocation9 + $0x4] sm:$0xf]
    %v2179 = vld [vmem:[#allocation9 + $0x8] sm:$0xf]
    %v2180 = vld [vmem:[#allocation9 + $0xc] sm:$0xf]
    %v2185 = vunpack.c.l.b16 %v2177
    %v2186 = vunpack.c.l.b16 %v2178
    %v2187 = vunpack.c.l.b16 %v2179
    %v2188 = vunpack.c.l.b16 %v2180
    %v2189 = vpack.c.b16 %v2186, %v2185
    %v2190 = vpack.c.b16 %v2188, %v2187
    %v2194 = vsel %vm120, %v2175, 0
    %2196 = vmatprep.subr.bf16.mxu0 0
    %2197 = vmatpush1.bf16.msra.mxu0 %v2189
    %2198 = vmatprep.subr.bf16.mxu0 0
    %2199 = vmatpush1.bf16.msra.mxu0 %v2190
    %2200 = vmatprep.subr.bf16.mxu0 0
    %2201 = vmatpush1.bf16.msra.mxu0 0
    %2202 = vmatprep.subr.bf16.mxu0 0
    %2203 = vmatpush1.bf16.msra.mxu0 0
    %2204 = vmatprep.subr.bf16.mxu0 0
    %2205 = vmatpush1.bf16.msra.mxu0 0
    %2206 = vmatprep.subr.bf16.mxu0 0
    %2207 = vmatpush1.bf16.msra.mxu0 0
    %2208 = vmatprep.subr.bf16.mxu0 0
    %2209 = vmatpush1.bf16.msra.mxu0 0
    %2210 = vmatprep.subr.bf16.mxu0 0
    %2211 = vmatpush1.bf16.msra.mxu0 0
    %2212 = vmatprep.subr.bf16.mxu0 0
    %2213 = vmatpush1.bf16.msra.mxu0 0
    %2214 = vmatprep.subr.bf16.mxu0 0
    %2215 = vmatpush1.bf16.msra.mxu0 0
    %2216 = vmatprep.subr.bf16.mxu0 0
    %2217 = vmatpush1.bf16.msra.mxu0 0
    %2218 = vmatprep.subr.bf16.mxu0 0
    %2219 = vmatpush1.bf16.msra.mxu0 0
    %2220 = vmatprep.subr.bf16.mxu0 0
    %2221 = vmatpush1.bf16.msra.mxu0 0
    %2222 = vmatprep.subr.bf16.mxu0 0
    %2223 = vmatpush1.bf16.msra.mxu0 0
    %2224 = vmatprep.subr.bf16.mxu0 0
    %2225 = vmatpush1.bf16.msra.mxu0 0
    %2226 = vmatprep.subr.bf16.mxu0 0
    %2227 = vmatpush1.bf16.msra.mxu0 0
    %2228 = vmatprep.mubr.bf16.mxu0 0
    %2229 = vmatmul.mubr.bf16.gmra.mrb[0].mxu0 %v2194
    %v2230 = vpop.f32.mrb[0].mxu0
    %v2231 = vadd.f32 0.0, %v2230
    %v2232 = vpop.f32.mrb[0].mxu0
    %v2233 = vpop.f32.mrb[0].mxu0
    %v2234 = vpop.f32.mrb[0].mxu0
    %2235 = vdwg.mxu0
    %v2236 = vadd.f32 %v2176, %v2231
    %v2237 = vxor.u32 %v2236, 2147483648
    %v2238 = vmul.f32 %v2237, 1.442695
    %v2239 = vpow.pop %v2238
    %v2240 = vadd.f32 %v2239, 1.0
    %v2241 = vrcp.pop %v2240
    %v2242 = vmul.f32 1.0, %v2241
    %v2243 = vld [vmem:[%s181 + $0xe] sm:$0x3]
    %v2244 = vld [vmem:[%s380] sm:$0xf]
    %v2245 = vld [vmem:[%s380 + $0x4] sm:$0xf]
    %v2246 = vld [vmem:[%s380 + $0x8] sm:$0xf]
    %v2247 = vld [vmem:[%s380 + $0xc] sm:$0xf]
    %v2252 = vunpack.c.l.b16 %v2244
    %v2253 = vunpack.c.l.b16 %v2245
    %v2254 = vunpack.c.l.b16 %v2246
    %v2255 = vunpack.c.l.b16 %v2247
    %v2256 = vpack.c.b16 %v2253, %v2252
    %v2257 = vpack.c.b16 %v2255, %v2254
    %2260 = vmatprep.subr.bf16.mxu0 0
    %2261 = vmatpush1.bf16.msra.mxu0 %v2256
    %2262 = vmatprep.subr.bf16.mxu0 0
    %2263 = vmatpush1.bf16.msra.mxu0 %v2257
    %2264 = vmatprep.subr.bf16.mxu0 0
    %2265 = vmatpush1.bf16.msra.mxu0 0
    %2266 = vmatprep.subr.bf16.mxu0 0
    %2267 = vmatpush1.bf16.msra.mxu0 0
    %2268 = vmatprep.subr.bf16.mxu0 0
    %2269 = vmatpush1.bf16.msra.mxu0 0
    %2270 = vmatprep.subr.bf16.mxu0 0
    %2271 = vmatpush1.bf16.msra.mxu0 0
    %2272 = vmatprep.subr.bf16.mxu0 0
    %2273 = vmatpush1.bf16.msra.mxu0 0
    %2274 = vmatprep.subr.bf16.mxu0 0
    %2275 = vmatpush1.bf16.msra.mxu0 0
    %2276 = vmatprep.subr.bf16.mxu0 0
    %2277 = vmatpush1.bf16.msra.mxu0 0
    %2278 = vmatprep.subr.bf16.mxu0 0
    %2279 = vmatpush1.bf16.msra.mxu0 0
    %2280 = vmatprep.subr.bf16.mxu0 0
    %2281 = vmatpush1.bf16.msra.mxu0 0
    %2282 = vmatprep.subr.bf16.mxu0 0
    %2283 = vmatpush1.bf16.msra.mxu0 0
    %2284 = vmatprep.subr.bf16.mxu0 0
    %2285 = vmatpush1.bf16.msra.mxu0 0
    %2286 = vmatprep.subr.bf16.mxu0 0
    %2287 = vmatpush1.bf16.msra.mxu0 0
    %2288 = vmatprep.subr.bf16.mxu0 0
    %2289 = vmatpush1.bf16.msra.mxu0 0
    %2290 = vmatprep.subr.bf16.mxu0 0
    %2291 = vmatpush1.bf16.msra.mxu0 0
    %2292 = vmatprep.mubr.bf16.mxu0 0
    %2293 = vmatmul.mubr.bf16.gmra.mrb[0].mxu0 %v2194
    %v2294 = vpop.f32.mrb[0].mxu0
    %v2295 = vadd.f32 0.0, %v2294
    %v2296 = vpop.f32.mrb[0].mxu0
    %v2297 = vpop.f32.mrb[0].mxu0
    %v2298 = vpop.f32.mrb[0].mxu0
    %2299 = vdwg.mxu0
    %v2300 = vadd.f32 %v2243, %v2295
    %v2301 = vxor.u32 %v2300, 2147483648
    %v2302 = vmul.f32 %v2301, 1.442695
    %v2303 = vpow.pop %v2302
    %v2304 = vadd.f32 %v2303, 1.0
    %v2305 = vrcp.pop %v2304
    %v2306 = vmul.f32 1.0, %v2305
    %v2307 = vld [vmem:[%s242 + $0xe] sm:$0x3]
    %v2308 = vld [vmem:[%s445] sm:$0xf]
    %v2309 = vld [vmem:[%s445 + $0x4] sm:$0xf]
    %v2310 = vld [vmem:[%s445 + $0x8] sm:$0xf]
    %v2311 = vld [vmem:[%s445 + $0xc] sm:$0xf]
    %v2316 = vunpack.c.l.b16 %v2308
    %v2317 = vunpack.c.l.b16 %v2309
    %v2318 = vunpack.c.l.b16 %v2310
    %v2319 = vunpack.c.l.b16 %v2311
    %v2320 = vpack.c.b16 %v2317, %v2316
    %v2321 = vpack.c.b16 %v2319, %v2318
    %2324 = vmatprep.subr.bf16.mxu0 0
    %2325 = vmatpush1.bf16.msra.mxu0 %v2320
    %2326 = vmatprep.subr.bf16.mxu0 0
    %2327 = vmatpush1.bf16.msra.mxu0 %v2321
    %2328 = vmatprep.subr.bf16.mxu0 0
    %2329 = vmatpush1.bf16.msra.mxu0 0
    %2330 = vmatprep.subr.bf16.mxu0 0
    %2331 = vmatpush1.bf16.msra.mxu0 0
    %2332 = vmatprep.subr.bf16.mxu0 0
    %2333 = vmatpush1.bf16.msra.mxu0 0
    %2334 = vmatprep.subr.bf16.mxu0 0
    %2335 = vmatpush1.bf16.msra.mxu0 0
    %2336 = vmatprep.subr.bf16.mxu0 0
    %2337 = vmatpush1.bf16.msra.mxu0 0
    %2338 = vmatprep.subr.bf16.mxu0 0
    %2339 = vmatpush1.bf16.msra.mxu0 0
    %2340 = vmatprep.subr.bf16.mxu0 0
    %2341 = vmatpush1.bf16.msra.mxu0 0
    %2342 = vmatprep.subr.bf16.mxu0 0
    %2343 = vmatpush1.bf16.msra.mxu0 0
    %2344 = vmatprep.subr.bf16.mxu0 0
    %2345 = vmatpush1.bf16.msra.mxu0 0
    %2346 = vmatprep.subr.bf16.mxu0 0
    %2347 = vmatpush1.bf16.msra.mxu0 0
    %2348 = vmatprep.subr.bf16.mxu0 0
    %2349 = vmatpush1.bf16.msra.mxu0 0
    %2350 = vmatprep.subr.bf16.mxu0 0
    %2351 = vmatpush1.bf16.msra.mxu0 0
    %2352 = vmatprep.subr.bf16.mxu0 0
    %2353 = vmatpush1.bf16.msra.mxu0 0
    %2354 = vmatprep.subr.bf16.mxu0 0
    %2355 = vmatpush1.bf16.msra.mxu0 0
    %2356 = vmatprep.mubr.bf16.mxu0 0
    %2357 = vmatmul.mubr.bf16.gmra.mrb[0].mxu0 %v2194
    %v2358 = vpop.f32.mrb[0].mxu0
    %v2359 = vadd.f32 0.0, %v2358
    %v2360 = vpop.f32.mrb[0].mxu0
    %v2361 = vpop.f32.mrb[0].mxu0
    %v2362 = vpop.f32.mrb[0].mxu0
    %2363 = vdwg.mxu0
    %v2364 = vadd.f32 %v2307, %v2359
    %v2365 = vtanh.pop %v2364
    %v2366 = vld [vmem:[%s303 + $0xe] sm:$0x3]
    %v2367 = vld [vmem:[%s505] sm:$0xf]
    %v2368 = vld [vmem:[%s505 + $0x4] sm:$0xf]
    %v2369 = vld [vmem:[%s505 + $0x8] sm:$0xf]
    %v2370 = vld [vmem:[%s505 + $0xc] sm:$0xf]
    %v2375 = vunpack.c.l.b16 %v2367
    %v2376 = vunpack.c.l.b16 %v2368
    %v2377 = vunpack.c.l.b16 %v2369
    %v2378 = vunpack.c.l.b16 %v2370
    %v2379 = vpack.c.b16 %v2376, %v2375
    %v2380 = vpack.c.b16 %v2378, %v2377
    %2383 = vmatprep.subr.bf16.mxu0 0
    %2384 = vmatpush1.bf16.msra.mxu0 %v2379
    %2385 = vmatprep.subr.bf16.mxu0 0
    %2386 = vmatpush1.bf16.msra.mxu0 %v2380
    %2387 = vmatprep.subr.bf16.mxu0 0
    %2388 = vmatpush1.bf16.msra.mxu0 0
    %2389 = vmatprep.subr.bf16.mxu0 0
    %2390 = vmatpush1.bf16.msra.mxu0 0
    %2391 = vmatprep.subr.bf16.mxu0 0
    %2392 = vmatpush1.bf16.msra.mxu0 0
    %2393 = vmatprep.subr.bf16.mxu0 0
    %2394 = vmatpush1.bf16.msra.mxu0 0
    %2395 = vmatprep.subr.bf16.mxu0 0
    %2396 = vmatpush1.bf16.msra.mxu0 0
    %2397 = vmatprep.subr.bf16.mxu0 0
    %2398 = vmatpush1.bf16.msra.mxu0 0
    %2399 = vmatprep.subr.bf16.mxu0 0
    %2400 = vmatpush1.bf16.msra.mxu0 0
    %2401 = vmatprep.subr.bf16.mxu0 0
    %2402 = vmatpush1.bf16.msra.mxu0 0
    %2403 = vmatprep.subr.bf16.mxu0 0
    %2404 = vmatpush1.bf16.msra.mxu0 0
    %2405 = vmatprep.subr.bf16.mxu0 0
    %2406 = vmatpush1.bf16.msra.mxu0 0
    %2407 = vmatprep.subr.bf16.mxu0 0
    %2408 = vmatpush1.bf16.msra.mxu0 0
    %2409 = vmatprep.subr.bf16.mxu0 0
    %2410 = vmatpush1.bf16.msra.mxu0 0
    %2411 = vmatprep.subr.bf16.mxu0 0
    %2412 = vmatpush1.bf16.msra.mxu0 0
    %2413 = vmatprep.subr.bf16.mxu0 0
    %2414 = vmatpush1.bf16.msra.mxu0 0
    %2415 = vmatprep.mubr.bf16.mxu0 0
    %2416 = vmatmul.mubr.bf16.gmra.mrb[0].mxu0 %v2194
    %v2417 = vpop.f32.mrb[0].mxu0
    %v2418 = vadd.f32 0.0, %v2417
    %v2419 = vpop.f32.mrb[0].mxu0
    %v2420 = vpop.f32.mrb[0].mxu0
    %v2421 = vpop.f32.mrb[0].mxu0
    %2422 = vdwg.mxu0
    %v2423 = vadd.f32 %v2366, %v2418
    %v2424 = vxor.u32 %v2423, 2147483648
    %v2425 = vmul.f32 %v2424, 1.442695
    %v2426 = vpow.pop %v2425
    %v2427 = vadd.f32 %v2426, 1.0
    %v2428 = vrcp.pop %v2427
    %v2429 = vmul.f32 1.0, %v2428
    %v2430 = vmul.f32 %v2306, %v2174
    %v2431 = vmul.f32 %v2242, %v2365
    %v2432 = vadd.f32 %v2430, %v2431
    %v2433 = vtanh.pop %v2432
    %v2434 = vmul.f32 %v2429, %v2433
    %2435 = vst.msk [vmem:[#allocation4] sm:$0x3] %vm306, %v2434
    %2436 = vst.msk [vmem:[#allocation5] sm:$0x3] %vm306, %v2432
    %s2437 = scalar_lea.vmem [#allocation3], 14
    %2438 = vst.msk [vmem:[%s2437] sm:$0x3] %vm306, %v2434
    %v2439 = vld [vmem:[#allocation3] sm:$0x3]
    %v2440 = vld [vmem:[#allocation3 + $0x2] sm:$0x3]
    %v2441 = vld [vmem:[#allocation3 + $0x4] sm:$0x3]
    %v2442 = vld [vmem:[#allocation3 + $0x6] sm:$0x3]
    %v2443 = vld [vmem:[#allocation3 + $0x8] sm:$0x3]
    %v2444 = vld [vmem:[#allocation3 + $0xa] sm:$0x3]
    %v2445 = vld [vmem:[#allocation3 + $0xc] sm:$0x3]
    %v2446 = vld [vmem:[#allocation3 + $0xe] sm:$0x3]
    %v2447 = vld [vmem:[#allocation4] sm:$0x3]
    %v2448 = vmul.f32 %v2439, %v2447
    %v2449 = vmul.f32 %v2440, %v2447
    %v2450 = vmul.f32 %v2441, %v2447
    %v2451 = vmul.f32 %v2442, %v2447
    %v2452 = vmul.f32 %v2443, %v2447
    %v2453 = vmul.f32 %v2444, %v2447
    %v2454 = vmul.f32 %v2445, %v2447
    %v2455 = vmul.f32 %v2446, %v2447
    %v2456 = vsel %vm306, %v2448, 0.0
    %2457 = vadd.xlane.f32.xlu0 %v2456
    %v2458 = vpop.xlane.xlu0 %2457
    %v2459 = vsel %vm306, %v2449, 0.0
    %2460 = vadd.xlane.f32.xlu0 %v2459
    %v2461 = vpop.xlane.xlu0 %2460
    %v2462 = vsel %vm306, %v2450, 0.0
    %2463 = vadd.xlane.f32.xlu0 %v2462
    %v2464 = vpop.xlane.xlu0 %2463
    %v2465 = vsel %vm306, %v2451, 0.0
    %2466 = vadd.xlane.f32.xlu0 %v2465
    %v2467 = vpop.xlane.xlu0 %2466
    %v2468 = vsel %vm306, %v2452, 0.0
    %2469 = vadd.xlane.f32.xlu0 %v2468
    %v2470 = vpop.xlane.xlu0 %2469
    %v2471 = vsel %vm306, %v2453, 0.0
    %2472 = vadd.xlane.f32.xlu0 %v2471
    %v2473 = vpop.xlane.xlu0 %2472
    %v2474 = vsel %vm306, %v2454, 0.0
    %2475 = vadd.xlane.f32.xlu0 %v2474
    %v2476 = vpop.xlane.xlu0 %2475
    %v2477 = vsel %vm306, %v2455, 0.0
    %2478 = vadd.xlane.f32.xlu0 %v2477
    %v2479 = vpop.xlane.xlu0 %2478
    %vm2480 = vcmask 1041408
    %v2481 = vsel %vm2480, %v2458, -inf
    %v2482 = vsel %vm2480, %v2461, -inf
    %v2483 = vsel %vm2480, %v2464, -inf
    %v2484 = vsel %vm2480, %v2467, -inf
    %v2485 = vsel %vm2480, %v2470, -inf
    %v2486 = vmax.f32 %v2481, %v2485
    %v2487 = vsel %vm2480, %v2473, -inf
    %v2488 = vmax.f32 %v2482, %v2487
    %v2489 = vsel %vm2480, %v2476, -inf
    %v2490 = vmax.f32 %v2483, %v2489
    %v2491 = vsel %vm2480, %v2479, -inf
    %v2492 = vmax.f32 %v2484, %v2491
    %v2493 = vmax.f32 %v2486, %v2488
    %v2494 = vmax.f32 %v2490, %v2492
    %v2495 = vmax.f32 %v2493, %v2494
    %v2496 = vsub.f32 %v2458, %v2495
    %v2497 = vsub.f32 %v2461, %v2495
    %v2498 = vsub.f32 %v2464, %v2495
    %v2499 = vsub.f32 %v2467, %v2495
    %v2500 = vsub.f32 %v2470, %v2495
    %v2501 = vsub.f32 %v2473, %v2495
    %v2502 = vsub.f32 %v2476, %v2495
    %v2503 = vsub.f32 %v2479, %v2495
    %v2504 = vmul.f32 %v2496, 1.442695
    %v2505 = vpow.pop %v2504
    %v2506 = vmul.f32 %v2497, 1.442695
    %v2507 = vpow.pop %v2506
    %v2508 = vmul.f32 %v2498, 1.442695
    %v2509 = vpow.pop %v2508
    %v2510 = vmul.f32 %v2499, 1.442695
    %v2511 = vpow.pop %v2510
    %v2512 = vmul.f32 %v2500, 1.442695
    %v2513 = vpow.pop %v2512
    %v2514 = vmul.f32 %v2501, 1.442695
    %v2515 = vpow.pop %v2514
    %v2516 = vmul.f32 %v2502, 1.442695
    %v2517 = vpow.pop %v2516
    %v2518 = vmul.f32 %v2503, 1.442695
    %v2519 = vpow.pop %v2518
    %v2520 = vsel %vm2480, %v2505, 0.0
    %v2521 = vsel %vm2480, %v2507, 0.0
    %v2522 = vadd.f32 %v2520, %v2521
    %v2523 = vsel %vm2480, %v2509, 0.0
    %v2524 = vadd.f32 %v2522, %v2523
    %v2525 = vsel %vm2480, %v2511, 0.0
    %v2526 = vadd.f32 %v2524, %v2525
    %v2527 = vsel %vm2480, %v2513, 0.0
    %v2528 = vadd.f32 %v2526, %v2527
    %v2529 = vsel %vm2480, %v2515, 0.0
    %v2530 = vadd.f32 %v2528, %v2529
    %v2531 = vsel %vm2480, %v2517, 0.0
    %v2532 = vadd.f32 %v2530, %v2531
    %v2533 = vsel %vm2480, %v2519, 0.0
    %v2534 = vadd.f32 %v2532, %v2533
    %v2535 = vrcp.pop %v2534
    %v2536 = vmul.f32 %v2505, %v2535
    %v2537 = vmul.f32 %v2507, %v2535
    %v2538 = vmul.f32 %v2509, %v2535
    %v2539 = vmul.f32 %v2511, %v2535
    %v2540 = vmul.f32 %v2513, %v2535
    %v2541 = vmul.f32 %v2515, %v2535
    %v2542 = vmul.f32 %v2517, %v2535
    %v2543 = vmul.f32 %v2519, %v2535
    %v2544 = vmul.f32 %v2536, %v2439
    %v2545 = vmul.f32 %v2537, %v2440
    %v2546 = vmul.f32 %v2538, %v2441
    %v2547 = vmul.f32 %v2539, %v2442
    %v2548 = vmul.f32 %v2540, %v2443
    %v2549 = vmul.f32 %v2541, %v2444
    %v2550 = vmul.f32 %v2542, %v2445
    %v2551 = vmul.f32 %v2543, %v2446
    %v2552 = vsel %vm306, %v2544, 0.0
    %v2553 = vsel %vm306, %v2545, 0.0
    %v2554 = vadd.f32 %v2552, %v2553
    %v2555 = vsel %vm306, %v2546, 0.0
    %v2556 = vadd.f32 %v2554, %v2555
    %v2557 = vsel %vm306, %v2547, 0.0
    %v2558 = vadd.f32 %v2556, %v2557
    %v2559 = vsel %vm306, %v2548, 0.0
    %v2560 = vadd.f32 %v2558, %v2559
    %v2561 = vsel %vm306, %v2549, 0.0
    %v2562 = vadd.f32 %v2560, %v2561
    %v2563 = vsel %vm306, %v2550, 0.0
    %v2564 = vadd.f32 %v2562, %v2563
    %v2565 = vsel %vm306, %v2551, 0.0
    %v2566 = vadd.f32 %v2564, %v2565
    %v2567 = vpack.c.bf16 %v2566, %v2566
    %v2568 = vld [vmem:[%s4] sm:$0xf]
    %v2569 = vld [vmem:[%s4 + $0x4] sm:$0xf]
    %v2570 = vld [vmem:[%s4 + $0x8] sm:$0xf]
    %v2571 = vld [vmem:[%s4 + $0xc] sm:$0xf]
    %v2572 = vld [vmem:[%s5] sm:$0x1]
    %v2574 = vlaneseq
    %v2575 = vshrl.u32 %v2574, 7
    %v2576 = vsub.s32 0, %v2575
    %v2577 = vrot.slane %v2572, %v2576
    %v2583 = vunpack.c.l.b16 %v2568
    %v2584 = vunpack.c.l.b16 %v2569
    %v2585 = vunpack.c.l.b16 %v2570
    %v2586 = vunpack.c.l.b16 %v2571
    %v2587 = vpack.c.b16 %v2584, %v2583
    %v2588 = vpack.c.b16 %v2586, %v2585
    %v2592 = vsel %vm120, %v2567, 0
    %2594 = vmatprep.subr.bf16.mxu0 0
    %2595 = vmatpush1.bf16.msra.mxu0 %v2587
    %2596 = vmatprep.subr.bf16.mxu0 0
    %2597 = vmatpush1.bf16.msra.mxu0 %v2588
    %2598 = vmatprep.subr.bf16.mxu0 0
    %2599 = vmatpush1.bf16.msra.mxu0 0
    %2600 = vmatprep.subr.bf16.mxu0 0
    %2601 = vmatpush1.bf16.msra.mxu0 0
    %2602 = vmatprep.subr.bf16.mxu0 0
    %2603 = vmatpush1.bf16.msra.mxu0 0
    %2604 = vmatprep.subr.bf16.mxu0 0
    %2605 = vmatpush1.bf16.msra.mxu0 0
    %2606 = vmatprep.subr.bf16.mxu0 0
    %2607 = vmatpush1.bf16.msra.mxu0 0
    %2608 = vmatprep.subr.bf16.mxu0 0
    %2609 = vmatpush1.bf16.msra.mxu0 0
    %2610 = vmatprep.subr.bf16.mxu0 0
    %2611 = vmatpush1.bf16.msra.mxu0 0
    %2612 = vmatprep.subr.bf16.mxu0 0
    %2613 = vmatpush1.bf16.msra.mxu0 0
    %2614 = vmatprep.subr.bf16.mxu0 0
    %2615 = vmatpush1.bf16.msra.mxu0 0
    %2616 = vmatprep.subr.bf16.mxu0 0
    %2617 = vmatpush1.bf16.msra.mxu0 0
    %2618 = vmatprep.subr.bf16.mxu0 0
    %2619 = vmatpush1.bf16.msra.mxu0 0
    %2620 = vmatprep.subr.bf16.mxu0 0
    %2621 = vmatpush1.bf16.msra.mxu0 0
    %2622 = vmatprep.subr.bf16.mxu0 0
    %2623 = vmatpush1.bf16.msra.mxu0 0
    %2624 = vmatprep.subr.bf16.mxu0 0
    %2625 = vmatpush1.bf16.msra.mxu0 0
    %2626 = vmatprep.mubr.bf16.mxu0 0
    %2627 = vmatmul.mubr.bf16.gmra.mrb[0].mxu0 %v2592
    %v2628 = vpop.f32.mrb[0].mxu0
    %v2629 = vadd.f32 %v2577, %v2628
    %v2630 = vpop.f32.mrb[0].mxu0
    %v2631 = vpop.f32.mrb[0].mxu0
    %v2632 = vpop.f32.mrb[0].mxu0
    %2633 = vdwg.mxu0
    %vm2634 = vcmask 25600
    %2635 = vst.msk [vmem:[#allocation11] sm:$0x3] %vm2634, %v2629
    // Predicated region
    $region34: #{tpu_custom_call.1} parent=1 // pred_check
      _
    $region35: #{tpu_custom_call.1} parent=1 // pred_check_branch
      %2637 = sbr.rel (0) target = $region37
    $region36: #{tpu_custom_call.1} parent=1 // pred_region
      %s2639 = ssub.s32 32, 32
      %2640 = vsyncadd [#allocation8], %s2639
      %s2642 = sshll.u32 [#allocation11], 4
      %s2643 = int_to_ptr.vmem [resolvable:$true] %s2642
      %2645 = dma.vmem_to_hbm [thread:$0]  %s2643, 32, %s6, [#allocation8]
    $region37: #{tpu_custom_call.1} parent=1 // pred_fallthru
      _
    // Predicated region
    $region38: #{tpu_custom_call.1} parent=1 // pred_check
      _
    $region39: #{tpu_custom_call.1} parent=1 // pred_check_branch
      %2647 = sbr.rel (0) target = $region41
    $region40: #{tpu_custom_call.1} parent=1 // pred_region
      %2648 = dma.done [#allocation8], 32
    $region41: #{tpu_custom_call.1} parent=1 // pred_fallthru
      _
    %2649 = vsyncpa [#allocation7], 1
    %2650 = vsyncpa [#allocation10], 1
    %2651 = vsyncpa [#allocation8], 1

</llo_original>
